<compile_context>
chip_gen: v5e
topology: v5e:2x2
jax: 0.10.0
libtpu: 0.0.40
codegen_flags: <defaults>
</compile_context>

<pallas_src>
import jax
import jax.numpy as jnp
from jax import lax
from jax.experimental import pallas as pl
from jax.experimental.pallas import tpu as pltpu

_MXU_DTYPE = jnp.bfloat16


def _pick_chunk_rows(H, W, target=64):
    """Largest power-of-2 multiple of W that divides H*W and is <= max(W, target)."""
    HW = H * W
    ch = W
    while ch * 2 <= max(W, target) and HW % (ch * 2) == 0:
        ch *= 2
    return ch


def _make_residual_stack_kernel(H, W, C, Cr):
    HW = H * W
    CH = _pick_chunk_rows(H, W)
    n_chunks = HW // CH

    def kernel(x_ref, w1_ref, w2_ref, o_ref, slab_ref, h_ref):
        # x_ref:    (1, HW, C)      f32  one batch element, lane-dense
        # w1_ref:   (1, 3, 3C, Cr)  bf16 3x3 weights of THIS block, kh-major,
        #                                3C rows ordered (kw, cin)
        # w2_ref:   (1, Cr, C)      bf16 1x1 weights of THIS block
        # o_ref:    (1, HW, C)      f32  residual accumulator (resident over b)
        # slab_ref: (HW, 3C)        bf16 VMEM scratch: 3 horizontal shifts
        # h_ref:    (HW, Cr)        f32  VMEM scratch: 3x3-conv output
        b = pl.program_id(1)

        # First residual block: load the accumulator from the input.
        @pl.when(b == 0)
        def _():
            o_ref[0] = x_ref[0]

        # Pre-broadcast 0/1 edge-column multiplicands (chunk starts are
        # multiples of W, so one chunk-shaped mask serves every chunk).
        col = lax.broadcasted_iota(jnp.int32, (CH, C), 0) % W
        m_left = (col >= 1).astype(jnp.float32)        # dw = -1 valid (w >= 1)
        m_right = (col <= W - 2).astype(jnp.float32)   # dw = +1 valid (w <= W-2)

        # ---- Phase A: build the (HW, 3C) bf16 im2col slab, chunked ---------
        for ci in range(n_chunks):
            r0 = ci * CH
            a = jnp.maximum(o_ref[0, r0:r0 + CH, :], 0.0)          # ReLU(x)
            slab_ref[r0:r0 + CH, C:2 * C] = a.astype(_MXU_DTYPE)   # dw = 0
            # dw = -1: value at (h, w-1); wrapped rows land on masked w == 0.
            a_l = jnp.roll(a, 1, axis=0) * m_left
            slab_ref[r0:r0 + CH, 0:C] = a_l.astype(_MXU_DTYPE)
            # dw = +1: value at (h, w+1); wrapped rows land on masked w == W-1.
            a_r = jnp.roll(a, -1, axis=0) * m_right
            slab_ref[r0:r0 + CH, 2 * C:3 * C] = a_r.astype(_MXU_DTYPE)

        # ---- Phase B: 3x3 conv = three row-offset (., 3C) @ (3C, Cr) -------
        # kh = 1 (dh = 0): all rows.
        h_ref[...] = jnp.dot(slab_ref[...], w1_ref[0, 1],
                             preferred_element_type=jnp.float32)
        # kh = 0 (dh = -1): output rows [W:) read slab rows [:HW-W).
        h_ref[W:HW, :] += jnp.dot(slab_ref[0:HW - W, :], w1_ref[0, 0],
                                  preferred_element_type=jnp.float32)
        # kh = 2 (dh = +1): output rows [:HW-W) read slab rows [W:).
        h_ref[0:HW - W, :] += jnp.dot(slab_ref[W:HW, :], w1_ref[0, 2],
                                      preferred_element_type=jnp.float32)

        # ---- Phase C: ReLU, 1x1 conv, residual add -- chunked ---------------
        for ci in range(n_chunks):
            r0 = ci * CH
            hc = jnp.maximum(h_ref[r0:r0 + CH, :], 0.0).astype(_MXU_DTYPE)
            yc = jnp.dot(hc, w2_ref[0], preferred_element_type=jnp.float32)
            o_ref[0, r0:r0 + CH, :] += yc

        # Last residual block: final ReLU of the stack.
        @pl.when(b == pl.num_programs(1) - 1)
        def _():
            o_ref[0] = jnp.maximum(o_ref[0], 0.0)

    return kernel


def residual_stack(x_nhwc, w1_hwio, w2):
    """x_nhwc: (N, H, W, C); w1_hwio: (NB, 3, 3, C, Cr); w2: (NB, Cr, C)."""
    N, H, W, C = x_nhwc.shape
    nb = w1_hwio.shape[0]
    Cr = w1_hwio.shape[4]
    assert W % 8 == 0 and C % 128 == 0, "kernel assumes W % 8 == 0 and C % 128 == 0"

    HW = H * W
    x2 = x_nhwc.reshape(N, HW, C).astype(jnp.float32)          # lane-dense
    # kh-major weight slab: w1r[b, kh, kw*C + cin, cout]
    w1r = w1_hwio.reshape(nb, 3, 3 * C, Cr).astype(_MXU_DTYPE)
    w2b = w2.astype(_MXU_DTYPE)

    kernel = _make_residual_stack_kernel(H, W, C, Cr)
    # NOTE: for larger N, use block_shape (N_per_step, HW, C) and fold batch
    # into the matmul M dimension; keep >= 2 "parallel" steps for megacore.
    out = pl.pallas_call(
        kernel,
        out_shape=jax.ShapeDtypeStruct((N, HW, C), jnp.float32),
        grid_spec=pltpu.PrefetchScalarGridSpec(
            num_scalar_prefetch=0,
            grid=(N, nb),                   # batch parallel, blocks sequential
            in_specs=[
                pl.BlockSpec((1, HW, C), lambda n, b: (n, 0, 0)),
                pl.BlockSpec((1, 3, 3 * C, Cr), lambda n, b: (b, 0, 0, 0)),
                pl.BlockSpec((1, Cr, C), lambda n, b: (b, 0, 0)),
            ],
            out_specs=pl.BlockSpec((1, HW, C), lambda n, b: (n, 0, 0)),
            scratch_shapes=[
                pltpu.VMEM((HW, 3 * C), _MXU_DTYPE),   # im2col slab (3 shifts)
                pltpu.VMEM((HW, Cr), jnp.float32),     # 3x3-conv output
            ],
        ),
        compiler_params=pltpu.CompilerParams(
            dimension_semantics=("parallel", "arbitrary")),
    )(x2, w1r, w2b)
    return out.reshape(N, H, W, C)


def residual_stack_reference(x_nhwc, w1_hwio, w2, operand_dtype=jnp.float32):
    """Pure-JAX reference (lax conv). operand_dtype=bf16 mimics MXU rounding."""
    nb = w1_hwio.shape[0]
    x = x_nhwc.astype(jnp.float32)
    for b in range(nb):
        a = jax.nn.relu(x)
        c1 = lax.conv_general_dilated(
            a.astype(operand_dtype), w1_hwio[b].astype(operand_dtype),
            window_strides=(1, 1), padding="SAME",
            dimension_numbers=("NHWC", "HWIO", "NHWC"),
            preferred_element_type=jnp.float32)
        h = jax.nn.relu(c1)
        c2 = jnp.einsum("nhwc,cd->nhwd", h.astype(operand_dtype),
                        w2[b].astype(operand_dtype),
                        preferred_element_type=jnp.float32)
        x = x + c2
    return jax.nn.relu(x)


if __name__ == "__main__":
    # Module defaults: in_channels = hidden_channels = 128,
    # residual_hidden_channels = 64, num_residual_blocks = 3; small spatial.
    N, C, H, W = 2, 128, 16, 16
    Cr = 64
    NUM_BLOCKS = 3

    key = jax.random.PRNGKey(0)
    kx, kw1, kw2 = jax.random.split(key, 3)

    # PyTorch-style NCHW input, transposed to the kernel's NHWC layout.
    x_nchw = jax.random.normal(kx, (N, C, H, W), dtype=jnp.float32)
    x_nhwc = jnp.transpose(x_nchw, (0, 2, 3, 1))

    # Bias-free conv weights (per module __init__):
    #   w1_hwio[b]: (3, 3, Cin, Cr)  3x3 conv, HWIO
    #   w2[b]:      (Cr, Cout)       1x1 conv as a channel matmul
    w1_hwio = 0.05 * jax.random.normal(
        kw1, (NUM_BLOCKS, 3, 3, C, Cr), dtype=jnp.float32)
    w2 = 0.05 * jax.random.normal(
        kw2, (NUM_BLOCKS, Cr, C), dtype=jnp.float32)

    out = residual_stack(x_nhwc, w1_hwio, w2)
    out = jax.block_until_ready(out)
    assert out.shape == (N, H, W, C)

    # Structural check: reference with the same bf16 MXU-operand rounding.
    ref_bf16 = residual_stack_reference(x_nhwc, w1_hwio, w2,
                                        operand_dtype=_MXU_DTYPE)
    assert jnp.allclose(out, ref_bf16, rtol=5e-3, atol=5e-3), \
        "mismatch vs bf16-operand reference"

    # Module-semantics check: pure float32 reference (tolerance only covers
    # bf16 operand quantisation on the MXU; accumulation is float32).
    ref_f32 = residual_stack_reference(x_nhwc, w1_hwio, w2)
    assert jnp.allclose(out, ref_f32, rtol=5e-2, atol=5e-2), \
        "mismatch vs float32 reference"

    print("KERNEL_OK")
</pallas_src>

<mosaic_0001>
module attributes {stable_mosaic.version = 11 : i64} {
  func.func @kernel(%arg0: i32, %arg1: i32, %arg2: memref<1x256x128xf32, #tpu.memory_space<vmem>>, %arg3: memref<1x3x384x64xbf16, #tpu.memory_space<vmem>>, %arg4: memref<1x64x128xbf16, #tpu.memory_space<vmem>>, %arg5: memref<1x256x128xf32, #tpu.memory_space<vmem>>, %arg6: memref<256x384xbf16, #tpu.memory_space<vmem>>, %arg7: memref<256x64xf32, #tpu.memory_space<vmem>>) attributes {dimension_semantics = [#tpu.dimension_semantics<parallel>, #tpu.dimension_semantics<arbitrary>], iteration_bounds = array<i64: 2, 3>, scalar_prefetch = 0 : i64, scratch_operands = 2 : i64, tpu.core_type = #tpu.core_type<tc>, window_params = [{transform_indices = @transform_0, window_bounds = array<i64: 1, 256, 128>}, {transform_indices = @transform_1, window_bounds = array<i64: 1, 3, 384, 64>}, {transform_indices = @transform_2, window_bounds = array<i64: 1, 64, 128>}, {transform_indices = @transform_3, window_bounds = array<i64: 1, 256, 128>}]} {
    %c0_i32 = arith.constant 0 : i32
    %0 = arith.cmpi eq, %arg1, %c0_i32 : i32
    %1 = arith.extui %0 : i1 to i32
    %c0_i32_0 = arith.constant 0 : i32
    %2 = arith.cmpi ne, %1, %c0_i32_0 : i32
    scf.if %2 {
      %c0_121 = arith.constant 0 : index
      %c0_122 = arith.constant 0 : index
      %c0_123 = arith.constant 0 : index
      %174 = vector.load %arg2[%c0_121, %c0_122, %c0_123] : memref<1x256x128xf32, #tpu.memory_space<vmem>>, vector<1x256x128xf32>
      %175 = vector.shape_cast %174 : vector<1x256x128xf32> to vector<256x128xf32>
      %c0_124 = arith.constant 0 : index
      %c0_125 = arith.constant 0 : index
      %c0_126 = arith.constant 0 : index
      %176 = vector.load %arg5[%c0_124, %c0_125, %c0_126] : memref<1x256x128xf32, #tpu.memory_space<vmem>>, vector<1x256x128xf32>
      %177 = vector.shape_cast %176 : vector<1x256x128xf32> to vector<256x128xf32>
      %178 = vector.shape_cast %175 : vector<256x128xf32> to vector<1x256x128xf32>
      tpu.vector_store %arg5[%c0_124, %c0_125, %c0_126], %178 {strides = array<i32>} : memref<1x256x128xf32, #tpu.memory_space<vmem>>, vector<1x256x128xf32>,
    } else {
    }
    %3 = tpu.iota {dimensions = array<i32: 0>} : vector<64x128xi32>
    %c16_i32 = arith.constant 16 : i32
    %c0_i32_1 = arith.constant 0 : i32
    %4 = arith.cmpi eq, %c16_i32, %c0_i32_1 : i32
    %c1_i32 = arith.constant 1 : i32
    %5 = arith.select %4, %c1_i32, %c16_i32 : i32
    %6 = vector.broadcast %5 : i32 to vector<64x128xi32>
    %7 = arith.remsi %3, %6 : vector<64x128xi32>
    %c0_i32_2 = arith.constant 0 : i32
    %8 = vector.broadcast %c0_i32_2 : i32 to vector<64x128xi32>
    %9 = arith.cmpi ne, %7, %8 : vector<64x128xi32>
    %c0_i32_3 = arith.constant 0 : i32
    %10 = vector.broadcast %c0_i32_3 : i32 to vector<64x128xi32>
    %11 = arith.cmpi slt, %7, %10 : vector<64x128xi32>
    %c0_i32_4 = arith.constant 0 : i32
    %12 = arith.cmpi slt, %5, %c0_i32_4 : i32
    %13 = vector.broadcast %12 : i1 to vector<64x128xi1>
    %14 = vector.broadcast %13 : vector<64x128xi1> to vector<64x128xi1>
    %15 = arith.xori %11, %14 : vector<64x128xi1>
    %16 = arith.andi %15, %9 : vector<64x128xi1>
    %17 = vector.broadcast %5 : i32 to vector<64x128xi32>
    %18 = arith.addi %7, %17 : vector<64x128xi32>
    %19 = arith.select %16, %18, %7 : vector<64x128xi1>, vector<64x128xi32>
    %c1_i32_5 = arith.constant 1 : i32
    %20 = vector.broadcast %c1_i32_5 : i32 to vector<64x128xi32>
    %21 = arith.cmpi sge, %19, %20 : vector<64x128xi32>
    %22 = arith.extui %21 : vector<64x128xi1> to vector<64x128xi32>
    %23 = arith.sitofp %22 : vector<64x128xi32> to vector<64x128xf32>
    %c14_i32 = arith.constant 14 : i32
    %24 = vector.broadcast %c14_i32 : i32 to vector<64x128xi32>
    %25 = arith.cmpi sle, %19, %24 : vector<64x128xi32>
    %26 = arith.extui %25 : vector<64x128xi1> to vector<64x128xi32>
    %27 = arith.sitofp %26 : vector<64x128xi32> to vector<64x128xf32>
    %c0 = arith.constant 0 : index
    %c0_6 = arith.constant 0 : index
    %c0_7 = arith.constant 0 : index
    %28 = vector.load %arg5[%c0, %c0_6, %c0_7] : memref<1x256x128xf32, #tpu.memory_space<vmem>>, vector<1x64x128xf32>
    %29 = vector.shape_cast %28 : vector<1x64x128xf32> to vector<64x128xf32>
    %cst = arith.constant 0.000000e+00 : f32
    %30 = vector.broadcast %cst : f32 to vector<64x128xf32>
    %31 = arith.maximumf %29, %30 : vector<64x128xf32>
    %32 = arith.truncf %31 : vector<64x128xf32> to vector<64x128xbf16>
    %c0_8 = arith.constant 0 : index
    %c128 = arith.constant 128 : index
    %33 = vector.load %arg6[%c0_8, %c128] : memref<256x384xbf16, #tpu.memory_space<vmem>>, vector<64x128xbf16>
    tpu.vector_store %arg6[%c0_8, %c128], %32 {strides = array<i32>} : memref<256x384xbf16, #tpu.memory_space<vmem>>, vector<64x128xbf16>,
    %34 = vector.extract_strided_slice %31 {offsets = [63, 0], sizes = [1, 128], strides = [1, 1]} : vector<64x128xf32> to vector<1x128xf32>
    %35 = vector.extract_strided_slice %31 {offsets = [0, 0], sizes = [63, 128], strides = [1, 1]} : vector<64x128xf32> to vector<63x128xf32>
    %36 = tpu.concatenate %34, %35 in 0 : vector<1x128xf32>, vector<63x128xf32> -> vector<64x128xf32>
    %37 = arith.mulf %36, %23 : vector<64x128xf32>
    %38 = arith.truncf %37 : vector<64x128xf32> to vector<64x128xbf16>
    %c0_9 = arith.constant 0 : index
    %c0_10 = arith.constant 0 : index
    %39 = vector.load %arg6[%c0_9, %c0_10] : memref<256x384xbf16, #tpu.memory_space<vmem>>, vector<64x128xbf16>
    tpu.vector_store %arg6[%c0_9, %c0_10], %38 {strides = array<i32>} : memref<256x384xbf16, #tpu.memory_space<vmem>>, vector<64x128xbf16>,
    %40 = vector.extract_strided_slice %31 {offsets = [1, 0], sizes = [63, 128], strides = [1, 1]} : vector<64x128xf32> to vector<63x128xf32>
    %41 = vector.extract_strided_slice %31 {offsets = [0, 0], sizes = [1, 128], strides = [1, 1]} : vector<64x128xf32> to vector<1x128xf32>
    %42 = tpu.concatenate %40, %41 in 0 : vector<63x128xf32>, vector<1x128xf32> -> vector<64x128xf32>
    %43 = arith.mulf %42, %27 : vector<64x128xf32>
    %44 = arith.truncf %43 : vector<64x128xf32> to vector<64x128xbf16>
    %c0_11 = arith.constant 0 : index
    %c256 = arith.constant 256 : index
    %45 = vector.load %arg6[%c0_11, %c256] : memref<256x384xbf16, #tpu.memory_space<vmem>>, vector<64x128xbf16>
    tpu.vector_store %arg6[%c0_11, %c256], %44 {strides = array<i32>} : memref<256x384xbf16, #tpu.memory_space<vmem>>, vector<64x128xbf16>,
    %c0_12 = arith.constant 0 : index
    %c64 = arith.constant 64 : index
    %c0_13 = arith.constant 0 : index
    %46 = vector.load %arg5[%c0_12, %c64, %c0_13] : memref<1x256x128xf32, #tpu.memory_space<vmem>>, vector<1x64x128xf32>
    %47 = vector.shape_cast %46 : vector<1x64x128xf32> to vector<64x128xf32>
    %cst_14 = arith.constant 0.000000e+00 : f32
    %48 = vector.broadcast %cst_14 : f32 to vector<64x128xf32>
    %49 = arith.maximumf %47, %48 : vector<64x128xf32>
    %50 = arith.truncf %49 : vector<64x128xf32> to vector<64x128xbf16>
    %c64_15 = arith.constant 64 : index
    %c128_16 = arith.constant 128 : index
    %51 = vector.load %arg6[%c64_15, %c128_16] : memref<256x384xbf16, #tpu.memory_space<vmem>>, vector<64x128xbf16>
    tpu.vector_store %arg6[%c64_15, %c128_16], %50 {strides = array<i32>} : memref<256x384xbf16, #tpu.memory_space<vmem>>, vector<64x128xbf16>,
    %52 = vector.extract_strided_slice %49 {offsets = [63, 0], sizes = [1, 128], strides = [1, 1]} : vector<64x128xf32> to vector<1x128xf32>
    %53 = vector.extract_strided_slice %49 {offsets = [0, 0], sizes = [63, 128], strides = [1, 1]} : vector<64x128xf32> to vector<63x128xf32>
    %54 = tpu.concatenate %52, %53 in 0 : vector<1x128xf32>, vector<63x128xf32> -> vector<64x128xf32>
    %55 = arith.mulf %54, %23 : vector<64x128xf32>
    %56 = arith.truncf %55 : vector<64x128xf32> to vector<64x128xbf16>
    %c64_17 = arith.constant 64 : index
    %c0_18 = arith.constant 0 : index
    %57 = vector.load %arg6[%c64_17, %c0_18] : memref<256x384xbf16, #tpu.memory_space<vmem>>, vector<64x128xbf16>
    tpu.vector_store %arg6[%c64_17, %c0_18], %56 {strides = array<i32>} : memref<256x384xbf16, #tpu.memory_space<vmem>>, vector<64x128xbf16>,
    %58 = vector.extract_strided_slice %49 {offsets = [1, 0], sizes = [63, 128], strides = [1, 1]} : vector<64x128xf32> to vector<63x128xf32>
    %59 = vector.extract_strided_slice %49 {offsets = [0, 0], sizes = [1, 128], strides = [1, 1]} : vector<64x128xf32> to vector<1x128xf32>
    %60 = tpu.concatenate %58, %59 in 0 : vector<63x128xf32>, vector<1x128xf32> -> vector<64x128xf32>
    %61 = arith.mulf %60, %27 : vector<64x128xf32>
    %62 = arith.truncf %61 : vector<64x128xf32> to vector<64x128xbf16>
    %c64_19 = arith.constant 64 : index
    %c256_20 = arith.constant 256 : index
    %63 = vector.load %arg6[%c64_19, %c256_20] : memref<256x384xbf16, #tpu.memory_space<vmem>>, vector<64x128xbf16>
    tpu.vector_store %arg6[%c64_19, %c256_20], %62 {strides = array<i32>} : memref<256x384xbf16, #tpu.memory_space<vmem>>, vector<64x128xbf16>,
    %c0_21 = arith.constant 0 : index
    %c128_22 = arith.constant 128 : index
    %c0_23 = arith.constant 0 : index
    %64 = vector.load %arg5[%c0_21, %c128_22, %c0_23] : memref<1x256x128xf32, #tpu.memory_space<vmem>>, vector<1x64x128xf32>
    %65 = vector.shape_cast %64 : vector<1x64x128xf32> to vector<64x128xf32>
    %cst_24 = arith.constant 0.000000e+00 : f32
    %66 = vector.broadcast %cst_24 : f32 to vector<64x128xf32>
    %67 = arith.maximumf %65, %66 : vector<64x128xf32>
    %68 = arith.truncf %67 : vector<64x128xf32> to vector<64x128xbf16>
    %c128_25 = arith.constant 128 : index
    %c128_26 = arith.constant 128 : index
    %69 = vector.load %arg6[%c128_25, %c128_26] : memref<256x384xbf16, #tpu.memory_space<vmem>>, vector<64x128xbf16>
    tpu.vector_store %arg6[%c128_25, %c128_26], %68 {strides = array<i32>} : memref<256x384xbf16, #tpu.memory_space<vmem>>, vector<64x128xbf16>,
    %70 = vector.extract_strided_slice %67 {offsets = [63, 0], sizes = [1, 128], strides = [1, 1]} : vector<64x128xf32> to vector<1x128xf32>
    %71 = vector.extract_strided_slice %67 {offsets = [0, 0], sizes = [63, 128], strides = [1, 1]} : vector<64x128xf32> to vector<63x128xf32>
    %72 = tpu.concatenate %70, %71 in 0 : vector<1x128xf32>, vector<63x128xf32> -> vector<64x128xf32>
    %73 = arith.mulf %72, %23 : vector<64x128xf32>
    %74 = arith.truncf %73 : vector<64x128xf32> to vector<64x128xbf16>
    %c128_27 = arith.constant 128 : index
    %c0_28 = arith.constant 0 : index
    %75 = vector.load %arg6[%c128_27, %c0_28] : memref<256x384xbf16, #tpu.memory_space<vmem>>, vector<64x128xbf16>
    tpu.vector_store %arg6[%c128_27, %c0_28], %74 {strides = array<i32>} : memref<256x384xbf16, #tpu.memory_space<vmem>>, vector<64x128xbf16>,
    %76 = vector.extract_strided_slice %67 {offsets = [1, 0], sizes = [63, 128], strides = [1, 1]} : vector<64x128xf32> to vector<63x128xf32>
    %77 = vector.extract_strided_slice %67 {offsets = [0, 0], sizes = [1, 128], strides = [1, 1]} : vector<64x128xf32> to vector<1x128xf32>
    %78 = tpu.concatenate %76, %77 in 0 : vector<63x128xf32>, vector<1x128xf32> -> vector<64x128xf32>
    %79 = arith.mulf %78, %27 : vector<64x128xf32>
    %80 = arith.truncf %79 : vector<64x128xf32> to vector<64x128xbf16>
    %c128_29 = arith.constant 128 : index
    %c256_30 = arith.constant 256 : index
    %81 = vector.load %arg6[%c128_29, %c256_30] : memref<256x384xbf16, #tpu.memory_space<vmem>>, vector<64x128xbf16>
    tpu.vector_store %arg6[%c128_29, %c256_30], %80 {strides = array<i32>} : memref<256x384xbf16, #tpu.memory_space<vmem>>, vector<64x128xbf16>,
    %c0_31 = arith.constant 0 : index
    %c192 = arith.constant 192 : index
    %c0_32 = arith.constant 0 : index
    %82 = vector.load %arg5[%c0_31, %c192, %c0_32] : memref<1x256x128xf32, #tpu.memory_space<vmem>>, vector<1x64x128xf32>
    %83 = vector.shape_cast %82 : vector<1x64x128xf32> to vector<64x128xf32>
    %cst_33 = arith.constant 0.000000e+00 : f32
    %84 = vector.broadcast %cst_33 : f32 to vector<64x128xf32>
    %85 = arith.maximumf %83, %84 : vector<64x128xf32>
    %86 = arith.truncf %85 : vector<64x128xf32> to vector<64x128xbf16>
    %c192_34 = arith.constant 192 : index
    %c128_35 = arith.constant 128 : index
    %87 = vector.load %arg6[%c192_34, %c128_35] : memref<256x384xbf16, #tpu.memory_space<vmem>>, vector<64x128xbf16>
    tpu.vector_store %arg6[%c192_34, %c128_35], %86 {strides = array<i32>} : memref<256x384xbf16, #tpu.memory_space<vmem>>, vector<64x128xbf16>,
    %88 = vector.extract_strided_slice %85 {offsets = [63, 0], sizes = [1, 128], strides = [1, 1]} : vector<64x128xf32> to vector<1x128xf32>
    %89 = vector.extract_strided_slice %85 {offsets = [0, 0], sizes = [63, 128], strides = [1, 1]} : vector<64x128xf32> to vector<63x128xf32>
    %90 = tpu.concatenate %88, %89 in 0 : vector<1x128xf32>, vector<63x128xf32> -> vector<64x128xf32>
    %91 = arith.mulf %90, %23 : vector<64x128xf32>
    %92 = arith.truncf %91 : vector<64x128xf32> to vector<64x128xbf16>
    %c192_36 = arith.constant 192 : index
    %c0_37 = arith.constant 0 : index
    %93 = vector.load %arg6[%c192_36, %c0_37] : memref<256x384xbf16, #tpu.memory_space<vmem>>, vector<64x128xbf16>
    tpu.vector_store %arg6[%c192_36, %c0_37], %92 {strides = array<i32>} : memref<256x384xbf16, #tpu.memory_space<vmem>>, vector<64x128xbf16>,
    %94 = vector.extract_strided_slice %85 {offsets = [1, 0], sizes = [63, 128], strides = [1, 1]} : vector<64x128xf32> to vector<63x128xf32>
    %95 = vector.extract_strided_slice %85 {offsets = [0, 0], sizes = [1, 128], strides = [1, 1]} : vector<64x128xf32> to vector<1x128xf32>
    %96 = tpu.concatenate %94, %95 in 0 : vector<63x128xf32>, vector<1x128xf32> -> vector<64x128xf32>
    %97 = arith.mulf %96, %27 : vector<64x128xf32>
    %98 = arith.truncf %97 : vector<64x128xf32> to vector<64x128xbf16>
    %c192_38 = arith.constant 192 : index
    %c256_39 = arith.constant 256 : index
    %99 = vector.load %arg6[%c192_38, %c256_39] : memref<256x384xbf16, #tpu.memory_space<vmem>>, vector<64x128xbf16>
    tpu.vector_store %arg6[%c192_38, %c256_39], %98 {strides = array<i32>} : memref<256x384xbf16, #tpu.memory_space<vmem>>, vector<64x128xbf16>,
    %c0_40 = arith.constant 0 : index
    %c0_41 = arith.constant 0 : index
    %100 = vector.load %arg6[%c0_40, %c0_41] : memref<256x384xbf16, #tpu.memory_space<vmem>>, vector<256x384xbf16>
    %c0_42 = arith.constant 0 : index
    %c1 = arith.constant 1 : index
    %c0_43 = arith.constant 0 : index
    %c0_44 = arith.constant 0 : index
    %101 = vector.load %arg3[%c0_42, %c1, %c0_43, %c0_44] : memref<1x3x384x64xbf16, #tpu.memory_space<vmem>>, vector<1x1x384x64xbf16>
    %102 = vector.shape_cast %101 : vector<1x1x384x64xbf16> to vector<384x64xbf16>
    %cst_45 = arith.constant dense<0.000000e+00> : vector<256x64xf32>
    %103 = tpu.matmul %100, %102, %cst_45 {dimension_numbers = #tpu.dot_dimension_numbers<[1], [0], [0], [1], [0, 0, 1, 1], [], []>} : vector<256x384xbf16>, vector<384x64xbf16>, vector<256x64xf32> -> vector<256x64xf32>
    %c0_46 = arith.constant 0 : index
    %c0_47 = arith.constant 0 : index
    %104 = vector.load %arg7[%c0_46, %c0_47] : memref<256x64xf32, #tpu.memory_space<vmem>>, vector<256x64xf32>
    tpu.vector_store %arg7[%c0_46, %c0_47], %103 {strides = array<i32>} : memref<256x64xf32, #tpu.memory_space<vmem>>, vector<256x64xf32>,
    %c16 = arith.constant 16 : index
    %c0_48 = arith.constant 0 : index
    %105 = vector.load %arg7[%c16, %c0_48] : memref<256x64xf32, #tpu.memory_space<vmem>>, vector<240x64xf32>
    %c0_49 = arith.constant 0 : index
    %c0_50 = arith.constant 0 : index
    %106 = vector.load %arg6[%c0_49, %c0_50] : memref<256x384xbf16, #tpu.memory_space<vmem>>, vector<240x384xbf16>
    %c0_51 = arith.constant 0 : index
    %c0_52 = arith.constant 0 : index
    %c0_53 = arith.constant 0 : index
    %c0_54 = arith.constant 0 : index
    %107 = vector.load %arg3[%c0_51, %c0_52, %c0_53, %c0_54] : memref<1x3x384x64xbf16, #tpu.memory_space<vmem>>, vector<1x1x384x64xbf16>
    %108 = vector.shape_cast %107 : vector<1x1x384x64xbf16> to vector<384x64xbf16>
    %cst_55 = arith.constant dense<0.000000e+00> : vector<240x64xf32>
    %109 = tpu.matmul %106, %108, %cst_55 {dimension_numbers = #tpu.dot_dimension_numbers<[1], [0], [0], [1], [0, 0, 1, 1], [], []>} : vector<240x384xbf16>, vector<384x64xbf16>, vector<240x64xf32> -> vector<240x64xf32>
    %110 = arith.addf %105, %109 : vector<240x64xf32>
    %c16_56 = arith.constant 16 : index
    %c0_57 = arith.constant 0 : index
    %111 = vector.load %arg7[%c16_56, %c0_57] : memref<256x64xf32, #tpu.memory_space<vmem>>, vector<240x64xf32>
    tpu.vector_store %arg7[%c16_56, %c0_57], %110 {strides = array<i32>} : memref<256x64xf32, #tpu.memory_space<vmem>>, vector<240x64xf32>,
    %c0_58 = arith.constant 0 : index
    %c0_59 = arith.constant 0 : index
    %112 = vector.load %arg7[%c0_58, %c0_59] : memref<256x64xf32, #tpu.memory_space<vmem>>, vector<240x64xf32>
    %c16_60 = arith.constant 16 : index
    %c0_61 = arith.constant 0 : index
    %113 = vector.load %arg6[%c16_60, %c0_61] : memref<256x384xbf16, #tpu.memory_space<vmem>>, vector<240x384xbf16>
    %c0_62 = arith.constant 0 : index
    %c2 = arith.constant 2 : index
    %c0_63 = arith.constant 0 : index
    %c0_64 = arith.constant 0 : index
    %114 = vector.load %arg3[%c0_62, %c2, %c0_63, %c0_64] : memref<1x3x384x64xbf16, #tpu.memory_space<vmem>>, vector<1x1x384x64xbf16>
    %115 = vector.shape_cast %114 : vector<1x1x384x64xbf16> to vector<384x64xbf16>
    %cst_65 = arith.constant dense<0.000000e+00> : vector<240x64xf32>
    %116 = tpu.matmul %113, %115, %cst_65 {dimension_numbers = #tpu.dot_dimension_numbers<[1], [0], [0], [1], [0, 0, 1, 1], [], []>} : vector<240x384xbf16>, vector<384x64xbf16>, vector<240x64xf32> -> vector<240x64xf32>
    %117 = arith.addf %112, %116 : vector<240x64xf32>
    %c0_66 = arith.constant 0 : index
    %c0_67 = arith.constant 0 : index
    %118 = vector.load %arg7[%c0_66, %c0_67] : memref<256x64xf32, #tpu.memory_space<vmem>>, vector<240x64xf32>
    tpu.vector_store %arg7[%c0_66, %c0_67], %117 {strides = array<i32>} : memref<256x64xf32, #tpu.memory_space<vmem>>, vector<240x64xf32>,
    %c0_68 = arith.constant 0 : index
    %c0_69 = arith.constant 0 : index
    %119 = vector.load %arg7[%c0_68, %c0_69] : memref<256x64xf32, #tpu.memory_space<vmem>>, vector<64x64xf32>
    %cst_70 = arith.constant 0.000000e+00 : f32
    %120 = vector.broadcast %cst_70 : f32 to vector<64x64xf32>
    %121 = arith.maximumf %119, %120 : vector<64x64xf32>
    %122 = arith.truncf %121 : vector<64x64xf32> to vector<64x64xbf16>
    %c0_71 = arith.constant 0 : index
    %c0_72 = arith.constant 0 : index
    %c0_73 = arith.constant 0 : index
    %123 = vector.load %arg4[%c0_71, %c0_72, %c0_73] : memref<1x64x128xbf16, #tpu.memory_space<vmem>>, vector<1x64x128xbf16>
    %124 = vector.shape_cast %123 : vector<1x64x128xbf16> to vector<64x128xbf16>
    %cst_74 = arith.constant dense<0.000000e+00> : vector<64x128xf32>
    %125 = tpu.matmul %122, %124, %cst_74 {dimension_numbers = #tpu.dot_dimension_numbers<[1], [0], [0], [1], [0, 0, 1, 1], [], []>} : vector<64x64xbf16>, vector<64x128xbf16>, vector<64x128xf32> -> vector<64x128xf32>
    %c0_75 = arith.constant 0 : index
    %c0_76 = arith.constant 0 : index
    %c0_77 = arith.constant 0 : index
    %126 = vector.load %arg5[%c0_75, %c0_76, %c0_77] : memref<1x256x128xf32, #tpu.memory_space<vmem>>, vector<1x64x128xf32>
    %127 = vector.shape_cast %126 : vector<1x64x128xf32> to vector<64x128xf32>
    %128 = arith.addf %127, %125 : vector<64x128xf32>
    %c0_78 = arith.constant 0 : index
    %c0_79 = arith.constant 0 : index
    %c0_80 = arith.constant 0 : index
    %129 = vector.load %arg5[%c0_78, %c0_79, %c0_80] : memref<1x256x128xf32, #tpu.memory_space<vmem>>, vector<1x64x128xf32>
    %130 = vector.shape_cast %129 : vector<1x64x128xf32> to vector<64x128xf32>
    %131 = vector.shape_cast %128 : vector<64x128xf32> to vector<1x64x128xf32>
    tpu.vector_store %arg5[%c0_78, %c0_79, %c0_80], %131 {strides = array<i32>} : memref<1x256x128xf32, #tpu.memory_space<vmem>>, vector<1x64x128xf32>,
    %c64_81 = arith.constant 64 : index
    %c0_82 = arith.constant 0 : index
    %132 = vector.load %arg7[%c64_81, %c0_82] : memref<256x64xf32, #tpu.memory_space<vmem>>, vector<64x64xf32>
    %cst_83 = arith.constant 0.000000e+00 : f32
    %133 = vector.broadcast %cst_83 : f32 to vector<64x64xf32>
    %134 = arith.maximumf %132, %133 : vector<64x64xf32>
    %135 = arith.truncf %134 : vector<64x64xf32> to vector<64x64xbf16>
    %c0_84 = arith.constant 0 : index
    %c0_85 = arith.constant 0 : index
    %c0_86 = arith.constant 0 : index
    %136 = vector.load %arg4[%c0_84, %c0_85, %c0_86] : memref<1x64x128xbf16, #tpu.memory_space<vmem>>, vector<1x64x128xbf16>
    %137 = vector.shape_cast %136 : vector<1x64x128xbf16> to vector<64x128xbf16>
    %cst_87 = arith.constant dense<0.000000e+00> : vector<64x128xf32>
    %138 = tpu.matmul %135, %137, %cst_87 {dimension_numbers = #tpu.dot_dimension_numbers<[1], [0], [0], [1], [0, 0, 1, 1], [], []>} : vector<64x64xbf16>, vector<64x128xbf16>, vector<64x128xf32> -> vector<64x128xf32>
    %c0_88 = arith.constant 0 : index
    %c64_89 = arith.constant 64 : index
    %c0_90 = arith.constant 0 : index
    %139 = vector.load %arg5[%c0_88, %c64_89, %c0_90] : memref<1x256x128xf32, #tpu.memory_space<vmem>>, vector<1x64x128xf32>
    %140 = vector.shape_cast %139 : vector<1x64x128xf32> to vector<64x128xf32>
    %141 = arith.addf %140, %138 : vector<64x128xf32>
    %c0_91 = arith.constant 0 : index
    %c64_92 = arith.constant 64 : index
    %c0_93 = arith.constant 0 : index
    %142 = vector.load %arg5[%c0_91, %c64_92, %c0_93] : memref<1x256x128xf32, #tpu.memory_space<vmem>>, vector<1x64x128xf32>
    %143 = vector.shape_cast %142 : vector<1x64x128xf32> to vector<64x128xf32>
    %144 = vector.shape_cast %141 : vector<64x128xf32> to vector<1x64x128xf32>
    tpu.vector_store %arg5[%c0_91, %c64_92, %c0_93], %144 {strides = array<i32>} : memref<1x256x128xf32, #tpu.memory_space<vmem>>, vector<1x64x128xf32>,
    %c128_94 = arith.constant 128 : index
    %c0_95 = arith.constant 0 : index
    %145 = vector.load %arg7[%c128_94, %c0_95] : memref<256x64xf32, #tpu.memory_space<vmem>>, vector<64x64xf32>
    %cst_96 = arith.constant 0.000000e+00 : f32
    %146 = vector.broadcast %cst_96 : f32 to vector<64x64xf32>
    %147 = arith.maximumf %145, %146 : vector<64x64xf32>
    %148 = arith.truncf %147 : vector<64x64xf32> to vector<64x64xbf16>
    %c0_97 = arith.constant 0 : index
    %c0_98 = arith.constant 0 : index
    %c0_99 = arith.constant 0 : index
    %149 = vector.load %arg4[%c0_97, %c0_98, %c0_99] : memref<1x64x128xbf16, #tpu.memory_space<vmem>>, vector<1x64x128xbf16>
    %150 = vector.shape_cast %149 : vector<1x64x128xbf16> to vector<64x128xbf16>
    %cst_100 = arith.constant dense<0.000000e+00> : vector<64x128xf32>
    %151 = tpu.matmul %148, %150, %cst_100 {dimension_numbers = #tpu.dot_dimension_numbers<[1], [0], [0], [1], [0, 0, 1, 1], [], []>} : vector<64x64xbf16>, vector<64x128xbf16>, vector<64x128xf32> -> vector<64x128xf32>
    %c0_101 = arith.constant 0 : index
    %c128_102 = arith.constant 128 : index
    %c0_103 = arith.constant 0 : index
    %152 = vector.load %arg5[%c0_101, %c128_102, %c0_103] : memref<1x256x128xf32, #tpu.memory_space<vmem>>, vector<1x64x128xf32>
    %153 = vector.shape_cast %152 : vector<1x64x128xf32> to vector<64x128xf32>
    %154 = arith.addf %153, %151 : vector<64x128xf32>
    %c0_104 = arith.constant 0 : index
    %c128_105 = arith.constant 128 : index
    %c0_106 = arith.constant 0 : index
    %155 = vector.load %arg5[%c0_104, %c128_105, %c0_106] : memref<1x256x128xf32, #tpu.memory_space<vmem>>, vector<1x64x128xf32>
    %156 = vector.shape_cast %155 : vector<1x64x128xf32> to vector<64x128xf32>
    %157 = vector.shape_cast %154 : vector<64x128xf32> to vector<1x64x128xf32>
    tpu.vector_store %arg5[%c0_104, %c128_105, %c0_106], %157 {strides = array<i32>} : memref<1x256x128xf32, #tpu.memory_space<vmem>>, vector<1x64x128xf32>,
    %c192_107 = arith.constant 192 : index
    %c0_108 = arith.constant 0 : index
    %158 = vector.load %arg7[%c192_107, %c0_108] : memref<256x64xf32, #tpu.memory_space<vmem>>, vector<64x64xf32>
    %cst_109 = arith.constant 0.000000e+00 : f32
    %159 = vector.broadcast %cst_109 : f32 to vector<64x64xf32>
    %160 = arith.maximumf %158, %159 : vector<64x64xf32>
    %161 = arith.truncf %160 : vector<64x64xf32> to vector<64x64xbf16>
    %c0_110 = arith.constant 0 : index
    %c0_111 = arith.constant 0 : index
    %c0_112 = arith.constant 0 : index
    %162 = vector.load %arg4[%c0_110, %c0_111, %c0_112] : memref<1x64x128xbf16, #tpu.memory_space<vmem>>, vector<1x64x128xbf16>
    %163 = vector.shape_cast %162 : vector<1x64x128xbf16> to vector<64x128xbf16>
    %cst_113 = arith.constant dense<0.000000e+00> : vector<64x128xf32>
    %164 = tpu.matmul %161, %163, %cst_113 {dimension_numbers = #tpu.dot_dimension_numbers<[1], [0], [0], [1], [0, 0, 1, 1], [], []>} : vector<64x64xbf16>, vector<64x128xbf16>, vector<64x128xf32> -> vector<64x128xf32>
    %c0_114 = arith.constant 0 : index
    %c192_115 = arith.constant 192 : index
    %c0_116 = arith.constant 0 : index
    %165 = vector.load %arg5[%c0_114, %c192_115, %c0_116] : memref<1x256x128xf32, #tpu.memory_space<vmem>>, vector<1x64x128xf32>
    %166 = vector.shape_cast %165 : vector<1x64x128xf32> to vector<64x128xf32>
    %167 = arith.addf %166, %164 : vector<64x128xf32>
    %c0_117 = arith.constant 0 : index
    %c192_118 = arith.constant 192 : index
    %c0_119 = arith.constant 0 : index
    %168 = vector.load %arg5[%c0_117, %c192_118, %c0_119] : memref<1x256x128xf32, #tpu.memory_space<vmem>>, vector<1x64x128xf32>
    %169 = vector.shape_cast %168 : vector<1x64x128xf32> to vector<64x128xf32>
    %170 = vector.shape_cast %167 : vector<64x128xf32> to vector<1x64x128xf32>
    tpu.vector_store %arg5[%c0_117, %c192_118, %c0_119], %170 {strides = array<i32>} : memref<1x256x128xf32, #tpu.memory_space<vmem>>, vector<1x64x128xf32>,
    %c2_i32 = arith.constant 2 : i32
    %171 = arith.cmpi eq, %arg1, %c2_i32 : i32
    %172 = arith.extui %171 : i1 to i32
    %c0_i32_120 = arith.constant 0 : i32
    %173 = arith.cmpi ne, %172, %c0_i32_120 : i32
    scf.if %173 {
      %c0_121 = arith.constant 0 : index
      %c0_122 = arith.constant 0 : index
      %c0_123 = arith.constant 0 : index
      %174 = vector.load %arg5[%c0_121, %c0_122, %c0_123] : memref<1x256x128xf32, #tpu.memory_space<vmem>>, vector<1x256x128xf32>
      %175 = vector.shape_cast %174 : vector<1x256x128xf32> to vector<256x128xf32>
      %cst_124 = arith.constant 0.000000e+00 : f32
      %176 = vector.broadcast %cst_124 : f32 to vector<256x128xf32>
      %177 = arith.maximumf %175, %176 : vector<256x128xf32>
      %c0_125 = arith.constant 0 : index
      %c0_126 = arith.constant 0 : index
      %c0_127 = arith.constant 0 : index
      %178 = vector.load %arg5[%c0_125, %c0_126, %c0_127] : memref<1x256x128xf32, #tpu.memory_space<vmem>>, vector<1x256x128xf32>
      %179 = vector.shape_cast %178 : vector<1x256x128xf32> to vector<256x128xf32>
      %180 = vector.shape_cast %177 : vector<256x128xf32> to vector<1x256x128xf32>
      tpu.vector_store %arg5[%c0_125, %c0_126, %c0_127], %180 {strides = array<i32>} : memref<1x256x128xf32, #tpu.memory_space<vmem>>, vector<1x256x128xf32>,
    } else {
    }
    return
  }
  func.func @transform_0(%arg0: i32, %arg1: i32) -> (i32, i32, i32) {
    %c0_i32 = arith.constant 0 : i32
    %c0_i32_0 = arith.constant 0 : i32
    %c0_i32_1 = arith.constant 0 : i32
    return %arg0, %c0_i32, %c0_i32_0 : i32, i32, i32
  }
  func.func @transform_1(%arg0: i32, %arg1: i32) -> (i32, i32, i32, i32) {
    %c0_i32 = arith.constant 0 : i32
    %c0_i32_0 = arith.constant 0 : i32
    %c0_i32_1 = arith.constant 0 : i32
    %c0_i32_2 = arith.constant 0 : i32
    return %arg1, %c0_i32, %c0_i32_0, %c0_i32_1 : i32, i32, i32, i32
  }
  func.func @transform_2(%arg0: i32, %arg1: i32) -> (i32, i32, i32) {
    %c0_i32 = arith.constant 0 : i32
    %c0_i32_0 = arith.constant 0 : i32
    %c0_i32_1 = arith.constant 0 : i32
    return %arg1, %c0_i32, %c0_i32_0 : i32, i32, i32
  }
  func.func @transform_3(%arg0: i32, %arg1: i32) -> (i32, i32, i32) {
    %c0_i32 = arith.constant 0 : i32
    %c0_i32_0 = arith.constant 0 : i32
    %c0_i32_1 = arith.constant 0 : i32
    return %arg0, %c0_i32, %c0_i32_0 : i32, i32, i32
  }
}

</mosaic_0001>

<llo_original>
// kernel: tpu_custom_call.1
$region0: #{tpu_custom_call.1}
  #allocation0 [shape = 'u32[]', space=smem, size = 0x4, offset = 0x4, fixed_abs, tag = 'smem constant byte address 0x4 - core index']
  #allocation1 [shape = 'u32[72,128]{1,0:T(1,128)}', space=vmem, size = 0x9000, scoped, tag = 'internal scratch']
  #allocation2 [shape = 'bf16[256,384]{1,0:T(8,128)(2,1)}', space=vmem, size = 0x30000, scoped, tag = 'scratch operand']
  #allocation3 [shape = 'f32[256,64]{1,0:T(8,128)}', space=vmem, size = 0x20000, scoped, tag = 'scratch operand']
  %s0 = inlined_call_operand.vmem [shape: f32[2,256,128], index: 0, kind: input, shape index: {}]
  %s1 = inlined_call_operand.vmem [shape: bf16[3,3,384,64], index: 1, kind: input, shape index: {}]
  %s2 = inlined_call_operand.vmem [shape: bf16[3,64,128], index: 2, kind: input, shape index: {}]
  %s3 = inlined_call_operand.hbm [shape: f32[2,256,128], index: 3, kind: output, shape index: {}]
  %s4 = sld [smem:[#allocation0]]
  $region53: #{tpu_custom_call.1} parent=0
    _
  %s6 = ssub.s32 1, %s4
  %s7 = scalar_select 0, %s6, %s4
  $region1: #{tpu_custom_call.1} parent=0
    #allocation4 [shape = 'u8[262144]{0}', space=vmem, size = 0x40000, scoped, tag = 'output window, operand 0']
    #allocation5 [shape = 's32[2]{0}', space=sflag, size = 0x8, scoped, tag = 'scoped memory for tpu_custom_call.1']
    %8 = vsyncpa [#allocation5], 0
    %s9 = scalar_lea.sflag [#allocation5], 1
    %10 = vsyncpa %s9, 0
    loop: start=0, step=1, limit=8
    $region2: #{tpu_custom_call.1} parent=1 // loop_pre_header
      _
    $region3: #{tpu_custom_call.1} parent=1 // loop_header
      %s12 = sphi 0, %s16
      %p13 = scmp.ge.s32.totalorder %s12, 8
      %s19 = sphi 0, %s31
      %s20 = sphi 0, %s27
      %s21 = sphi 0, %s19
      %s22 = sphi 0, %s20
      %s23 = sphi 0, %s21
      %s24 = sphi 0, %s22
      %s34 = sphi 0, %s36
      %s37 = sphi 0, %s34
      %s38 = sphi 0, %s37
      %s54 = sphi 0, %s38
      %s60 = sphi 0, %s62
      %s63 = sphi 0, %s60
      %s64 = sphi 0, %s63
      %s80 = sphi 0, %s64
      %s86 = sphi 0, %s88
      %s89 = sphi 0, %s86
      %s90 = sphi 0, %s89
      %s106 = sphi 0, %s90
      %s112 = sphi 0, %s114
      %s115 = sphi 0, %s112
      %s116 = sphi 0, %s115
      %s132 = sphi 0, %s116
    $region4: #{tpu_custom_call.1} parent=1 // loop_header_branch
      %15 = sbr.rel (%p13) target = $region8
    $region5: #{tpu_custom_call.1} parent=1 // loop_body
      %s17 = ssub.s32 %s12, 1
      %s18 = ssub.s32 %s12, 2
      %s25 = sadd.s32 1, %s20
      %p26 = scmp.ge.s32.totalorder %s25, 3
      %s27 = scalar_select %p26, 0, %s25
      %s28 = sadd.s32 1, %s19
      %s29 = scalar_select %p26, %s28, %s19
      %p30 = scmp.ge.s32.totalorder %s29, 2
      %s31 = scalar_select %p30, 0, %s29
      %s32 = ssub.s32 %s19, %s31
      %p33 = scmp.eq.s32.totalorder %s32, 0
      %s35 = sadd.s32 %s34, 1
      %s36 = scalar_select %p33, %s34, %s35
      %p39 = pneg %p33
      %p40 = scmp.eq.s32.totalorder %s12, 5
      %p41 = por %p39, %p40
      %p42 = scmp.ne.s32.totalorder %s34, %s37
      %p43 = scmp.eq.s32.totalorder %s12, 0
      %p44 = por %p42, %p43
      %p45 = scmp.ne.s32.totalorder %s34, %s37
      %p46 = scmp.eq.s32.totalorder %s17, 5
      %p47 = por %p45, %p46
      %p48 = scmp.ne.s32.totalorder %s37, %s38
      %p49 = scmp.eq.s32.totalorder %s17, 0
      %p50 = por %p48, %p49
      %p51 = scmp.ne.s32.totalorder %s37, %s38
      %p52 = scmp.eq.s32.totalorder %s18, 5
      %p53 = por %p51, %p52
      %p55 = scmp.ne.s32.totalorder %s38, %s54
      %p56 = scmp.eq.s32.totalorder %s18, 0
      %p57 = por %p55, %p56
      %s58 = ssub.s32 %s20, %s27
      %p59 = scmp.eq.s32.totalorder %s58, 0
      %s61 = sadd.s32 %s60, 1
      %s62 = scalar_select %p59, %s60, %s61
      %p65 = pneg %p59
      %p66 = scmp.eq.s32.totalorder %s12, 5
      %p67 = por %p65, %p66
      %p68 = scmp.ne.s32.totalorder %s60, %s63
      %p69 = scmp.eq.s32.totalorder %s12, 0
      %p70 = por %p68, %p69
      %p71 = scmp.ne.s32.totalorder %s60, %s63
      %p72 = scmp.eq.s32.totalorder %s17, 5
      %p73 = por %p71, %p72
      %p74 = scmp.ne.s32.totalorder %s63, %s64
      %p75 = scmp.eq.s32.totalorder %s17, 0
      %p76 = por %p74, %p75
      %p77 = scmp.ne.s32.totalorder %s63, %s64
      %p78 = scmp.eq.s32.totalorder %s18, 5
      %p79 = por %p77, %p78
      %p81 = scmp.ne.s32.totalorder %s64, %s80
      %p82 = scmp.eq.s32.totalorder %s18, 0
      %p83 = por %p81, %p82
      %s84 = ssub.s32 %s20, %s27
      %p85 = scmp.eq.s32.totalorder %s84, 0
      %s87 = sadd.s32 %s86, 1
      %s88 = scalar_select %p85, %s86, %s87
      %p91 = pneg %p85
      %p92 = scmp.eq.s32.totalorder %s12, 5
      %p93 = por %p91, %p92
      %p94 = scmp.ne.s32.totalorder %s86, %s89
      %p95 = scmp.eq.s32.totalorder %s12, 0
      %p96 = por %p94, %p95
      %p97 = scmp.ne.s32.totalorder %s86, %s89
      %p98 = scmp.eq.s32.totalorder %s17, 5
      %p99 = por %p97, %p98
      %p100 = scmp.ne.s32.totalorder %s89, %s90
      %p101 = scmp.eq.s32.totalorder %s17, 0
      %p102 = por %p100, %p101
      %p103 = scmp.ne.s32.totalorder %s89, %s90
      %p104 = scmp.eq.s32.totalorder %s18, 5
      %p105 = por %p103, %p104
      %p107 = scmp.ne.s32.totalorder %s90, %s106
      %p108 = scmp.eq.s32.totalorder %s18, 0
      %p109 = por %p107, %p108
      %s110 = ssub.s32 %s19, %s31
      %p111 = scmp.eq.s32.totalorder %s110, 0
      %s113 = sadd.s32 %s112, 1
      %s114 = scalar_select %p111, %s112, %s113
      %p117 = pneg %p111
      %p118 = scmp.eq.s32.totalorder %s12, 5
      %p119 = por %p117, %p118
      %p120 = scmp.ne.s32.totalorder %s112, %s115
      %p121 = scmp.eq.s32.totalorder %s12, 0
      %p122 = por %p120, %p121
      %p123 = scmp.ne.s32.totalorder %s112, %s115
      %p124 = scmp.eq.s32.totalorder %s17, 5
      %p125 = por %p123, %p124
      %p126 = scmp.ne.s32.totalorder %s115, %s116
      %p127 = scmp.eq.s32.totalorder %s17, 0
      %p128 = por %p126, %p127
      %p129 = scmp.ne.s32.totalorder %s115, %s116
      %p130 = scmp.eq.s32.totalorder %s18, 5
      %p131 = por %p129, %p130
      %p133 = scmp.ne.s32.totalorder %s116, %s132
      %p134 = scmp.eq.s32.totalorder %s18, 0
      %p135 = por %p133, %p134
      %p136 = scmp.le.s32.totalorder 1, %s12
      %p137 = scmp.lt.s32.totalorder %s12, 7
      %p138 = pnand %p136, %p137
      %p139 = pneg %p138
      // Predicated region
      $region9: #{tpu_custom_call.1} parent=5 // pred_check
        _
      $region10: #{tpu_custom_call.1} parent=5 // pred_check_branch
        %141 = sbr.rel (%p138) target = $region12
      $region11: #{tpu_custom_call.1} parent=5 // pred_region
        %s142 = ssub.s32 %s12, 1
      $region12: #{tpu_custom_call.1} parent=5 // pred_fallthru
        _
      %p143 = scmp.lt.s32.totalorder %s12, 6
      // Predicated region
      $region13: #{tpu_custom_call.1} parent=5 // pred_check
        %p144 = pneg %p143
      $region14: #{tpu_custom_call.1} parent=5 // pred_check_branch
        %146 = sbr.rel (%p144) target = $region16
      $region15: #{tpu_custom_call.1} parent=5 // pred_region
        // Predicated region
        $region17: #{tpu_custom_call.1} parent=15 // pred_check
          %p147 = pneg %p44
        $region18: #{tpu_custom_call.1} parent=15 // pred_check_branch
          %149 = sbr.rel (%p147) target = $region20
        $region19: #{tpu_custom_call.1} parent=15 // pred_region
          %p150 = scmp.lt.s32.totalorder %s19, 1
          %s151 = scalar_select %p150, %s19, 1
          %s152 = smul.addr %s151, 32
          %s153 = smul.addr %s152, 8
          %s154 = scalar_lea.vmem %s0, %s153
        $region20: #{tpu_custom_call.1} parent=15 // pred_fallthru
          _
        // Predicated region
        $region21: #{tpu_custom_call.1} parent=15 // pred_check
          %p155 = pneg %p70
        $region22: #{tpu_custom_call.1} parent=15 // pred_check_branch
          %157 = sbr.rel (%p155) target = $region24
        $region23: #{tpu_custom_call.1} parent=15 // pred_region
          %p158 = scmp.lt.s32.totalorder %s20, 2
          %s159 = scalar_select %p158, %s20, 2
          %s160 = smul.addr %s159, 144
          %s161 = smul.addr %s160, 4
          %s162 = scalar_lea.vmem %s1, %s161
        $region24: #{tpu_custom_call.1} parent=15 // pred_fallthru
          _
        // Predicated region
        $region25: #{tpu_custom_call.1} parent=15 // pred_check
          %p163 = pneg %p96
        $region26: #{tpu_custom_call.1} parent=15 // pred_check_branch
          %165 = sbr.rel (%p163) target = $region28
        $region27: #{tpu_custom_call.1} parent=15 // pred_region
          %p166 = scmp.lt.s32.totalorder %s20, 2
          %s167 = scalar_select %p166, %s20, 2
          %s168 = smul.addr %s167, 8
          %s169 = smul.addr %s168, 4
          %s170 = scalar_lea.vmem %s2, %s169
        $region28: #{tpu_custom_call.1} parent=15 // pred_fallthru
          _
      $region16: #{tpu_custom_call.1} parent=5 // pred_fallthru
        _
      %p171 = scmp.le.s32.totalorder 1, %s12
      %p172 = scmp.lt.s32.totalorder %s12, 7
      %p173 = pnand %p171, %p172
      %p174 = pneg %p173
      // Predicated region
      $region29: #{tpu_custom_call.1} parent=5 // pred_check
        _
      $region30: #{tpu_custom_call.1} parent=5 // pred_check_branch
        %176 = sbr.rel (%p173) target = $region32
      $region31: #{tpu_custom_call.1} parent=5 // pred_region
        %s177 = ssub.s32 %s12, 1
        %p178 = scmp.lt.s32.totalorder %s21, 1
        %s179 = scalar_select %p178, %s21, 1
        %s180 = smul.addr %s179, 32
        %s181 = smul.addr %s180, 8
        %s182 = scalar_lea.vmem %s0, %s181
        %p183 = pneg %p50
        %p184 = pneg %p47
        %p185 = scmp.lt.s32.totalorder %s22, 2
        %s186 = scalar_select %p185, %s22, 2
        %s187 = smul.addr %s186, 144
        %s188 = smul.addr %s187, 4
        %s189 = scalar_lea.vmem %s1, %s188
        %p190 = pneg %p76
        %p191 = pneg %p73
        %p192 = scmp.lt.s32.totalorder %s22, 2
        %s193 = scalar_select %p192, %s22, 2
        %s194 = smul.addr %s193, 8
        %s195 = smul.addr %s194, 4
        %s196 = scalar_lea.vmem %s2, %s195
        %p197 = pneg %p102
        %p198 = pneg %p99
        %p199 = pneg %p128
        %p200 = pneg %p125
        %s201 = sand.u32 %s115, 1
        %s202 = scalar_lea.sflag [#allocation5], %s201
        %s203 = sand.u32 %s115, 1
        %s204 = smul.addr %s203, 256
        %s205 = scalar_lea.vmem [#allocation4], %s204
        %p206 = scmp.lt.s32.totalorder %s21, 1
        %s207 = scalar_select %p206, %s21, 1
        %s208 = smul.addr %s207, 32
        %s209 = smul.addr %s208, 8
        %s210 = scalar_lea.vmem %s0, %s209
        %p211 = scmp.lt.s32.totalorder %s22, 2
        %s212 = scalar_select %p211, %s22, 2
        %s213 = smul.addr %s212, 144
        %s214 = smul.addr %s213, 4
        %s215 = scalar_lea.vmem %s1, %s214
        %p216 = scmp.lt.s32.totalorder %s22, 2
        %s217 = scalar_select %p216, %s22, 2
        %s218 = smul.addr %s217, 8
        %s219 = smul.addr %s218, 4
        %s220 = scalar_lea.vmem %s2, %s219
        %p222 = scmp.eq.s32.totalorder %s22, 0
        // Predicated region
        $region33: #{tpu_custom_call.1} parent=31 // pred_check
          %p223 = pneg %p222
        $region34: #{tpu_custom_call.1} parent=31 // pred_check_branch
          %225 = sbr.rel (%p223) target = $region36
        $region35: #{tpu_custom_call.1} parent=31 // pred_region
          %v226 = vld [vmem:[%s210] sm:$0xff]
          %v227 = vld [vmem:[%s210 + $0x8] sm:$0xff]
          %v228 = vld [vmem:[%s210 + $0x10] sm:$0xff]
          %v229 = vld [vmem:[%s210 + $0x18] sm:$0xff]
          %v230 = vld [vmem:[%s210 + $0x20] sm:$0xff]
          %v231 = vld [vmem:[%s210 + $0x28] sm:$0xff]
          %v232 = vld [vmem:[%s210 + $0x30] sm:$0xff]
          %v233 = vld [vmem:[%s210 + $0x38] sm:$0xff]
          %v234 = vld [vmem:[%s210 + $0x40] sm:$0xff]
          %v235 = vld [vmem:[%s210 + $0x48] sm:$0xff]
          %v236 = vld [vmem:[%s210 + $0x50] sm:$0xff]
          %v237 = vld [vmem:[%s210 + $0x58] sm:$0xff]
          %v238 = vld [vmem:[%s210 + $0x60] sm:$0xff]
          %v239 = vld [vmem:[%s210 + $0x68] sm:$0xff]
          %v240 = vld [vmem:[%s210 + $0x70] sm:$0xff]
          %v241 = vld [vmem:[%s210 + $0x78] sm:$0xff]
          %v242 = vld [vmem:[%s210 + $0x80] sm:$0xff]
          %v243 = vld [vmem:[%s210 + $0x88] sm:$0xff]
          %v244 = vld [vmem:[%s210 + $0x90] sm:$0xff]
          %v245 = vld [vmem:[%s210 + $0x98] sm:$0xff]
          %v246 = vld [vmem:[%s210 + $0xa0] sm:$0xff]
          %v247 = vld [vmem:[%s210 + $0xa8] sm:$0xff]
          %v248 = vld [vmem:[%s210 + $0xb0] sm:$0xff]
          %v249 = vld [vmem:[%s210 + $0xb8] sm:$0xff]
          %v250 = vld [vmem:[%s210 + $0xc0] sm:$0xff]
          %v251 = vld [vmem:[%s210 + $0xc8] sm:$0xff]
          %v252 = vld [vmem:[%s210 + $0xd0] sm:$0xff]
          %v253 = vld [vmem:[%s210 + $0xd8] sm:$0xff]
          %v254 = vld [vmem:[%s210 + $0xe0] sm:$0xff]
          %v255 = vld [vmem:[%s210 + $0xe8] sm:$0xff]
          %v256 = vld [vmem:[%s210 + $0xf0] sm:$0xff]
          %v257 = vld [vmem:[%s210 + $0xf8] sm:$0xff]
          %258 = vst [vmem:[%s205] sm:$0xff] %v226
          %259 = vst [vmem:[%s205 + $0x8] sm:$0xff] %v227
          %260 = vst [vmem:[%s205 + $0x10] sm:$0xff] %v228
          %261 = vst [vmem:[%s205 + $0x18] sm:$0xff] %v229
          %262 = vst [vmem:[%s205 + $0x20] sm:$0xff] %v230
          %263 = vst [vmem:[%s205 + $0x28] sm:$0xff] %v231
          %264 = vst [vmem:[%s205 + $0x30] sm:$0xff] %v232
          %265 = vst [vmem:[%s205 + $0x38] sm:$0xff] %v233
          %266 = vst [vmem:[%s205 + $0x40] sm:$0xff] %v234
          %267 = vst [vmem:[%s205 + $0x48] sm:$0xff] %v235
          %268 = vst [vmem:[%s205 + $0x50] sm:$0xff] %v236
          %269 = vst [vmem:[%s205 + $0x58] sm:$0xff] %v237
          %270 = vst [vmem:[%s205 + $0x60] sm:$0xff] %v238
          %271 = vst [vmem:[%s205 + $0x68] sm:$0xff] %v239
          %272 = vst [vmem:[%s205 + $0x70] sm:$0xff] %v240
          %273 = vst [vmem:[%s205 + $0x78] sm:$0xff] %v241
          %274 = vst [vmem:[%s205 + $0x80] sm:$0xff] %v242
          %275 = vst [vmem:[%s205 + $0x88] sm:$0xff] %v243
          %276 = vst [vmem:[%s205 + $0x90] sm:$0xff] %v244
          %277 = vst [vmem:[%s205 + $0x98] sm:$0xff] %v245
          %278 = vst [vmem:[%s205 + $0xa0] sm:$0xff] %v246
          %279 = vst [vmem:[%s205 + $0xa8] sm:$0xff] %v247
          %280 = vst [vmem:[%s205 + $0xb0] sm:$0xff] %v248
          %281 = vst [vmem:[%s205 + $0xb8] sm:$0xff] %v249
          %282 = vst [vmem:[%s205 + $0xc0] sm:$0xff] %v250
          %283 = vst [vmem:[%s205 + $0xc8] sm:$0xff] %v251
          %284 = vst [vmem:[%s205 + $0xd0] sm:$0xff] %v252
          %285 = vst [vmem:[%s205 + $0xd8] sm:$0xff] %v253
          %286 = vst [vmem:[%s205 + $0xe0] sm:$0xff] %v254
          %287 = vst [vmem:[%s205 + $0xe8] sm:$0xff] %v255
          %288 = vst [vmem:[%s205 + $0xf0] sm:$0xff] %v256
          %289 = vst [vmem:[%s205 + $0xf8] sm:$0xff] %v257
        $region36: #{tpu_custom_call.1} parent=31 // pred_fallthru
          _
        %v290 = vlaneseq
        %v291 = vshrl.u32 %v290, 7
        %v292 = vadd.s32 %v291, 8
        %v293 = vadd.s32 %v291, 16
        %v294 = vadd.s32 %v291, 24
        %v295 = vadd.s32 %v291, 32
        %v296 = vadd.s32 %v291, 40
        %v297 = vadd.s32 %v291, 48
        %v298 = vadd.s32 %v291, 56
        %vm299 = vcmp.lt.s32.totalorder %v291, 0
        %v300 = vsub.s32 0, %v291
        %v301 = vsel %vm299, %v300, %v291
        %v302 = vshrl.u32 %v301, 4
        %v303 = vand.u32 %v301, 15
        %v304 = vsub.s32 0, %v303
        %v305 = vsel %vm299, %v304, %v303
        %vm306 = vcmp.lt.s32.totalorder %v292, 0
        %v307 = vsub.s32 0, %v292
        %v308 = vsel %vm306, %v307, %v292
        %v309 = vshrl.u32 %v308, 4
        %v310 = vand.u32 %v308, 15
        %v311 = vsub.s32 0, %v310
        %v312 = vsel %vm306, %v311, %v310
        %vm313 = vcmp.lt.s32.totalorder %v293, 0
        %v314 = vsub.s32 0, %v293
        %v315 = vsel %vm313, %v314, %v293
        %v316 = vshrl.u32 %v315, 4
        %v317 = vand.u32 %v315, 15
        %v318 = vsub.s32 0, %v317
        %v319 = vsel %vm313, %v318, %v317
        %vm320 = vcmp.lt.s32.totalorder %v294, 0
        %v321 = vsub.s32 0, %v294
        %v322 = vsel %vm320, %v321, %v294
        %v323 = vshrl.u32 %v322, 4
        %v324 = vand.u32 %v322, 15
        %v325 = vsub.s32 0, %v324
        %v326 = vsel %vm320, %v325, %v324
        %vm327 = vcmp.lt.s32.totalorder %v295, 0
        %v328 = vsub.s32 0, %v295
        %v329 = vsel %vm327, %v328, %v295
        %v330 = vshrl.u32 %v329, 4
        %v331 = vand.u32 %v329, 15
        %v332 = vsub.s32 0, %v331
        %v333 = vsel %vm327, %v332, %v331
        %vm334 = vcmp.lt.s32.totalorder %v296, 0
        %v335 = vsub.s32 0, %v296
        %v336 = vsel %vm334, %v335, %v296
        %v337 = vshrl.u32 %v336, 4
        %v338 = vand.u32 %v336, 15
        %v339 = vsub.s32 0, %v338
        %v340 = vsel %vm334, %v339, %v338
        %vm341 = vcmp.lt.s32.totalorder %v297, 0
        %v342 = vsub.s32 0, %v297
        %v343 = vsel %vm341, %v342, %v297
        %v344 = vshrl.u32 %v343, 4
        %v345 = vand.u32 %v343, 15
        %v346 = vsub.s32 0, %v345
        %v347 = vsel %vm341, %v346, %v345
        %vm348 = vcmp.lt.s32.totalorder %v298, 0
        %v349 = vsub.s32 0, %v298
        %v350 = vsel %vm348, %v349, %v298
        %v351 = vshrl.u32 %v350, 4
        %v352 = vand.u32 %v350, 15
        %v353 = vsub.s32 0, %v352
        %v354 = vsel %vm348, %v353, %v352
        %vm355 = vcmp.ne.s32.totalorder %v305, 0
        %vm356 = vcmp.ne.s32.totalorder %v312, 0
        %vm357 = vcmp.ne.s32.totalorder %v319, 0
        %vm358 = vcmp.ne.s32.totalorder %v326, 0
        %vm359 = vcmp.ne.s32.totalorder %v333, 0
        %vm360 = vcmp.ne.s32.totalorder %v340, 0
        %vm361 = vcmp.ne.s32.totalorder %v347, 0
        %vm362 = vcmp.ne.s32.totalorder %v354, 0
        %vm363 = vcmp.lt.s32.totalorder %v305, 0
        %vm364 = vcmp.lt.s32.totalorder %v312, 0
        %vm365 = vcmp.lt.s32.totalorder %v319, 0
        %vm366 = vcmp.lt.s32.totalorder %v326, 0
        %vm367 = vcmp.lt.s32.totalorder %v333, 0
        %vm368 = vcmp.lt.s32.totalorder %v340, 0
        %vm369 = vcmp.lt.s32.totalorder %v347, 0
        %vm370 = vcmp.lt.s32.totalorder %v354, 0
        %vm371 = vmand %vm363, %vm355
        %vm372 = vmand %vm364, %vm356
        %vm373 = vmand %vm365, %vm357
        %vm374 = vmand %vm366, %vm358
        %vm375 = vmand %vm367, %vm359
        %vm376 = vmand %vm368, %vm360
        %vm377 = vmand %vm369, %vm361
        %vm378 = vmand %vm370, %vm362
        %v379 = vadd.s32 %v305, 16
        %v380 = vadd.s32 %v312, 16
        %v381 = vadd.s32 %v319, 16
        %v382 = vadd.s32 %v326, 16
        %v383 = vadd.s32 %v333, 16
        %v384 = vadd.s32 %v340, 16
        %v385 = vadd.s32 %v347, 16
        %v386 = vadd.s32 %v354, 16
        %v387 = vsel %vm371, %v379, %v305
        %v388 = vsel %vm372, %v380, %v312
        %v389 = vsel %vm373, %v381, %v319
        %v390 = vsel %vm374, %v382, %v326
        %v391 = vsel %vm375, %v383, %v333
        %v392 = vsel %vm376, %v384, %v340
        %v393 = vsel %vm377, %v385, %v347
        %v394 = vsel %vm378, %v386, %v354
        %vm395 = vcmp.ge.s32.totalorder %v387, 1
        %vm396 = vcmp.ge.s32.totalorder %v388, 1
        %vm397 = vcmp.ge.s32.totalorder %v389, 1
        %vm398 = vcmp.ge.s32.totalorder %v390, 1
        %vm399 = vcmp.ge.s32.totalorder %v391, 1
        %vm400 = vcmp.ge.s32.totalorder %v392, 1
        %vm401 = vcmp.ge.s32.totalorder %v393, 1
        %vm402 = vcmp.ge.s32.totalorder %v394, 1
        %v403 = vsel %vm395, 1, 0
        %v404 = vsel %vm396, 1, 0
        %v405 = vsel %vm397, 1, 0
        %v406 = vsel %vm398, 1, 0
        %v407 = vsel %vm399, 1, 0
        %v408 = vsel %vm400, 1, 0
        %v409 = vsel %vm401, 1, 0
        %v410 = vsel %vm402, 1, 0
        %v411 = vcvt.s32.f32 %v403
        %v412 = vcvt.s32.f32 %v404
        %v413 = vcvt.s32.f32 %v405
        %v414 = vcvt.s32.f32 %v406
        %v415 = vcvt.s32.f32 %v407
        %v416 = vcvt.s32.f32 %v408
        %v417 = vcvt.s32.f32 %v409
        %v418 = vcvt.s32.f32 %v410
        %vm419 = vcmp.le.s32.totalorder %v387, 14
        %vm420 = vcmp.le.s32.totalorder %v388, 14
        %vm421 = vcmp.le.s32.totalorder %v389, 14
        %vm422 = vcmp.le.s32.totalorder %v390, 14
        %vm423 = vcmp.le.s32.totalorder %v391, 14
        %vm424 = vcmp.le.s32.totalorder %v392, 14
        %vm425 = vcmp.le.s32.totalorder %v393, 14
        %vm426 = vcmp.le.s32.totalorder %v394, 14
        %v427 = vsel %vm419, 1, 0
        %v428 = vsel %vm420, 1, 0
        %v429 = vsel %vm421, 1, 0
        %v430 = vsel %vm422, 1, 0
        %v431 = vsel %vm423, 1, 0
        %v432 = vsel %vm424, 1, 0
        %v433 = vsel %vm425, 1, 0
        %v434 = vsel %vm426, 1, 0
        %v435 = vcvt.s32.f32 %v427
        %v436 = vcvt.s32.f32 %v428
        %v437 = vcvt.s32.f32 %v429
        %v438 = vcvt.s32.f32 %v430
        %v439 = vcvt.s32.f32 %v431
        %v440 = vcvt.s32.f32 %v432
        %v441 = vcvt.s32.f32 %v433
        %v442 = vcvt.s32.f32 %v434
        %v443 = vld [vmem:[%s205] sm:$0xff]
        %v444 = vld [vmem:[%s205 + $0x8] sm:$0xff]
        %v445 = vld [vmem:[%s205 + $0x10] sm:$0xff]
        %v446 = vld [vmem:[%s205 + $0x18] sm:$0xff]
        %v447 = vld [vmem:[%s205 + $0x20] sm:$0xff]
        %v448 = vld [vmem:[%s205 + $0x28] sm:$0xff]
        %v449 = vld [vmem:[%s205 + $0x30] sm:$0xff]
        %v450 = vld [vmem:[%s205 + $0x38] sm:$0xff]
        %v451 = vmax.f32 %v443, 0.0
        %v452 = vmax.f32 %v444, 0.0
        %v453 = vmax.f32 %v445, 0.0
        %v454 = vmax.f32 %v446, 0.0
        %v455 = vmax.f32 %v447, 0.0
        %v456 = vmax.f32 %v448, 0.0
        %v457 = vmax.f32 %v449, 0.0
        %v458 = vmax.f32 %v450, 0.0
        %v459 = vpack.c.bf16 %v451, %v451
        %v460 = vpack.c.bf16 %v452, %v452
        %v461 = vpack.c.bf16 %v453, %v453
        %v462 = vpack.c.bf16 %v454, %v454
        %v463 = vpack.c.bf16 %v455, %v455
        %v464 = vpack.c.bf16 %v456, %v456
        %v465 = vpack.c.bf16 %v457, %v457
        %v466 = vpack.c.bf16 %v458, %v458
        %467 = vst [vmem:[#allocation2 + $0x4] sm:$0xf] %v459
        %468 = vst [vmem:[#allocation2 + $0x10] sm:$0xf] %v460
        %469 = vst [vmem:[#allocation2 + $0x1c] sm:$0xf] %v461
        %470 = vst [vmem:[#allocation2 + $0x28] sm:$0xf] %v462
        %471 = vst [vmem:[#allocation2 + $0x34] sm:$0xf] %v463
        %472 = vst [vmem:[#allocation2 + $0x40] sm:$0xf] %v464
        %473 = vst [vmem:[#allocation2 + $0x4c] sm:$0xf] %v465
        %474 = vst [vmem:[#allocation2 + $0x58] sm:$0xf] %v466
        %v476 = vrot.slane %v458, 7
        %vm485 = vcmask 1040384
        %v486 = vrot.slane %v451, 7
        %v487 = vrot.slane %v452, 7
        %v488 = vsel %vm485, %v486, %v487
        %v489 = vrot.slane %v453, 7
        %v490 = vsel %vm485, %v487, %v489
        %v491 = vrot.slane %v454, 7
        %v492 = vsel %vm485, %v489, %v491
        %v493 = vrot.slane %v455, 7
        %v494 = vsel %vm485, %v491, %v493
        %v495 = vrot.slane %v456, 7
        %v496 = vsel %vm485, %v493, %v495
        %v497 = vrot.slane %v457, 7
        %v498 = vsel %vm485, %v495, %v497
        %v499 = vsel %vm485, %v497, %v476
        %v508 = vsel %vm485, %v476, %v486
        %v509 = vmul.f32 %v508, %v411
        %v510 = vmul.f32 %v488, %v412
        %v511 = vmul.f32 %v490, %v413
        %v512 = vmul.f32 %v492, %v414
        %v513 = vmul.f32 %v494, %v415
        %v514 = vmul.f32 %v496, %v416
        %v515 = vmul.f32 %v498, %v417
        %v516 = vmul.f32 %v499, %v418
        %v517 = vpack.c.bf16 %v509, %v509
        %v518 = vpack.c.bf16 %v510, %v510
        %v519 = vpack.c.bf16 %v511, %v511
        %v520 = vpack.c.bf16 %v512, %v512
        %v521 = vpack.c.bf16 %v513, %v513
        %v522 = vpack.c.bf16 %v514, %v514
        %v523 = vpack.c.bf16 %v515, %v515
        %v524 = vpack.c.bf16 %v516, %v516
        %525 = vst [vmem:[#allocation2] sm:$0xf] %v517
        %526 = vst [vmem:[#allocation2 + $0xc] sm:$0xf] %v518
        %527 = vst [vmem:[#allocation2 + $0x18] sm:$0xf] %v519
        %528 = vst [vmem:[#allocation2 + $0x24] sm:$0xf] %v520
        %529 = vst [vmem:[#allocation2 + $0x30] sm:$0xf] %v521
        %530 = vst [vmem:[#allocation2 + $0x3c] sm:$0xf] %v522
        %531 = vst [vmem:[#allocation2 + $0x48] sm:$0xf] %v523
        %532 = vst [vmem:[#allocation2 + $0x54] sm:$0xf] %v524
        %vm533 = vcmask 1046528
        %v534 = vrot.slane %v451, 1
        %v535 = vrot.slane %v452, 1
        %v536 = vsel %vm533, %v534, %v535
        %v537 = vrot.slane %v453, 1
        %v538 = vsel %vm533, %v535, %v537
        %v539 = vrot.slane %v454, 1
        %v540 = vsel %vm533, %v537, %v539
        %v541 = vrot.slane %v455, 1
        %v542 = vsel %vm533, %v539, %v541
        %v543 = vrot.slane %v456, 1
        %v544 = vsel %vm533, %v541, %v543
        %v545 = vrot.slane %v457, 1
        %v546 = vsel %vm533, %v543, %v545
        %v547 = vrot.slane %v458, 1
        %v548 = vsel %vm533, %v545, %v547
        %v558 = vsel %vm533, %v547, %v534
        %v559 = vmul.f32 %v536, %v435
        %v560 = vmul.f32 %v538, %v436
        %v561 = vmul.f32 %v540, %v437
        %v562 = vmul.f32 %v542, %v438
        %v563 = vmul.f32 %v544, %v439
        %v564 = vmul.f32 %v546, %v440
        %v565 = vmul.f32 %v548, %v441
        %v566 = vmul.f32 %v558, %v442
        %v567 = vpack.c.bf16 %v559, %v559
        %v568 = vpack.c.bf16 %v560, %v560
        %v569 = vpack.c.bf16 %v561, %v561
        %v570 = vpack.c.bf16 %v562, %v562
        %v571 = vpack.c.bf16 %v563, %v563
        %v572 = vpack.c.bf16 %v564, %v564
        %v573 = vpack.c.bf16 %v565, %v565
        %v574 = vpack.c.bf16 %v566, %v566
        %575 = vst [vmem:[#allocation2 + $0x8] sm:$0xf] %v567
        %576 = vst [vmem:[#allocation2 + $0x14] sm:$0xf] %v568
        %577 = vst [vmem:[#allocation2 + $0x20] sm:$0xf] %v569
        %578 = vst [vmem:[#allocation2 + $0x2c] sm:$0xf] %v570
        %579 = vst [vmem:[#allocation2 + $0x38] sm:$0xf] %v571
        %580 = vst [vmem:[#allocation2 + $0x44] sm:$0xf] %v572
        %581 = vst [vmem:[#allocation2 + $0x50] sm:$0xf] %v573
        %582 = vst [vmem:[#allocation2 + $0x5c] sm:$0xf] %v574
        %v583 = vld [vmem:[%s205 + $0x40] sm:$0xff]
        %v584 = vld [vmem:[%s205 + $0x48] sm:$0xff]
        %v585 = vld [vmem:[%s205 + $0x50] sm:$0xff]
        %v586 = vld [vmem:[%s205 + $0x58] sm:$0xff]
        %v587 = vld [vmem:[%s205 + $0x60] sm:$0xff]
        %v588 = vld [vmem:[%s205 + $0x68] sm:$0xff]
        %v589 = vld [vmem:[%s205 + $0x70] sm:$0xff]
        %v590 = vld [vmem:[%s205 + $0x78] sm:$0xff]
        %v591 = vmax.f32 %v583, 0.0
        %v592 = vmax.f32 %v584, 0.0
        %v593 = vmax.f32 %v585, 0.0
        %v594 = vmax.f32 %v586, 0.0
        %v595 = vmax.f32 %v587, 0.0
        %v596 = vmax.f32 %v588, 0.0
        %v597 = vmax.f32 %v589, 0.0
        %v598 = vmax.f32 %v590, 0.0
        %v599 = vpack.c.bf16 %v591, %v591
        %v600 = vpack.c.bf16 %v592, %v592
        %v601 = vpack.c.bf16 %v593, %v593
        %v602 = vpack.c.bf16 %v594, %v594
        %v603 = vpack.c.bf16 %v595, %v595
        %v604 = vpack.c.bf16 %v596, %v596
        %v605 = vpack.c.bf16 %v597, %v597
        %v606 = vpack.c.bf16 %v598, %v598
        %607 = vst [vmem:[#allocation2 + $0x64] sm:$0xf] %v599
        %608 = vst [vmem:[#allocation2 + $0x70] sm:$0xf] %v600
        %609 = vst [vmem:[#allocation2 + $0x7c] sm:$0xf] %v601
        %610 = vst [vmem:[#allocation2 + $0x88] sm:$0xf] %v602
        %611 = vst [vmem:[#allocation2 + $0x94] sm:$0xf] %v603
        %612 = vst [vmem:[#allocation2 + $0xa0] sm:$0xf] %v604
        %613 = vst [vmem:[#allocation2 + $0xac] sm:$0xf] %v605
        %614 = vst [vmem:[#allocation2 + $0xb8] sm:$0xf] %v606
        %v616 = vrot.slane %v598, 7
        %v625 = vrot.slane %v591, 7
        %v626 = vrot.slane %v592, 7
        %v627 = vsel %vm485, %v625, %v626
        %v628 = vrot.slane %v593, 7
        %v629 = vsel %vm485, %v626, %v628
        %v630 = vrot.slane %v594, 7
        %v631 = vsel %vm485, %v628, %v630
        %v632 = vrot.slane %v595, 7
        %v633 = vsel %vm485, %v630, %v632
        %v634 = vrot.slane %v596, 7
        %v635 = vsel %vm485, %v632, %v634
        %v636 = vrot.slane %v597, 7
        %v637 = vsel %vm485, %v634, %v636
        %v638 = vsel %vm485, %v636, %v616
        %v647 = vsel %vm485, %v616, %v625
        %v648 = vmul.f32 %v647, %v411
        %v649 = vmul.f32 %v627, %v412
        %v650 = vmul.f32 %v629, %v413
        %v651 = vmul.f32 %v631, %v414
        %v652 = vmul.f32 %v633, %v415
        %v653 = vmul.f32 %v635, %v416
        %v654 = vmul.f32 %v637, %v417
        %v655 = vmul.f32 %v638, %v418
        %v656 = vpack.c.bf16 %v648, %v648
        %v657 = vpack.c.bf16 %v649, %v649
        %v658 = vpack.c.bf16 %v650, %v650
        %v659 = vpack.c.bf16 %v651, %v651
        %v660 = vpack.c.bf16 %v652, %v652
        %v661 = vpack.c.bf16 %v653, %v653
        %v662 = vpack.c.bf16 %v654, %v654
        %v663 = vpack.c.bf16 %v655, %v655
        %664 = vst [vmem:[#allocation2 + $0x60] sm:$0xf] %v656
        %665 = vst [vmem:[#allocation2 + $0x6c] sm:$0xf] %v657
        %666 = vst [vmem:[#allocation2 + $0x78] sm:$0xf] %v658
        %667 = vst [vmem:[#allocation2 + $0x84] sm:$0xf] %v659
        %668 = vst [vmem:[#allocation2 + $0x90] sm:$0xf] %v660
        %669 = vst [vmem:[#allocation2 + $0x9c] sm:$0xf] %v661
        %670 = vst [vmem:[#allocation2 + $0xa8] sm:$0xf] %v662
        %671 = vst [vmem:[#allocation2 + $0xb4] sm:$0xf] %v663
        %v672 = vrot.slane %v591, 1
        %v673 = vrot.slane %v592, 1
        %v674 = vsel %vm533, %v672, %v673
        %v675 = vrot.slane %v593, 1
        %v676 = vsel %vm533, %v673, %v675
        %v677 = vrot.slane %v594, 1
        %v678 = vsel %vm533, %v675, %v677
        %v679 = vrot.slane %v595, 1
        %v680 = vsel %vm533, %v677, %v679
        %v681 = vrot.slane %v596, 1
        %v682 = vsel %vm533, %v679, %v681
        %v683 = vrot.slane %v597, 1
        %v684 = vsel %vm533, %v681, %v683
        %v685 = vrot.slane %v598, 1
        %v686 = vsel %vm533, %v683, %v685
        %v696 = vsel %vm533, %v685, %v672
        %v697 = vmul.f32 %v674, %v435
        %v698 = vmul.f32 %v676, %v436
        %v699 = vmul.f32 %v678, %v437
        %v700 = vmul.f32 %v680, %v438
        %v701 = vmul.f32 %v682, %v439
        %v702 = vmul.f32 %v684, %v440
        %v703 = vmul.f32 %v686, %v441
        %v704 = vmul.f32 %v696, %v442
        %v705 = vpack.c.bf16 %v697, %v697
        %v706 = vpack.c.bf16 %v698, %v698
        %v707 = vpack.c.bf16 %v699, %v699
        %v708 = vpack.c.bf16 %v700, %v700
        %v709 = vpack.c.bf16 %v701, %v701
        %v710 = vpack.c.bf16 %v702, %v702
        %v711 = vpack.c.bf16 %v703, %v703
        %v712 = vpack.c.bf16 %v704, %v704
        %713 = vst [vmem:[#allocation2 + $0x68] sm:$0xf] %v705
        %714 = vst [vmem:[#allocation2 + $0x74] sm:$0xf] %v706
        %715 = vst [vmem:[#allocation2 + $0x80] sm:$0xf] %v707
        %716 = vst [vmem:[#allocation2 + $0x8c] sm:$0xf] %v708
        %717 = vst [vmem:[#allocation2 + $0x98] sm:$0xf] %v709
        %718 = vst [vmem:[#allocation2 + $0xa4] sm:$0xf] %v710
        %719 = vst [vmem:[#allocation2 + $0xb0] sm:$0xf] %v711
        %720 = vst [vmem:[#allocation2 + $0xbc] sm:$0xf] %v712
        %v721 = vld [vmem:[%s205 + $0x80] sm:$0xff]
        %v722 = vld [vmem:[%s205 + $0x88] sm:$0xff]
        %v723 = vld [vmem:[%s205 + $0x90] sm:$0xff]
        %v724 = vld [vmem:[%s205 + $0x98] sm:$0xff]
        %v725 = vld [vmem:[%s205 + $0xa0] sm:$0xff]
        %v726 = vld [vmem:[%s205 + $0xa8] sm:$0xff]
        %v727 = vld [vmem:[%s205 + $0xb0] sm:$0xff]
        %v728 = vld [vmem:[%s205 + $0xb8] sm:$0xff]
        %v729 = vmax.f32 %v721, 0.0
        %v730 = vmax.f32 %v722, 0.0
        %v731 = vmax.f32 %v723, 0.0
        %v732 = vmax.f32 %v724, 0.0
        %v733 = vmax.f32 %v725, 0.0
        %v734 = vmax.f32 %v726, 0.0
        %v735 = vmax.f32 %v727, 0.0
        %v736 = vmax.f32 %v728, 0.0
        %v737 = vpack.c.bf16 %v729, %v729
        %v738 = vpack.c.bf16 %v730, %v730
        %v739 = vpack.c.bf16 %v731, %v731
        %v740 = vpack.c.bf16 %v732, %v732
        %v741 = vpack.c.bf16 %v733, %v733
        %v742 = vpack.c.bf16 %v734, %v734
        %v743 = vpack.c.bf16 %v735, %v735
        %v744 = vpack.c.bf16 %v736, %v736
        %745 = vst [vmem:[#allocation2 + $0xc4] sm:$0xf] %v737
        %746 = vst [vmem:[#allocation2 + $0xd0] sm:$0xf] %v738
        %747 = vst [vmem:[#allocation2 + $0xdc] sm:$0xf] %v739
        %748 = vst [vmem:[#allocation2 + $0xe8] sm:$0xf] %v740
        %749 = vst [vmem:[#allocation2 + $0xf4] sm:$0xf] %v741
        %750 = vst [vmem:[#allocation2 + $0x100] sm:$0xf] %v742
        %751 = vst [vmem:[#allocation2 + $0x10c] sm:$0xf] %v743
        %752 = vst [vmem:[#allocation2 + $0x118] sm:$0xf] %v744
        %v754 = vrot.slane %v736, 7
        %v763 = vrot.slane %v729, 7
        %v764 = vrot.slane %v730, 7
        %v765 = vsel %vm485, %v763, %v764
        %v766 = vrot.slane %v731, 7
        %v767 = vsel %vm485, %v764, %v766
        %v768 = vrot.slane %v732, 7
        %v769 = vsel %vm485, %v766, %v768
        %v770 = vrot.slane %v733, 7
        %v771 = vsel %vm485, %v768, %v770
        %v772 = vrot.slane %v734, 7
        %v773 = vsel %vm485, %v770, %v772
        %v774 = vrot.slane %v735, 7
        %v775 = vsel %vm485, %v772, %v774
        %v776 = vsel %vm485, %v774, %v754
        %v785 = vsel %vm485, %v754, %v763
        %v786 = vmul.f32 %v785, %v411
        %v787 = vmul.f32 %v765, %v412
        %v788 = vmul.f32 %v767, %v413
        %v789 = vmul.f32 %v769, %v414
        %v790 = vmul.f32 %v771, %v415
        %v791 = vmul.f32 %v773, %v416
        %v792 = vmul.f32 %v775, %v417
        %v793 = vmul.f32 %v776, %v418
        %v794 = vpack.c.bf16 %v786, %v786
        %v795 = vpack.c.bf16 %v787, %v787
        %v796 = vpack.c.bf16 %v788, %v788
        %v797 = vpack.c.bf16 %v789, %v789
        %v798 = vpack.c.bf16 %v790, %v790
        %v799 = vpack.c.bf16 %v791, %v791
        %v800 = vpack.c.bf16 %v792, %v792
        %v801 = vpack.c.bf16 %v793, %v793
        %802 = vst [vmem:[#allocation2 + $0xc0] sm:$0xf] %v794
        %803 = vst [vmem:[#allocation2 + $0xcc] sm:$0xf] %v795
        %804 = vst [vmem:[#allocation2 + $0xd8] sm:$0xf] %v796
        %805 = vst [vmem:[#allocation2 + $0xe4] sm:$0xf] %v797
        %806 = vst [vmem:[#allocation2 + $0xf0] sm:$0xf] %v798
        %807 = vst [vmem:[#allocation2 + $0xfc] sm:$0xf] %v799
        %808 = vst [vmem:[#allocation2 + $0x108] sm:$0xf] %v800
        %809 = vst [vmem:[#allocation2 + $0x114] sm:$0xf] %v801
        %v810 = vrot.slane %v729, 1
        %v811 = vrot.slane %v730, 1
        %v812 = vsel %vm533, %v810, %v811
        %v813 = vrot.slane %v731, 1
        %v814 = vsel %vm533, %v811, %v813
        %v815 = vrot.slane %v732, 1
        %v816 = vsel %vm533, %v813, %v815
        %v817 = vrot.slane %v733, 1
        %v818 = vsel %vm533, %v815, %v817
        %v819 = vrot.slane %v734, 1
        %v820 = vsel %vm533, %v817, %v819
        %v821 = vrot.slane %v735, 1
        %v822 = vsel %vm533, %v819, %v821
        %v823 = vrot.slane %v736, 1
        %v824 = vsel %vm533, %v821, %v823
        %v834 = vsel %vm533, %v823, %v810
        %v835 = vmul.f32 %v812, %v435
        %v836 = vmul.f32 %v814, %v436
        %v837 = vmul.f32 %v816, %v437
        %v838 = vmul.f32 %v818, %v438
        %v839 = vmul.f32 %v820, %v439
        %v840 = vmul.f32 %v822, %v440
        %v841 = vmul.f32 %v824, %v441
        %v842 = vmul.f32 %v834, %v442
        %v843 = vpack.c.bf16 %v835, %v835
        %v844 = vpack.c.bf16 %v836, %v836
        %v845 = vpack.c.bf16 %v837, %v837
        %v846 = vpack.c.bf16 %v838, %v838
        %v847 = vpack.c.bf16 %v839, %v839
        %v848 = vpack.c.bf16 %v840, %v840
        %v849 = vpack.c.bf16 %v841, %v841
        %v850 = vpack.c.bf16 %v842, %v842
        %851 = vst [vmem:[#allocation2 + $0xc8] sm:$0xf] %v843
        %852 = vst [vmem:[#allocation2 + $0xd4] sm:$0xf] %v844
        %853 = vst [vmem:[#allocation2 + $0xe0] sm:$0xf] %v845
        %854 = vst [vmem:[#allocation2 + $0xec] sm:$0xf] %v846
        %855 = vst [vmem:[#allocation2 + $0xf8] sm:$0xf] %v847
        %856 = vst [vmem:[#allocation2 + $0x104] sm:$0xf] %v848
        %857 = vst [vmem:[#allocation2 + $0x110] sm:$0xf] %v849
        %858 = vst [vmem:[#allocation2 + $0x11c] sm:$0xf] %v850
        %v859 = vld [vmem:[%s205 + $0xc0] sm:$0xff]
        %v860 = vld [vmem:[%s205 + $0xc8] sm:$0xff]
        %v861 = vld [vmem:[%s205 + $0xd0] sm:$0xff]
        %v862 = vld [vmem:[%s205 + $0xd8] sm:$0xff]
        %v863 = vld [vmem:[%s205 + $0xe0] sm:$0xff]
        %v864 = vld [vmem:[%s205 + $0xe8] sm:$0xff]
        %v865 = vld [vmem:[%s205 + $0xf0] sm:$0xff]
        %v866 = vld [vmem:[%s205 + $0xf8] sm:$0xff]
        %v867 = vmax.f32 %v859, 0.0
        %v868 = vmax.f32 %v860, 0.0
        %v869 = vmax.f32 %v861, 0.0
        %v870 = vmax.f32 %v862, 0.0
        %v871 = vmax.f32 %v863, 0.0
        %v872 = vmax.f32 %v864, 0.0
        %v873 = vmax.f32 %v865, 0.0
        %v874 = vmax.f32 %v866, 0.0
        %v875 = vpack.c.bf16 %v867, %v867
        %v876 = vpack.c.bf16 %v868, %v868
        %v877 = vpack.c.bf16 %v869, %v869
        %v878 = vpack.c.bf16 %v870, %v870
        %v879 = vpack.c.bf16 %v871, %v871
        %v880 = vpack.c.bf16 %v872, %v872
        %v881 = vpack.c.bf16 %v873, %v873
        %v882 = vpack.c.bf16 %v874, %v874
        %883 = vst [vmem:[#allocation2 + $0x124] sm:$0xf] %v875
        %884 = vst [vmem:[#allocation2 + $0x130] sm:$0xf] %v876
        %885 = vst [vmem:[#allocation2 + $0x13c] sm:$0xf] %v877
        %886 = vst [vmem:[#allocation2 + $0x148] sm:$0xf] %v878
        %887 = vst [vmem:[#allocation2 + $0x154] sm:$0xf] %v879
        %888 = vst [vmem:[#allocation2 + $0x160] sm:$0xf] %v880
        %889 = vst [vmem:[#allocation2 + $0x16c] sm:$0xf] %v881
        %890 = vst [vmem:[#allocation2 + $0x178] sm:$0xf] %v882
        %v892 = vrot.slane %v874, 7
        %v901 = vrot.slane %v867, 7
        %v902 = vrot.slane %v868, 7
        %v903 = vsel %vm485, %v901, %v902
        %v904 = vrot.slane %v869, 7
        %v905 = vsel %vm485, %v902, %v904
        %v906 = vrot.slane %v870, 7
        %v907 = vsel %vm485, %v904, %v906
        %v908 = vrot.slane %v871, 7
        %v909 = vsel %vm485, %v906, %v908
        %v910 = vrot.slane %v872, 7
        %v911 = vsel %vm485, %v908, %v910
        %v912 = vrot.slane %v873, 7
        %v913 = vsel %vm485, %v910, %v912
        %v914 = vsel %vm485, %v912, %v892
        %v923 = vsel %vm485, %v892, %v901
        %v924 = vmul.f32 %v923, %v411
        %v925 = vmul.f32 %v903, %v412
        %v926 = vmul.f32 %v905, %v413
        %v927 = vmul.f32 %v907, %v414
        %v928 = vmul.f32 %v909, %v415
        %v929 = vmul.f32 %v911, %v416
        %v930 = vmul.f32 %v913, %v417
        %v931 = vmul.f32 %v914, %v418
        %v932 = vpack.c.bf16 %v924, %v924
        %v933 = vpack.c.bf16 %v925, %v925
        %v934 = vpack.c.bf16 %v926, %v926
        %v935 = vpack.c.bf16 %v927, %v927
        %v936 = vpack.c.bf16 %v928, %v928
        %v937 = vpack.c.bf16 %v929, %v929
        %v938 = vpack.c.bf16 %v930, %v930
        %v939 = vpack.c.bf16 %v931, %v931
        %940 = vst [vmem:[#allocation2 + $0x120] sm:$0xf] %v932
        %941 = vst [vmem:[#allocation2 + $0x12c] sm:$0xf] %v933
        %942 = vst [vmem:[#allocation2 + $0x138] sm:$0xf] %v934
        %943 = vst [vmem:[#allocation2 + $0x144] sm:$0xf] %v935
        %944 = vst [vmem:[#allocation2 + $0x150] sm:$0xf] %v936
        %945 = vst [vmem:[#allocation2 + $0x15c] sm:$0xf] %v937
        %946 = vst [vmem:[#allocation2 + $0x168] sm:$0xf] %v938
        %947 = vst [vmem:[#allocation2 + $0x174] sm:$0xf] %v939
        %v948 = vrot.slane %v867, 1
        %v949 = vrot.slane %v868, 1
        %v950 = vsel %vm533, %v948, %v949
        %v951 = vrot.slane %v869, 1
        %v952 = vsel %vm533, %v949, %v951
        %v953 = vrot.slane %v870, 1
        %v954 = vsel %vm533, %v951, %v953
        %v955 = vrot.slane %v871, 1
        %v956 = vsel %vm533, %v953, %v955
        %v957 = vrot.slane %v872, 1
        %v958 = vsel %vm533, %v955, %v957
        %v959 = vrot.slane %v873, 1
        %v960 = vsel %vm533, %v957, %v959
        %v961 = vrot.slane %v874, 1
        %v962 = vsel %vm533, %v959, %v961
        %v972 = vsel %vm533, %v961, %v948
        %v973 = vmul.f32 %v950, %v435
        %v974 = vmul.f32 %v952, %v436
        %v975 = vmul.f32 %v954, %v437
        %v976 = vmul.f32 %v956, %v438
        %v977 = vmul.f32 %v958, %v439
        %v978 = vmul.f32 %v960, %v440
        %v979 = vmul.f32 %v962, %v441
        %v980 = vmul.f32 %v972, %v442
        %v981 = vpack.c.bf16 %v973, %v973
        %v982 = vpack.c.bf16 %v974, %v974
        %v983 = vpack.c.bf16 %v975, %v975
        %v984 = vpack.c.bf16 %v976, %v976
        %v985 = vpack.c.bf16 %v977, %v977
        %v986 = vpack.c.bf16 %v978, %v978
        %v987 = vpack.c.bf16 %v979, %v979
        %v988 = vpack.c.bf16 %v980, %v980
        %989 = vst [vmem:[#allocation2 + $0x128] sm:$0xf] %v981
        %990 = vst [vmem:[#allocation2 + $0x134] sm:$0xf] %v982
        %991 = vst [vmem:[#allocation2 + $0x140] sm:$0xf] %v983
        %992 = vst [vmem:[#allocation2 + $0x14c] sm:$0xf] %v984
        %993 = vst [vmem:[#allocation2 + $0x158] sm:$0xf] %v985
        %994 = vst [vmem:[#allocation2 + $0x164] sm:$0xf] %v986
        %995 = vst [vmem:[#allocation2 + $0x170] sm:$0xf] %v987
        %996 = vst [vmem:[#allocation2 + $0x17c] sm:$0xf] %v988
        %v997 = vld [vmem:[#allocation2] sm:$0xff]
        %v998 = vld [vmem:[#allocation2 + $0x8] sm:$0xf]
        %v999 = vld [vmem:[#allocation2 + $0xc] sm:$0xff]
        %v1000 = vld [vmem:[#allocation2 + $0x14] sm:$0xf]
        %v1001 = vld [vmem:[#allocation2 + $0x18] sm:$0xff]
        %v1002 = vld [vmem:[#allocation2 + $0x20] sm:$0xf]
        %v1003 = vld [vmem:[#allocation2 + $0x24] sm:$0xff]
        %v1004 = vld [vmem:[#allocation2 + $0x2c] sm:$0xf]
        %v1005 = vld [vmem:[#allocation2 + $0x30] sm:$0xff]
        %v1006 = vld [vmem:[#allocation2 + $0x38] sm:$0xf]
        %v1007 = vld [vmem:[#allocation2 + $0x3c] sm:$0xff]
        %v1008 = vld [vmem:[#allocation2 + $0x44] sm:$0xf]
        %v1009 = vld [vmem:[#allocation2 + $0x48] sm:$0xff]
        %v1010 = vld [vmem:[#allocation2 + $0x50] sm:$0xf]
        %v1011 = vld [vmem:[#allocation2 + $0x54] sm:$0xff]
        %v1012 = vld [vmem:[#allocation2 + $0x5c] sm:$0xf]
        %v1013 = vld [vmem:[#allocation2 + $0x60] sm:$0xff]
        %v1014 = vld [vmem:[#allocation2 + $0x68] sm:$0xf]
        %v1015 = vld [vmem:[#allocation2 + $0x6c] sm:$0xff]
        %v1016 = vld [vmem:[#allocation2 + $0x74] sm:$0xf]
        %v1017 = vld [vmem:[#allocation2 + $0x78] sm:$0xff]
        %v1018 = vld [vmem:[#allocation2 + $0x80] sm:$0xf]
        %v1019 = vld [vmem:[#allocation2 + $0x84] sm:$0xff]
        %v1020 = vld [vmem:[#allocation2 + $0x8c] sm:$0xf]
        %v1021 = vld [vmem:[#allocation2 + $0x90] sm:$0xff]
        %v1022 = vld [vmem:[#allocation2 + $0x98] sm:$0xf]
        %v1023 = vld [vmem:[#allocation2 + $0x9c] sm:$0xff]
        %v1024 = vld [vmem:[#allocation2 + $0xa4] sm:$0xf]
        %v1025 = vld [vmem:[#allocation2 + $0xa8] sm:$0xff]
        %v1026 = vld [vmem:[#allocation2 + $0xb0] sm:$0xf]
        %v1027 = vld [vmem:[#allocation2 + $0xb4] sm:$0xff]
        %v1028 = vld [vmem:[#allocation2 + $0xbc] sm:$0xf]
        %v1029 = vld [vmem:[#allocation2 + $0xc0] sm:$0xff]
        %v1030 = vld [vmem:[#allocation2 + $0xc8] sm:$0xf]
        %v1031 = vld [vmem:[#allocation2 + $0xcc] sm:$0xff]
        %v1032 = vld [vmem:[#allocation2 + $0xd4] sm:$0xf]
        %v1033 = vld [vmem:[#allocation2 + $0xd8] sm:$0xff]
        %v1034 = vld [vmem:[#allocation2 + $0xe0] sm:$0xf]
        %v1035 = vld [vmem:[#allocation2 + $0xe4] sm:$0xff]
        %v1036 = vld [vmem:[#allocation2 + $0xec] sm:$0xf]
        %v1037 = vld [vmem:[#allocation2 + $0xf0] sm:$0xff]
        %v1038 = vld [vmem:[#allocation2 + $0xf8] sm:$0xf]
        %v1039 = vld [vmem:[#allocation2 + $0xfc] sm:$0xff]
        %v1040 = vld [vmem:[#allocation2 + $0x104] sm:$0xf]
        %v1041 = vld [vmem:[#allocation2 + $0x108] sm:$0xff]
        %v1042 = vld [vmem:[#allocation2 + $0x110] sm:$0xf]
        %v1043 = vld [vmem:[#allocation2 + $0x114] sm:$0xff]
        %v1044 = vld [vmem:[#allocation2 + $0x11c] sm:$0xf]
        %v1045 = vld [vmem:[#allocation2 + $0x120] sm:$0xff]
        %v1046 = vld [vmem:[#allocation2 + $0x128] sm:$0xf]
        %v1047 = vld [vmem:[#allocation2 + $0x12c] sm:$0xff]
        %v1048 = vld [vmem:[#allocation2 + $0x134] sm:$0xf]
        %v1049 = vld [vmem:[#allocation2 + $0x138] sm:$0xff]
        %v1050 = vld [vmem:[#allocation2 + $0x140] sm:$0xf]
        %v1051 = vld [vmem:[#allocation2 + $0x144] sm:$0xff]
        %v1052 = vld [vmem:[#allocation2 + $0x14c] sm:$0xf]
        %v1053 = vld [vmem:[#allocation2 + $0x150] sm:$0xff]
        %v1054 = vld [vmem:[#allocation2 + $0x158] sm:$0xf]
        %v1055 = vld [vmem:[#allocation2 + $0x15c] sm:$0xff]
        %v1056 = vld [vmem:[#allocation2 + $0x164] sm:$0xf]
        %v1057 = vld [vmem:[#allocation2 + $0x168] sm:$0xff]
        %v1058 = vld [vmem:[#allocation2 + $0x170] sm:$0xf]
        %v1059 = vld [vmem:[#allocation2 + $0x174] sm:$0xff]
        %v1060 = vld [vmem:[#allocation2 + $0x17c] sm:$0xf]
        %s1061 = scalar_lea.vmem %s215, 192
        %v1062 = vld [vmem:[%s1061] sm:$0xf]
        %v1063 = vld [vmem:[%s1061 + $0x4] sm:$0xf]
        %v1064 = vld [vmem:[%s1061 + $0x8] sm:$0xf]
        %v1065 = vld [vmem:[%s1061 + $0xc] sm:$0xf]
        %v1066 = vld [vmem:[%s1061 + $0x10] sm:$0xf]
        %v1067 = vld [vmem:[%s1061 + $0x14] sm:$0xf]
        %v1068 = vld [vmem:[%s1061 + $0x18] sm:$0xf]
        %v1069 = vld [vmem:[%s1061 + $0x1c] sm:$0xf]
        %v1070 = vld [vmem:[%s1061 + $0x20] sm:$0xf]
        %v1071 = vld [vmem:[%s1061 + $0x24] sm:$0xf]
        %v1072 = vld [vmem:[%s1061 + $0x28] sm:$0xf]
        %v1073 = vld [vmem:[%s1061 + $0x2c] sm:$0xf]
        %v1074 = vld [vmem:[%s1061 + $0x30] sm:$0xf]
        %v1075 = vld [vmem:[%s1061 + $0x34] sm:$0xf]
        %v1076 = vld [vmem:[%s1061 + $0x38] sm:$0xf]
        %v1077 = vld [vmem:[%s1061 + $0x3c] sm:$0xf]
        %v1078 = vld [vmem:[%s1061 + $0x40] sm:$0xf]
        %v1079 = vld [vmem:[%s1061 + $0x44] sm:$0xf]
        %v1080 = vld [vmem:[%s1061 + $0x48] sm:$0xf]
        %v1081 = vld [vmem:[%s1061 + $0x4c] sm:$0xf]
        %v1082 = vld [vmem:[%s1061 + $0x50] sm:$0xf]
        %v1083 = vld [vmem:[%s1061 + $0x54] sm:$0xf]
        %v1084 = vld [vmem:[%s1061 + $0x58] sm:$0xf]
        %v1085 = vld [vmem:[%s1061 + $0x5c] sm:$0xf]
        %v1086 = vld [vmem:[%s1061 + $0x60] sm:$0xf]
        %v1087 = vld [vmem:[%s1061 + $0x64] sm:$0xf]
        %v1088 = vld [vmem:[%s1061 + $0x68] sm:$0xf]
        %v1089 = vld [vmem:[%s1061 + $0x6c] sm:$0xf]
        %v1090 = vld [vmem:[%s1061 + $0x70] sm:$0xf]
        %v1091 = vld [vmem:[%s1061 + $0x74] sm:$0xf]
        %v1092 = vld [vmem:[%s1061 + $0x78] sm:$0xf]
        %v1093 = vld [vmem:[%s1061 + $0x7c] sm:$0xf]
        %v1094 = vld [vmem:[%s1061 + $0x80] sm:$0xf]
        %v1095 = vld [vmem:[%s1061 + $0x84] sm:$0xf]
        %v1096 = vld [vmem:[%s1061 + $0x88] sm:$0xf]
        %v1097 = vld [vmem:[%s1061 + $0x8c] sm:$0xf]
        %v1098 = vld [vmem:[%s1061 + $0x90] sm:$0xf]
        %v1099 = vld [vmem:[%s1061 + $0x94] sm:$0xf]
        %v1100 = vld [vmem:[%s1061 + $0x98] sm:$0xf]
        %v1101 = vld [vmem:[%s1061 + $0x9c] sm:$0xf]
        %v1102 = vld [vmem:[%s1061 + $0xa0] sm:$0xf]
        %v1103 = vld [vmem:[%s1061 + $0xa4] sm:$0xf]
        %v1104 = vld [vmem:[%s1061 + $0xa8] sm:$0xf]
        %v1105 = vld [vmem:[%s1061 + $0xac] sm:$0xf]
        %v1106 = vld [vmem:[%s1061 + $0xb0] sm:$0xf]
        %v1107 = vld [vmem:[%s1061 + $0xb4] sm:$0xf]
        %v1108 = vld [vmem:[%s1061 + $0xb8] sm:$0xf]
        %v1109 = vld [vmem:[%s1061 + $0xbc] sm:$0xf]
        %v1174 = vunpack.c.l.b16 %v997
        %v1175 = vunpack.c.h.b16 %v997
        %v1176 = vunpack.c.l.b16 %v998
        %v1177 = vunpack.c.l.b16 %v999
        %v1178 = vunpack.c.h.b16 %v999
        %v1179 = vunpack.c.l.b16 %v1000
        %v1180 = vunpack.c.l.b16 %v1001
        %v1181 = vunpack.c.h.b16 %v1001
        %v1182 = vunpack.c.l.b16 %v1002
        %v1183 = vunpack.c.l.b16 %v1003
        %v1184 = vunpack.c.h.b16 %v1003
        %v1185 = vunpack.c.l.b16 %v1004
        %v1186 = vunpack.c.l.b16 %v1005
        %v1187 = vunpack.c.h.b16 %v1005
        %v1188 = vunpack.c.l.b16 %v1006
        %v1189 = vunpack.c.l.b16 %v1007
        %v1190 = vunpack.c.h.b16 %v1007
        %v1191 = vunpack.c.l.b16 %v1008
        %v1192 = vunpack.c.l.b16 %v1009
        %v1193 = vunpack.c.h.b16 %v1009
        %v1194 = vunpack.c.l.b16 %v1010
        %v1195 = vunpack.c.l.b16 %v1011
        %v1196 = vunpack.c.h.b16 %v1011
        %v1197 = vunpack.c.l.b16 %v1012
        %v1198 = vunpack.c.l.b16 %v1013
        %v1199 = vunpack.c.h.b16 %v1013
        %v1200 = vunpack.c.l.b16 %v1014
        %v1201 = vunpack.c.l.b16 %v1015
        %v1202 = vunpack.c.h.b16 %v1015
        %v1203 = vunpack.c.l.b16 %v1016
        %v1204 = vunpack.c.l.b16 %v1017
        %v1205 = vunpack.c.h.b16 %v1017
        %v1206 = vunpack.c.l.b16 %v1018
        %v1207 = vunpack.c.l.b16 %v1019
        %v1208 = vunpack.c.h.b16 %v1019
        %v1209 = vunpack.c.l.b16 %v1020
        %v1210 = vunpack.c.l.b16 %v1021
        %v1211 = vunpack.c.h.b16 %v1021
        %v1212 = vunpack.c.l.b16 %v1022
        %v1213 = vunpack.c.l.b16 %v1023
        %v1214 = vunpack.c.h.b16 %v1023
        %v1215 = vunpack.c.l.b16 %v1024
        %v1216 = vunpack.c.l.b16 %v1025
        %v1217 = vunpack.c.h.b16 %v1025
        %v1218 = vunpack.c.l.b16 %v1026
        %v1219 = vunpack.c.l.b16 %v1027
        %v1220 = vunpack.c.h.b16 %v1027
        %v1221 = vunpack.c.l.b16 %v1028
        %v1222 = vunpack.c.l.b16 %v1029
        %v1223 = vunpack.c.h.b16 %v1029
        %v1224 = vunpack.c.l.b16 %v1030
        %v1225 = vunpack.c.l.b16 %v1031
        %v1226 = vunpack.c.h.b16 %v1031
        %v1227 = vunpack.c.l.b16 %v1032
        %v1228 = vunpack.c.l.b16 %v1033
        %v1229 = vunpack.c.h.b16 %v1033
        %v1230 = vunpack.c.l.b16 %v1034
        %v1231 = vunpack.c.l.b16 %v1035
        %v1232 = vunpack.c.h.b16 %v1035
        %v1233 = vunpack.c.l.b16 %v1036
        %v1234 = vunpack.c.l.b16 %v1037
        %v1235 = vunpack.c.h.b16 %v1037
        %v1236 = vunpack.c.l.b16 %v1038
        %v1237 = vunpack.c.l.b16 %v1039
        %v1238 = vunpack.c.h.b16 %v1039
        %v1239 = vunpack.c.l.b16 %v1040
        %v1240 = vunpack.c.l.b16 %v1041
        %v1241 = vunpack.c.h.b16 %v1041
        %v1242 = vunpack.c.l.b16 %v1042
        %v1243 = vunpack.c.l.b16 %v1043
        %v1244 = vunpack.c.h.b16 %v1043
        %v1245 = vunpack.c.l.b16 %v1044
        %v1246 = vunpack.c.l.b16 %v1045
        %v1247 = vunpack.c.h.b16 %v1045
        %v1248 = vunpack.c.l.b16 %v1046
        %v1249 = vunpack.c.l.b16 %v1047
        %v1250 = vunpack.c.h.b16 %v1047
        %v1251 = vunpack.c.l.b16 %v1048
        %v1252 = vunpack.c.l.b16 %v1049
        %v1253 = vunpack.c.h.b16 %v1049
        %v1254 = vunpack.c.l.b16 %v1050
        %v1255 = vunpack.c.l.b16 %v1051
        %v1256 = vunpack.c.h.b16 %v1051
        %v1257 = vunpack.c.l.b16 %v1052
        %v1258 = vunpack.c.l.b16 %v1053
        %v1259 = vunpack.c.h.b16 %v1053
        %v1260 = vunpack.c.l.b16 %v1054
        %v1261 = vunpack.c.l.b16 %v1055
        %v1262 = vunpack.c.h.b16 %v1055
        %v1263 = vunpack.c.l.b16 %v1056
        %v1264 = vunpack.c.l.b16 %v1057
        %v1265 = vunpack.c.h.b16 %v1057
        %v1266 = vunpack.c.l.b16 %v1058
        %v1267 = vunpack.c.l.b16 %v1059
        %v1268 = vunpack.c.h.b16 %v1059
        %v1269 = vunpack.c.l.b16 %v1060
        %v1270 = vpack.c.b16 %v1177, %v1174
        %v1271 = vpack.c.b16 %v1178, %v1175
        %v1272 = vpack.c.b16 %v1179, %v1176
        %v1273 = vpack.c.b16 %v1183, %v1180
        %v1274 = vpack.c.b16 %v1184, %v1181
        %v1275 = vpack.c.b16 %v1185, %v1182
        %v1276 = vpack.c.b16 %v1189, %v1186
        %v1277 = vpack.c.b16 %v1190, %v1187
        %v1278 = vpack.c.b16 %v1191, %v1188
        %v1279 = vpack.c.b16 %v1195, %v1192
        %v1280 = vpack.c.b16 %v1196, %v1193
        %v1281 = vpack.c.b16 %v1197, %v1194
        %v1282 = vpack.c.b16 %v1201, %v1198
        %v1283 = vpack.c.b16 %v1202, %v1199
        %v1284 = vpack.c.b16 %v1203, %v1200
        %v1285 = vpack.c.b16 %v1207, %v1204
        %v1286 = vpack.c.b16 %v1208, %v1205
        %v1287 = vpack.c.b16 %v1209, %v1206
        %v1288 = vpack.c.b16 %v1213, %v1210
        %v1289 = vpack.c.b16 %v1214, %v1211
        %v1290 = vpack.c.b16 %v1215, %v1212
        %v1291 = vpack.c.b16 %v1219, %v1216
        %v1292 = vpack.c.b16 %v1220, %v1217
        %v1293 = vpack.c.b16 %v1221, %v1218
        %v1294 = vpack.c.b16 %v1225, %v1222
        %v1295 = vpack.c.b16 %v1226, %v1223
        %v1296 = vpack.c.b16 %v1227, %v1224
        %v1297 = vpack.c.b16 %v1231, %v1228
        %v1298 = vpack.c.b16 %v1232, %v1229
        %v1299 = vpack.c.b16 %v1233, %v1230
        %v1300 = vpack.c.b16 %v1237, %v1234
        %v1301 = vpack.c.b16 %v1238, %v1235
        %v1302 = vpack.c.b16 %v1239, %v1236
        %v1303 = vpack.c.b16 %v1243, %v1240
        %v1304 = vpack.c.b16 %v1244, %v1241
        %v1305 = vpack.c.b16 %v1245, %v1242
        %v1306 = vpack.c.b16 %v1249, %v1246
        %v1307 = vpack.c.b16 %v1250, %v1247
        %v1308 = vpack.c.b16 %v1251, %v1248
        %v1309 = vpack.c.b16 %v1255, %v1252
        %v1310 = vpack.c.b16 %v1256, %v1253
        %v1311 = vpack.c.b16 %v1257, %v1254
        %v1312 = vpack.c.b16 %v1261, %v1258
        %v1313 = vpack.c.b16 %v1262, %v1259
        %v1314 = vpack.c.b16 %v1263, %v1260
        %v1315 = vpack.c.b16 %v1267, %v1264
        %v1316 = vpack.c.b16 %v1268, %v1265
        %v1317 = vpack.c.b16 %v1269, %v1266
        %v1414 = vunpack.c.l.b16 %v1062
        %v1415 = vunpack.c.l.b16 %v1063
        %v1416 = vunpack.c.l.b16 %v1064
        %v1417 = vunpack.c.l.b16 %v1065
        %v1418 = vunpack.c.l.b16 %v1066
        %v1419 = vunpack.c.l.b16 %v1067
        %v1420 = vunpack.c.l.b16 %v1068
        %v1421 = vunpack.c.l.b16 %v1069
        %v1422 = vunpack.c.l.b16 %v1070
        %v1423 = vunpack.c.l.b16 %v1071
        %v1424 = vunpack.c.l.b16 %v1072
        %v1425 = vunpack.c.l.b16 %v1073
        %v1426 = vunpack.c.l.b16 %v1074
        %v1427 = vunpack.c.l.b16 %v1075
        %v1428 = vunpack.c.l.b16 %v1076
        %v1429 = vunpack.c.l.b16 %v1077
        %v1430 = vunpack.c.l.b16 %v1078
        %v1431 = vunpack.c.l.b16 %v1079
        %v1432 = vunpack.c.l.b16 %v1080
        %v1433 = vunpack.c.l.b16 %v1081
        %v1434 = vunpack.c.l.b16 %v1082
        %v1435 = vunpack.c.l.b16 %v1083
        %v1436 = vunpack.c.l.b16 %v1084
        %v1437 = vunpack.c.l.b16 %v1085
        %v1438 = vunpack.c.l.b16 %v1086
        %v1439 = vunpack.c.l.b16 %v1087
        %v1440 = vunpack.c.l.b16 %v1088
        %v1441 = vunpack.c.l.b16 %v1089
        %v1442 = vunpack.c.l.b16 %v1090
        %v1443 = vunpack.c.l.b16 %v1091
        %v1444 = vunpack.c.l.b16 %v1092
        %v1445 = vunpack.c.l.b16 %v1093
        %v1446 = vunpack.c.l.b16 %v1094
        %v1447 = vunpack.c.l.b16 %v1095
        %v1448 = vunpack.c.l.b16 %v1096
        %v1449 = vunpack.c.l.b16 %v1097
        %v1450 = vunpack.c.l.b16 %v1098
        %v1451 = vunpack.c.l.b16 %v1099
        %v1452 = vunpack.c.l.b16 %v1100
        %v1453 = vunpack.c.l.b16 %v1101
        %v1454 = vunpack.c.l.b16 %v1102
        %v1455 = vunpack.c.l.b16 %v1103
        %v1456 = vunpack.c.l.b16 %v1104
        %v1457 = vunpack.c.l.b16 %v1105
        %v1458 = vunpack.c.l.b16 %v1106
        %v1459 = vunpack.c.l.b16 %v1107
        %v1460 = vunpack.c.l.b16 %v1108
        %v1461 = vunpack.c.l.b16 %v1109
        %v1462 = vpack.c.b16 %v1415, %v1414
        %v1463 = vpack.c.b16 %v1417, %v1416
        %v1464 = vpack.c.b16 %v1419, %v1418
        %v1465 = vpack.c.b16 %v1421, %v1420
        %v1466 = vpack.c.b16 %v1423, %v1422
        %v1467 = vpack.c.b16 %v1425, %v1424
        %v1468 = vpack.c.b16 %v1427, %v1426
        %v1469 = vpack.c.b16 %v1429, %v1428
        %v1470 = vpack.c.b16 %v1431, %v1430
        %v1471 = vpack.c.b16 %v1433, %v1432
        %v1472 = vpack.c.b16 %v1435, %v1434
        %v1473 = vpack.c.b16 %v1437, %v1436
        %v1474 = vpack.c.b16 %v1439, %v1438
        %v1475 = vpack.c.b16 %v1441, %v1440
        %v1476 = vpack.c.b16 %v1443, %v1442
        %v1477 = vpack.c.b16 %v1445, %v1444
        %v1478 = vpack.c.b16 %v1447, %v1446
        %v1479 = vpack.c.b16 %v1449, %v1448
        %v1480 = vpack.c.b16 %v1451, %v1450
        %v1481 = vpack.c.b16 %v1453, %v1452
        %v1482 = vpack.c.b16 %v1455, %v1454
        %v1483 = vpack.c.b16 %v1457, %v1456
        %v1484 = vpack.c.b16 %v1459, %v1458
        %v1485 = vpack.c.b16 %v1461, %v1460
        %1510 = vmatpush.bf16.msra.mxu0 %v1469
        %1511 = vmatpush.bf16.msra.mxu0 %v1468
        %1512 = vmatpush.bf16.msra.mxu0 %v1467
        %1513 = vmatpush.bf16.msra.mxu0 %v1466
        %1514 = vmatpush.bf16.msra.mxu0 %v1465
        %1515 = vmatpush.bf16.msra.mxu0 %v1464
        %1516 = vmatpush.bf16.msra.mxu0 %v1463
        %1517 = vmatpush.bf16.msra.mxu0 %v1462
        %1518 = vmatmul.bf16.gmra.mxu0 %v1270
        %v1519 = vpop.f32.mrf.mxu0
        %v1520 = vadd.f32 0.0, %v1519
        %v1521 = vpop.f32.mrf.mxu0
        %v1522 = vadd.f32 0.0, %v1521
        %1523 = vmatmul.bf16.gmra.mxu0 %v1273
        %v1524 = vpop.f32.mrf.mxu0
        %v1525 = vadd.f32 0.0, %v1524
        %v1526 = vpop.f32.mrf.mxu0
        %v1527 = vadd.f32 0.0, %v1526
        %1528 = vmatmul.bf16.gmra.mxu0 %v1276
        %v1529 = vpop.f32.mrf.mxu0
        %v1530 = vadd.f32 0.0, %v1529
        %v1531 = vpop.f32.mrf.mxu0
        %v1532 = vadd.f32 0.0, %v1531
        %1533 = vmatmul.bf16.gmra.mxu0 %v1279
        %v1534 = vpop.f32.mrf.mxu0
        %v1535 = vadd.f32 0.0, %v1534
        %v1536 = vpop.f32.mrf.mxu0
        %v1537 = vadd.f32 0.0, %v1536
        %1538 = vmatmul.bf16.gmra.mxu0 %v1282
        %v1539 = vpop.f32.mrf.mxu0
        %v1540 = vadd.f32 0.0, %v1539
        %v1541 = vpop.f32.mrf.mxu0
        %v1542 = vadd.f32 0.0, %v1541
        %1543 = vmatmul.bf16.gmra.mxu0 %v1285
        %v1544 = vpop.f32.mrf.mxu0
        %v1545 = vadd.f32 0.0, %v1544
        %v1546 = vpop.f32.mrf.mxu0
        %v1547 = vadd.f32 0.0, %v1546
        %1548 = vmatmul.bf16.gmra.mxu0 %v1288
        %v1549 = vpop.f32.mrf.mxu0
        %v1550 = vadd.f32 0.0, %v1549
        %v1551 = vpop.f32.mrf.mxu0
        %v1552 = vadd.f32 0.0, %v1551
        %1553 = vmatmul.bf16.gmra.mxu0 %v1291
        %v1554 = vpop.f32.mrf.mxu0
        %v1555 = vadd.f32 0.0, %v1554
        %v1556 = vpop.f32.mrf.mxu0
        %v1557 = vadd.f32 0.0, %v1556
        %1558 = vmatmul.bf16.gmra.mxu0 %v1294
        %v1559 = vpop.f32.mrf.mxu0
        %v1560 = vadd.f32 0.0, %v1559
        %v1561 = vpop.f32.mrf.mxu0
        %v1562 = vadd.f32 0.0, %v1561
        %1563 = vmatmul.bf16.gmra.mxu0 %v1297
        %v1564 = vpop.f32.mrf.mxu0
        %v1565 = vadd.f32 0.0, %v1564
        %v1566 = vpop.f32.mrf.mxu0
        %v1567 = vadd.f32 0.0, %v1566
        %1568 = vmatmul.bf16.gmra.mxu0 %v1300
        %v1569 = vpop.f32.mrf.mxu0
        %v1570 = vadd.f32 0.0, %v1569
        %v1571 = vpop.f32.mrf.mxu0
        %v1572 = vadd.f32 0.0, %v1571
        %1573 = vmatmul.bf16.gmra.mxu0 %v1303
        %v1574 = vpop.f32.mrf.mxu0
        %v1575 = vadd.f32 0.0, %v1574
        %v1576 = vpop.f32.mrf.mxu0
        %v1577 = vadd.f32 0.0, %v1576
        %1578 = vmatmul.bf16.gmra.mxu0 %v1306
        %v1579 = vpop.f32.mrf.mxu0
        %v1580 = vadd.f32 0.0, %v1579
        %v1581 = vpop.f32.mrf.mxu0
        %v1582 = vadd.f32 0.0, %v1581
        %1583 = vmatmul.bf16.gmra.mxu0 %v1309
        %v1584 = vpop.f32.mrf.mxu0
        %v1585 = vadd.f32 0.0, %v1584
        %v1586 = vpop.f32.mrf.mxu0
        %v1587 = vadd.f32 0.0, %v1586
        %1588 = vmatmul.bf16.gmra.mxu0 %v1312
        %v1589 = vpop.f32.mrf.mxu0
        %v1590 = vadd.f32 0.0, %v1589
        %v1591 = vpop.f32.mrf.mxu0
        %v1592 = vadd.f32 0.0, %v1591
        %1593 = vmatmul.bf16.gmra.mxu0 %v1315
        %v1594 = vpop.f32.mrf.mxu0
        %v1595 = vadd.f32 0.0, %v1594
        %v1596 = vpop.f32.mrf.mxu0
        %v1597 = vadd.f32 0.0, %v1596
        %1598 = vdwg.mxu0
        %1599 = vmatpush.bf16.msra.mxu0 %v1477
        %1600 = vmatpush.bf16.msra.mxu0 %v1476
        %1601 = vmatpush.bf16.msra.mxu0 %v1475
        %1602 = vmatpush.bf16.msra.mxu0 %v1474
        %1603 = vmatpush.bf16.msra.mxu0 %v1473
        %1604 = vmatpush.bf16.msra.mxu0 %v1472
        %1605 = vmatpush.bf16.msra.mxu0 %v1471
        %1606 = vmatpush.bf16.msra.mxu0 %v1470
        %1607 = vmatmul.bf16.gmra.mxu0 %v1271
        %v1608 = vpop.f32.mrf.mxu0
        %v1609 = vadd.f32 %v1520, %v1608
        %v1610 = vpop.f32.mrf.mxu0
        %v1611 = vadd.f32 %v1522, %v1610
        %1612 = vmatmul.bf16.gmra.mxu0 %v1274
        %v1613 = vpop.f32.mrf.mxu0
        %v1614 = vadd.f32 %v1525, %v1613
        %v1615 = vpop.f32.mrf.mxu0
        %v1616 = vadd.f32 %v1527, %v1615
        %1617 = vmatmul.bf16.gmra.mxu0 %v1277
        %v1618 = vpop.f32.mrf.mxu0
        %v1619 = vadd.f32 %v1530, %v1618
        %v1620 = vpop.f32.mrf.mxu0
        %v1621 = vadd.f32 %v1532, %v1620
        %1622 = vmatmul.bf16.gmra.mxu0 %v1280
        %v1623 = vpop.f32.mrf.mxu0
        %v1624 = vadd.f32 %v1535, %v1623
        %v1625 = vpop.f32.mrf.mxu0
        %v1626 = vadd.f32 %v1537, %v1625
        %1627 = vmatmul.bf16.gmra.mxu0 %v1283
        %v1628 = vpop.f32.mrf.mxu0
        %v1629 = vadd.f32 %v1540, %v1628
        %v1630 = vpop.f32.mrf.mxu0
        %v1631 = vadd.f32 %v1542, %v1630
        %1632 = vmatmul.bf16.gmra.mxu0 %v1286
        %v1633 = vpop.f32.mrf.mxu0
        %v1634 = vadd.f32 %v1545, %v1633
        %v1635 = vpop.f32.mrf.mxu0
        %v1636 = vadd.f32 %v1547, %v1635
        %1637 = vmatmul.bf16.gmra.mxu0 %v1289
        %v1638 = vpop.f32.mrf.mxu0
        %v1639 = vadd.f32 %v1550, %v1638
        %v1640 = vpop.f32.mrf.mxu0
        %v1641 = vadd.f32 %v1552, %v1640
        %1642 = vmatmul.bf16.gmra.mxu0 %v1292
        %v1643 = vpop.f32.mrf.mxu0
        %v1644 = vadd.f32 %v1555, %v1643
        %v1645 = vpop.f32.mrf.mxu0
        %v1646 = vadd.f32 %v1557, %v1645
        %1647 = vmatmul.bf16.gmra.mxu0 %v1295
        %v1648 = vpop.f32.mrf.mxu0
        %v1649 = vadd.f32 %v1560, %v1648
        %v1650 = vpop.f32.mrf.mxu0
        %v1651 = vadd.f32 %v1562, %v1650
        %1652 = vmatmul.bf16.gmra.mxu0 %v1298
        %v1653 = vpop.f32.mrf.mxu0
        %v1654 = vadd.f32 %v1565, %v1653
        %v1655 = vpop.f32.mrf.mxu0
        %v1656 = vadd.f32 %v1567, %v1655
        %1657 = vmatmul.bf16.gmra.mxu0 %v1301
        %v1658 = vpop.f32.mrf.mxu0
        %v1659 = vadd.f32 %v1570, %v1658
        %v1660 = vpop.f32.mrf.mxu0
        %v1661 = vadd.f32 %v1572, %v1660
        %1662 = vmatmul.bf16.gmra.mxu0 %v1304
        %v1663 = vpop.f32.mrf.mxu0
        %v1664 = vadd.f32 %v1575, %v1663
        %v1665 = vpop.f32.mrf.mxu0
        %v1666 = vadd.f32 %v1577, %v1665
        %1667 = vmatmul.bf16.gmra.mxu0 %v1307
        %v1668 = vpop.f32.mrf.mxu0
        %v1669 = vadd.f32 %v1580, %v1668
        %v1670 = vpop.f32.mrf.mxu0
        %v1671 = vadd.f32 %v1582, %v1670
        %1672 = vmatmul.bf16.gmra.mxu0 %v1310
        %v1673 = vpop.f32.mrf.mxu0
        %v1674 = vadd.f32 %v1585, %v1673
        %v1675 = vpop.f32.mrf.mxu0
        %v1676 = vadd.f32 %v1587, %v1675
        %1677 = vmatmul.bf16.gmra.mxu0 %v1313
        %v1678 = vpop.f32.mrf.mxu0
        %v1679 = vadd.f32 %v1590, %v1678
        %v1680 = vpop.f32.mrf.mxu0
        %v1681 = vadd.f32 %v1592, %v1680
        %1682 = vmatmul.bf16.gmra.mxu0 %v1316
        %v1683 = vpop.f32.mrf.mxu0
        %v1684 = vadd.f32 %v1595, %v1683
        %v1685 = vpop.f32.mrf.mxu0
        %v1686 = vadd.f32 %v1597, %v1685
        %1687 = vdwg.mxu0
        %1688 = vmatpush.bf16.msra.mxu0 %v1485
        %1689 = vmatpush.bf16.msra.mxu0 %v1484
        %1690 = vmatpush.bf16.msra.mxu0 %v1483
        %1691 = vmatpush.bf16.msra.mxu0 %v1482
        %1692 = vmatpush.bf16.msra.mxu0 %v1481
        %1693 = vmatpush.bf16.msra.mxu0 %v1480
        %1694 = vmatpush.bf16.msra.mxu0 %v1479
        %1695 = vmatpush.bf16.msra.mxu0 %v1478
        %1696 = vmatmul.bf16.gmra.mxu0 %v1272
        %v1697 = vpop.f32.mrf.mxu0
        %v1698 = vadd.f32 %v1609, %v1697
        %v1699 = vpop.f32.mrf.mxu0
        %v1700 = vadd.f32 %v1611, %v1699
        %1701 = vmatmul.bf16.gmra.mxu0 %v1275
        %v1702 = vpop.f32.mrf.mxu0
        %v1703 = vadd.f32 %v1614, %v1702
        %v1704 = vpop.f32.mrf.mxu0
        %v1705 = vadd.f32 %v1616, %v1704
        %1706 = vmatmul.bf16.gmra.mxu0 %v1278
        %v1707 = vpop.f32.mrf.mxu0
        %v1708 = vadd.f32 %v1619, %v1707
        %v1709 = vpop.f32.mrf.mxu0
        %v1710 = vadd.f32 %v1621, %v1709
        %1711 = vmatmul.bf16.gmra.mxu0 %v1281
        %v1712 = vpop.f32.mrf.mxu0
        %v1713 = vadd.f32 %v1624, %v1712
        %v1714 = vpop.f32.mrf.mxu0
        %v1715 = vadd.f32 %v1626, %v1714
        %1716 = vmatmul.bf16.gmra.mxu0 %v1284
        %v1717 = vpop.f32.mrf.mxu0
        %v1718 = vadd.f32 %v1629, %v1717
        %v1719 = vpop.f32.mrf.mxu0
        %v1720 = vadd.f32 %v1631, %v1719
        %1721 = vmatmul.bf16.gmra.mxu0 %v1287
        %v1722 = vpop.f32.mrf.mxu0
        %v1723 = vadd.f32 %v1634, %v1722
        %v1724 = vpop.f32.mrf.mxu0
        %v1725 = vadd.f32 %v1636, %v1724
        %1726 = vmatmul.bf16.gmra.mxu0 %v1290
        %v1727 = vpop.f32.mrf.mxu0
        %v1728 = vadd.f32 %v1639, %v1727
        %v1729 = vpop.f32.mrf.mxu0
        %v1730 = vadd.f32 %v1641, %v1729
        %1731 = vmatmul.bf16.gmra.mxu0 %v1293
        %v1732 = vpop.f32.mrf.mxu0
        %v1733 = vadd.f32 %v1644, %v1732
        %v1734 = vpop.f32.mrf.mxu0
        %v1735 = vadd.f32 %v1646, %v1734
        %1736 = vmatmul.bf16.gmra.mxu0 %v1296
        %v1737 = vpop.f32.mrf.mxu0
        %v1738 = vadd.f32 %v1649, %v1737
        %v1739 = vpop.f32.mrf.mxu0
        %v1740 = vadd.f32 %v1651, %v1739
        %1741 = vmatmul.bf16.gmra.mxu0 %v1299
        %v1742 = vpop.f32.mrf.mxu0
        %v1743 = vadd.f32 %v1654, %v1742
        %v1744 = vpop.f32.mrf.mxu0
        %v1745 = vadd.f32 %v1656, %v1744
        %1746 = vmatmul.bf16.gmra.mxu0 %v1302
        %v1747 = vpop.f32.mrf.mxu0
        %v1748 = vadd.f32 %v1659, %v1747
        %v1749 = vpop.f32.mrf.mxu0
        %v1750 = vadd.f32 %v1661, %v1749
        %1751 = vmatmul.bf16.gmra.mxu0 %v1305
        %v1752 = vpop.f32.mrf.mxu0
        %v1753 = vadd.f32 %v1664, %v1752
        %v1754 = vpop.f32.mrf.mxu0
        %v1755 = vadd.f32 %v1666, %v1754
        %1756 = vmatmul.bf16.gmra.mxu0 %v1308
        %v1757 = vpop.f32.mrf.mxu0
        %v1758 = vadd.f32 %v1669, %v1757
        %v1759 = vpop.f32.mrf.mxu0
        %v1760 = vadd.f32 %v1671, %v1759
        %1761 = vmatmul.bf16.gmra.mxu0 %v1311
        %v1762 = vpop.f32.mrf.mxu0
        %v1763 = vadd.f32 %v1674, %v1762
        %v1764 = vpop.f32.mrf.mxu0
        %v1765 = vadd.f32 %v1676, %v1764
        %1766 = vmatmul.bf16.gmra.mxu0 %v1314
        %v1767 = vpop.f32.mrf.mxu0
        %v1768 = vadd.f32 %v1679, %v1767
        %v1769 = vpop.f32.mrf.mxu0
        %v1770 = vadd.f32 %v1681, %v1769
        %1771 = vmatmul.bf16.gmra.mxu0 %v1317
        %v1772 = vpop.f32.mrf.mxu0
        %v1773 = vadd.f32 %v1684, %v1772
        %v1774 = vpop.f32.mrf.mxu0
        %v1775 = vadd.f32 %v1686, %v1774
        %1776 = vdwg.mxu0
        %vm1777 = vcmask 523264
        %1778 = vst.msk [vmem:[#allocation3] sm:$0xff] %vm1777, %v1698
        %1779 = vst.msk [vmem:[#allocation3 + $0x8] sm:$0xff] %vm1777, %v1700
        %1780 = vst.msk [vmem:[#allocation3 + $0x10] sm:$0xff] %vm1777, %v1703
        %1781 = vst.msk [vmem:[#allocation3 + $0x18] sm:$0xff] %vm1777, %v1705
        %1782 = vst.msk [vmem:[#allocation3 + $0x20] sm:$0xff] %vm1777, %v1708
        %1783 = vst.msk [vmem:[#allocation3 + $0x28] sm:$0xff] %vm1777, %v1710
        %1784 = vst.msk [vmem:[#allocation3 + $0x30] sm:$0xff] %vm1777, %v1713
        %1785 = vst.msk [vmem:[#allocation3 + $0x38] sm:$0xff] %vm1777, %v1715
        %1786 = vst.msk [vmem:[#allocation3 + $0x40] sm:$0xff] %vm1777, %v1718
        %1787 = vst.msk [vmem:[#allocation3 + $0x48] sm:$0xff] %vm1777, %v1720
        %1788 = vst.msk [vmem:[#allocation3 + $0x50] sm:$0xff] %vm1777, %v1723
        %1789 = vst.msk [vmem:[#allocation3 + $0x58] sm:$0xff] %vm1777, %v1725
        %1790 = vst.msk [vmem:[#allocation3 + $0x60] sm:$0xff] %vm1777, %v1728
        %1791 = vst.msk [vmem:[#allocation3 + $0x68] sm:$0xff] %vm1777, %v1730
        %1792 = vst.msk [vmem:[#allocation3 + $0x70] sm:$0xff] %vm1777, %v1733
        %1793 = vst.msk [vmem:[#allocation3 + $0x78] sm:$0xff] %vm1777, %v1735
        %1794 = vst.msk [vmem:[#allocation3 + $0x80] sm:$0xff] %vm1777, %v1738
        %1795 = vst.msk [vmem:[#allocation3 + $0x88] sm:$0xff] %vm1777, %v1740
        %1796 = vst.msk [vmem:[#allocation3 + $0x90] sm:$0xff] %vm1777, %v1743
        %1797 = vst.msk [vmem:[#allocation3 + $0x98] sm:$0xff] %vm1777, %v1745
        %1798 = vst.msk [vmem:[#allocation3 + $0xa0] sm:$0xff] %vm1777, %v1748
        %1799 = vst.msk [vmem:[#allocation3 + $0xa8] sm:$0xff] %vm1777, %v1750
        %1800 = vst.msk [vmem:[#allocation3 + $0xb0] sm:$0xff] %vm1777, %v1753
        %1801 = vst.msk [vmem:[#allocation3 + $0xb8] sm:$0xff] %vm1777, %v1755
        %1802 = vst.msk [vmem:[#allocation3 + $0xc0] sm:$0xff] %vm1777, %v1758
        %1803 = vst.msk [vmem:[#allocation3 + $0xc8] sm:$0xff] %vm1777, %v1760
        %1804 = vst.msk [vmem:[#allocation3 + $0xd0] sm:$0xff] %vm1777, %v1763
        %1805 = vst.msk [vmem:[#allocation3 + $0xd8] sm:$0xff] %vm1777, %v1765
        %1806 = vst.msk [vmem:[#allocation3 + $0xe0] sm:$0xff] %vm1777, %v1768
        %1807 = vst.msk [vmem:[#allocation3 + $0xe8] sm:$0xff] %vm1777, %v1770
        %1808 = vst.msk [vmem:[#allocation3 + $0xf0] sm:$0xff] %vm1777, %v1773
        %1809 = vst.msk [vmem:[#allocation3 + $0xf8] sm:$0xff] %vm1777, %v1775
        %v1810 = vld [vmem:[#allocation3 + $0x10] sm:$0xff]
        %v1811 = vld [vmem:[#allocation3 + $0x18] sm:$0xff]
        %v1812 = vld [vmem:[#allocation3 + $0x20] sm:$0xff]
        %v1813 = vld [vmem:[#allocation3 + $0x28] sm:$0xff]
        %v1814 = vld [vmem:[#allocation3 + $0x30] sm:$0xff]
        %v1815 = vld [vmem:[#allocation3 + $0x38] sm:$0xff]
        %v1816 = vld [vmem:[#allocation3 + $0x40] sm:$0xff]
        %v1817 = vld [vmem:[#allocation3 + $0x48] sm:$0xff]
        %v1818 = vld [vmem:[#allocation3 + $0x50] sm:$0xff]
        %v1819 = vld [vmem:[#allocation3 + $0x58] sm:$0xff]
        %v1820 = vld [vmem:[#allocation3 + $0x60] sm:$0xff]
        %v1821 = vld [vmem:[#allocation3 + $0x68] sm:$0xff]
        %v1822 = vld [vmem:[#allocation3 + $0x70] sm:$0xff]
        %v1823 = vld [vmem:[#allocation3 + $0x78] sm:$0xff]
        %v1824 = vld [vmem:[#allocation3 + $0x80] sm:$0xff]
        %v1825 = vld [vmem:[#allocation3 + $0x88] sm:$0xff]
        %v1826 = vld [vmem:[#allocation3 + $0x90] sm:$0xff]
        %v1827 = vld [vmem:[#allocation3 + $0x98] sm:$0xff]
        %v1828 = vld [vmem:[#allocation3 + $0xa0] sm:$0xff]
        %v1829 = vld [vmem:[#allocation3 + $0xa8] sm:$0xff]
        %v1830 = vld [vmem:[#allocation3 + $0xb0] sm:$0xff]
        %v1831 = vld [vmem:[#allocation3 + $0xb8] sm:$0xff]
        %v1832 = vld [vmem:[#allocation3 + $0xc0] sm:$0xff]
        %v1833 = vld [vmem:[#allocation3 + $0xc8] sm:$0xff]
        %v1834 = vld [vmem:[#allocation3 + $0xd0] sm:$0xff]
        %v1835 = vld [vmem:[#allocation3 + $0xd8] sm:$0xff]
        %v1836 = vld [vmem:[#allocation3 + $0xe0] sm:$0xff]
        %v1837 = vld [vmem:[#allocation3 + $0xe8] sm:$0xff]
        %v1838 = vld [vmem:[#allocation3 + $0xf0] sm:$0xff]
        %v1839 = vld [vmem:[#allocation3 + $0xf8] sm:$0xff]
        %v1840 = vld [vmem:[#allocation2] sm:$0xff]
        %v1841 = vld [vmem:[#allocation2 + $0x8] sm:$0xf]
        %v1842 = vld [vmem:[#allocation2 + $0xc] sm:$0xff]
        %v1843 = vld [vmem:[#allocation2 + $0x14] sm:$0xf]
        %v1844 = vld [vmem:[#allocation2 + $0x18] sm:$0xff]
        %v1845 = vld [vmem:[#allocation2 + $0x20] sm:$0xf]
        %v1846 = vld [vmem:[#allocation2 + $0x24] sm:$0xff]
        %v1847 = vld [vmem:[#allocation2 + $0x2c] sm:$0xf]
        %v1848 = vld [vmem:[#allocation2 + $0x30] sm:$0xff]
        %v1849 = vld [vmem:[#allocation2 + $0x38] sm:$0xf]
        %v1850 = vld [vmem:[#allocation2 + $0x3c] sm:$0xff]
        %v1851 = vld [vmem:[#allocation2 + $0x44] sm:$0xf]
        %v1852 = vld [vmem:[#allocation2 + $0x48] sm:$0xff]
        %v1853 = vld [vmem:[#allocation2 + $0x50] sm:$0xf]
        %v1854 = vld [vmem:[#allocation2 + $0x54] sm:$0xff]
        %v1855 = vld [vmem:[#allocation2 + $0x5c] sm:$0xf]
        %v1856 = vld [vmem:[#allocation2 + $0x60] sm:$0xff]
        %v1857 = vld [vmem:[#allocation2 + $0x68] sm:$0xf]
        %v1858 = vld [vmem:[#allocation2 + $0x6c] sm:$0xff]
        %v1859 = vld [vmem:[#allocation2 + $0x74] sm:$0xf]
        %v1860 = vld [vmem:[#allocation2 + $0x78] sm:$0xff]
        %v1861 = vld [vmem:[#allocation2 + $0x80] sm:$0xf]
        %v1862 = vld [vmem:[#allocation2 + $0x84] sm:$0xff]
        %v1863 = vld [vmem:[#allocation2 + $0x8c] sm:$0xf]
        %v1864 = vld [vmem:[#allocation2 + $0x90] sm:$0xff]
        %v1865 = vld [vmem:[#allocation2 + $0x98] sm:$0xf]
        %v1866 = vld [vmem:[#allocation2 + $0x9c] sm:$0xff]
        %v1867 = vld [vmem:[#allocation2 + $0xa4] sm:$0xf]
        %v1868 = vld [vmem:[#allocation2 + $0xa8] sm:$0xff]
        %v1869 = vld [vmem:[#allocation2 + $0xb0] sm:$0xf]
        %v1870 = vld [vmem:[#allocation2 + $0xb4] sm:$0xff]
        %v1871 = vld [vmem:[#allocation2 + $0xbc] sm:$0xf]
        %v1872 = vld [vmem:[#allocation2 + $0xc0] sm:$0xff]
        %v1873 = vld [vmem:[#allocation2 + $0xc8] sm:$0xf]
        %v1874 = vld [vmem:[#allocation2 + $0xcc] sm:$0xff]
        %v1875 = vld [vmem:[#allocation2 + $0xd4] sm:$0xf]
        %v1876 = vld [vmem:[#allocation2 + $0xd8] sm:$0xff]
        %v1877 = vld [vmem:[#allocation2 + $0xe0] sm:$0xf]
        %v1878 = vld [vmem:[#allocation2 + $0xe4] sm:$0xff]
        %v1879 = vld [vmem:[#allocation2 + $0xec] sm:$0xf]
        %v1880 = vld [vmem:[#allocation2 + $0xf0] sm:$0xff]
        %v1881 = vld [vmem:[#allocation2 + $0xf8] sm:$0xf]
        %v1882 = vld [vmem:[#allocation2 + $0xfc] sm:$0xff]
        %v1883 = vld [vmem:[#allocation2 + $0x104] sm:$0xf]
        %v1884 = vld [vmem:[#allocation2 + $0x108] sm:$0xff]
        %v1885 = vld [vmem:[#allocation2 + $0x110] sm:$0xf]
        %v1886 = vld [vmem:[#allocation2 + $0x114] sm:$0xff]
        %v1887 = vld [vmem:[#allocation2 + $0x11c] sm:$0xf]
        %v1888 = vld [vmem:[#allocation2 + $0x120] sm:$0xff]
        %v1889 = vld [vmem:[#allocation2 + $0x128] sm:$0xf]
        %v1890 = vld [vmem:[#allocation2 + $0x12c] sm:$0xff]
        %v1891 = vld [vmem:[#allocation2 + $0x134] sm:$0xf]
        %v1892 = vld [vmem:[#allocation2 + $0x138] sm:$0xff]
        %v1893 = vld [vmem:[#allocation2 + $0x140] sm:$0xf]
        %v1894 = vld [vmem:[#allocation2 + $0x144] sm:$0xff]
        %v1895 = vld [vmem:[#allocation2 + $0x14c] sm:$0xf]
        %v1896 = vld [vmem:[#allocation2 + $0x150] sm:$0xff]
        %v1897 = vld [vmem:[#allocation2 + $0x158] sm:$0xf]
        %v1898 = vld [vmem:[#allocation2 + $0x15c] sm:$0xff]
        %v1899 = vld [vmem:[#allocation2 + $0x164] sm:$0xf]
        %v1900 = vld [vmem:[%s215] sm:$0xf]
        %v1901 = vld [vmem:[%s215 + $0x4] sm:$0xf]
        %v1902 = vld [vmem:[%s215 + $0x8] sm:$0xf]
        %v1903 = vld [vmem:[%s215 + $0xc] sm:$0xf]
        %v1904 = vld [vmem:[%s215 + $0x10] sm:$0xf]
        %v1905 = vld [vmem:[%s215 + $0x14] sm:$0xf]
        %v1906 = vld [vmem:[%s215 + $0x18] sm:$0xf]
        %v1907 = vld [vmem:[%s215 + $0x1c] sm:$0xf]
        %v1908 = vld [vmem:[%s215 + $0x20] sm:$0xf]
        %v1909 = vld [vmem:[%s215 + $0x24] sm:$0xf]
        %v1910 = vld [vmem:[%s215 + $0x28] sm:$0xf]
        %v1911 = vld [vmem:[%s215 + $0x2c] sm:$0xf]
        %v1912 = vld [vmem:[%s215 + $0x30] sm:$0xf]
        %v1913 = vld [vmem:[%s215 + $0x34] sm:$0xf]
        %v1914 = vld [vmem:[%s215 + $0x38] sm:$0xf]
        %v1915 = vld [vmem:[%s215 + $0x3c] sm:$0xf]
        %v1916 = vld [vmem:[%s215 + $0x40] sm:$0xf]
        %v1917 = vld [vmem:[%s215 + $0x44] sm:$0xf]
        %v1918 = vld [vmem:[%s215 + $0x48] sm:$0xf]
        %v1919 = vld [vmem:[%s215 + $0x4c] sm:$0xf]
        %v1920 = vld [vmem:[%s215 + $0x50] sm:$0xf]
        %v1921 = vld [vmem:[%s215 + $0x54] sm:$0xf]
        %v1922 = vld [vmem:[%s215 + $0x58] sm:$0xf]
        %v1923 = vld [vmem:[%s215 + $0x5c] sm:$0xf]
        %v1924 = vld [vmem:[%s215 + $0x60] sm:$0xf]
        %v1925 = vld [vmem:[%s215 + $0x64] sm:$0xf]
        %v1926 = vld [vmem:[%s215 + $0x68] sm:$0xf]
        %v1927 = vld [vmem:[%s215 + $0x6c] sm:$0xf]
        %v1928 = vld [vmem:[%s215 + $0x70] sm:$0xf]
        %v1929 = vld [vmem:[%s215 + $0x74] sm:$0xf]
        %v1930 = vld [vmem:[%s215 + $0x78] sm:$0xf]
        %v1931 = vld [vmem:[%s215 + $0x7c] sm:$0xf]
        %v1932 = vld [vmem:[%s215 + $0x80] sm:$0xf]
        %v1933 = vld [vmem:[%s215 + $0x84] sm:$0xf]
        %v1934 = vld [vmem:[%s215 + $0x88] sm:$0xf]
        %v1935 = vld [vmem:[%s215 + $0x8c] sm:$0xf]
        %v1936 = vld [vmem:[%s215 + $0x90] sm:$0xf]
        %v1937 = vld [vmem:[%s215 + $0x94] sm:$0xf]
        %v1938 = vld [vmem:[%s215 + $0x98] sm:$0xf]
        %v1939 = vld [vmem:[%s215 + $0x9c] sm:$0xf]
        %v1940 = vld [vmem:[%s215 + $0xa0] sm:$0xf]
        %v1941 = vld [vmem:[%s215 + $0xa4] sm:$0xf]
        %v1942 = vld [vmem:[%s215 + $0xa8] sm:$0xf]
        %v1943 = vld [vmem:[%s215 + $0xac] sm:$0xf]
        %v1944 = vld [vmem:[%s215 + $0xb0] sm:$0xf]
        %v1945 = vld [vmem:[%s215 + $0xb4] sm:$0xf]
        %v1946 = vld [vmem:[%s215 + $0xb8] sm:$0xf]
        %v1947 = vld [vmem:[%s215 + $0xbc] sm:$0xf]
        %v2008 = vunpack.c.l.b16 %v1840
        %v2009 = vunpack.c.h.b16 %v1840
        %v2010 = vunpack.c.l.b16 %v1841
        %v2011 = vunpack.c.l.b16 %v1842
        %v2012 = vunpack.c.h.b16 %v1842
        %v2013 = vunpack.c.l.b16 %v1843
        %v2014 = vunpack.c.l.b16 %v1844
        %v2015 = vunpack.c.h.b16 %v1844
        %v2016 = vunpack.c.l.b16 %v1845
        %v2017 = vunpack.c.l.b16 %v1846
        %v2018 = vunpack.c.h.b16 %v1846
        %v2019 = vunpack.c.l.b16 %v1847
        %v2020 = vunpack.c.l.b16 %v1848
        %v2021 = vunpack.c.h.b16 %v1848
        %v2022 = vunpack.c.l.b16 %v1849
        %v2023 = vunpack.c.l.b16 %v1850
        %v2024 = vunpack.c.h.b16 %v1850
        %v2025 = vunpack.c.l.b16 %v1851
        %v2026 = vunpack.c.l.b16 %v1852
        %v2027 = vunpack.c.h.b16 %v1852
        %v2028 = vunpack.c.l.b16 %v1853
        %v2029 = vunpack.c.l.b16 %v1854
        %v2030 = vunpack.c.h.b16 %v1854
        %v2031 = vunpack.c.l.b16 %v1855
        %v2032 = vunpack.c.l.b16 %v1856
        %v2033 = vunpack.c.h.b16 %v1856
        %v2034 = vunpack.c.l.b16 %v1857
        %v2035 = vunpack.c.l.b16 %v1858
        %v2036 = vunpack.c.h.b16 %v1858
        %v2037 = vunpack.c.l.b16 %v1859
        %v2038 = vunpack.c.l.b16 %v1860
        %v2039 = vunpack.c.h.b16 %v1860
        %v2040 = vunpack.c.l.b16 %v1861
        %v2041 = vunpack.c.l.b16 %v1862
        %v2042 = vunpack.c.h.b16 %v1862
        %v2043 = vunpack.c.l.b16 %v1863
        %v2044 = vunpack.c.l.b16 %v1864
        %v2045 = vunpack.c.h.b16 %v1864
        %v2046 = vunpack.c.l.b16 %v1865
        %v2047 = vunpack.c.l.b16 %v1866
        %v2048 = vunpack.c.h.b16 %v1866
        %v2049 = vunpack.c.l.b16 %v1867
        %v2050 = vunpack.c.l.b16 %v1868
        %v2051 = vunpack.c.h.b16 %v1868
        %v2052 = vunpack.c.l.b16 %v1869
        %v2053 = vunpack.c.l.b16 %v1870
        %v2054 = vunpack.c.h.b16 %v1870
        %v2055 = vunpack.c.l.b16 %v1871
        %v2056 = vunpack.c.l.b16 %v1872
        %v2057 = vunpack.c.h.b16 %v1872
        %v2058 = vunpack.c.l.b16 %v1873
        %v2059 = vunpack.c.l.b16 %v1874
        %v2060 = vunpack.c.h.b16 %v1874
        %v2061 = vunpack.c.l.b16 %v1875
        %v2062 = vunpack.c.l.b16 %v1876
        %v2063 = vunpack.c.h.b16 %v1876
        %v2064 = vunpack.c.l.b16 %v1877
        %v2065 = vunpack.c.l.b16 %v1878
        %v2066 = vunpack.c.h.b16 %v1878
        %v2067 = vunpack.c.l.b16 %v1879
        %v2068 = vunpack.c.l.b16 %v1880
        %v2069 = vunpack.c.h.b16 %v1880
        %v2070 = vunpack.c.l.b16 %v1881
        %v2071 = vunpack.c.l.b16 %v1882
        %v2072 = vunpack.c.h.b16 %v1882
        %v2073 = vunpack.c.l.b16 %v1883
        %v2074 = vunpack.c.l.b16 %v1884
        %v2075 = vunpack.c.h.b16 %v1884
        %v2076 = vunpack.c.l.b16 %v1885
        %v2077 = vunpack.c.l.b16 %v1886
        %v2078 = vunpack.c.h.b16 %v1886
        %v2079 = vunpack.c.l.b16 %v1887
        %v2080 = vunpack.c.l.b16 %v1888
        %v2081 = vunpack.c.h.b16 %v1888
        %v2082 = vunpack.c.l.b16 %v1889
        %v2083 = vunpack.c.l.b16 %v1890
        %v2084 = vunpack.c.h.b16 %v1890
        %v2085 = vunpack.c.l.b16 %v1891
        %v2086 = vunpack.c.l.b16 %v1892
        %v2087 = vunpack.c.h.b16 %v1892
        %v2088 = vunpack.c.l.b16 %v1893
        %v2089 = vunpack.c.l.b16 %v1894
        %v2090 = vunpack.c.h.b16 %v1894
        %v2091 = vunpack.c.l.b16 %v1895
        %v2092 = vunpack.c.l.b16 %v1896
        %v2093 = vunpack.c.h.b16 %v1896
        %v2094 = vunpack.c.l.b16 %v1897
        %v2095 = vunpack.c.l.b16 %v1898
        %v2096 = vunpack.c.h.b16 %v1898
        %v2097 = vunpack.c.l.b16 %v1899
        %v2098 = vpack.c.b16 %v2011, %v2008
        %v2099 = vpack.c.b16 %v2012, %v2009
        %v2100 = vpack.c.b16 %v2013, %v2010
        %v2101 = vpack.c.b16 %v2017, %v2014
        %v2102 = vpack.c.b16 %v2018, %v2015
        %v2103 = vpack.c.b16 %v2019, %v2016
        %v2104 = vpack.c.b16 %v2023, %v2020
        %v2105 = vpack.c.b16 %v2024, %v2021
        %v2106 = vpack.c.b16 %v2025, %v2022
        %v2107 = vpack.c.b16 %v2029, %v2026
        %v2108 = vpack.c.b16 %v2030, %v2027
        %v2109 = vpack.c.b16 %v2031, %v2028
        %v2110 = vpack.c.b16 %v2035, %v2032
        %v2111 = vpack.c.b16 %v2036, %v2033
        %v2112 = vpack.c.b16 %v2037, %v2034
        %v2113 = vpack.c.b16 %v2041, %v2038
        %v2114 = vpack.c.b16 %v2042, %v2039
        %v2115 = vpack.c.b16 %v2043, %v2040
        %v2116 = vpack.c.b16 %v2047, %v2044
        %v2117 = vpack.c.b16 %v2048, %v2045
        %v2118 = vpack.c.b16 %v2049, %v2046
        %v2119 = vpack.c.b16 %v2053, %v2050
        %v2120 = vpack.c.b16 %v2054, %v2051
        %v2121 = vpack.c.b16 %v2055, %v2052
        %v2122 = vpack.c.b16 %v2059, %v2056
        %v2123 = vpack.c.b16 %v2060, %v2057
        %v2124 = vpack.c.b16 %v2061, %v2058
        %v2125 = vpack.c.b16 %v2065, %v2062
        %v2126 = vpack.c.b16 %v2066, %v2063
        %v2127 = vpack.c.b16 %v2067, %v2064
        %v2128 = vpack.c.b16 %v2071, %v2068
        %v2129 = vpack.c.b16 %v2072, %v2069
        %v2130 = vpack.c.b16 %v2073, %v2070
        %v2131 = vpack.c.b16 %v2077, %v2074
        %v2132 = vpack.c.b16 %v2078, %v2075
        %v2133 = vpack.c.b16 %v2079, %v2076
        %v2134 = vpack.c.b16 %v2083, %v2080
        %v2135 = vpack.c.b16 %v2084, %v2081
        %v2136 = vpack.c.b16 %v2085, %v2082
        %v2137 = vpack.c.b16 %v2089, %v2086
        %v2138 = vpack.c.b16 %v2090, %v2087
        %v2139 = vpack.c.b16 %v2091, %v2088
        %v2140 = vpack.c.b16 %v2095, %v2092
        %v2141 = vpack.c.b16 %v2096, %v2093
        %v2142 = vpack.c.b16 %v2097, %v2094
        %v2236 = vunpack.c.l.b16 %v1900
        %v2237 = vunpack.c.l.b16 %v1901
        %v2238 = vunpack.c.l.b16 %v1902
        %v2239 = vunpack.c.l.b16 %v1903
        %v2240 = vunpack.c.l.b16 %v1904
        %v2241 = vunpack.c.l.b16 %v1905
        %v2242 = vunpack.c.l.b16 %v1906
        %v2243 = vunpack.c.l.b16 %v1907
        %v2244 = vunpack.c.l.b16 %v1908
        %v2245 = vunpack.c.l.b16 %v1909
        %v2246 = vunpack.c.l.b16 %v1910
        %v2247 = vunpack.c.l.b16 %v1911
        %v2248 = vunpack.c.l.b16 %v1912
        %v2249 = vunpack.c.l.b16 %v1913
        %v2250 = vunpack.c.l.b16 %v1914
        %v2251 = vunpack.c.l.b16 %v1915
        %v2252 = vunpack.c.l.b16 %v1916
        %v2253 = vunpack.c.l.b16 %v1917
        %v2254 = vunpack.c.l.b16 %v1918
        %v2255 = vunpack.c.l.b16 %v1919
        %v2256 = vunpack.c.l.b16 %v1920
        %v2257 = vunpack.c.l.b16 %v1921
        %v2258 = vunpack.c.l.b16 %v1922
        %v2259 = vunpack.c.l.b16 %v1923
        %v2260 = vunpack.c.l.b16 %v1924
        %v2261 = vunpack.c.l.b16 %v1925
        %v2262 = vunpack.c.l.b16 %v1926
        %v2263 = vunpack.c.l.b16 %v1927
        %v2264 = vunpack.c.l.b16 %v1928
        %v2265 = vunpack.c.l.b16 %v1929
        %v2266 = vunpack.c.l.b16 %v1930
        %v2267 = vunpack.c.l.b16 %v1931
        %v2268 = vunpack.c.l.b16 %v1932
        %v2269 = vunpack.c.l.b16 %v1933
        %v2270 = vunpack.c.l.b16 %v1934
        %v2271 = vunpack.c.l.b16 %v1935
        %v2272 = vunpack.c.l.b16 %v1936
        %v2273 = vunpack.c.l.b16 %v1937
        %v2274 = vunpack.c.l.b16 %v1938
        %v2275 = vunpack.c.l.b16 %v1939
        %v2276 = vunpack.c.l.b16 %v1940
        %v2277 = vunpack.c.l.b16 %v1941
        %v2278 = vunpack.c.l.b16 %v1942
        %v2279 = vunpack.c.l.b16 %v1943
        %v2280 = vunpack.c.l.b16 %v1944
        %v2281 = vunpack.c.l.b16 %v1945
        %v2282 = vunpack.c.l.b16 %v1946
        %v2283 = vunpack.c.l.b16 %v1947
        %v2284 = vpack.c.b16 %v2237, %v2236
        %v2285 = vpack.c.b16 %v2239, %v2238
        %v2286 = vpack.c.b16 %v2241, %v2240
        %v2287 = vpack.c.b16 %v2243, %v2242
        %v2288 = vpack.c.b16 %v2245, %v2244
        %v2289 = vpack.c.b16 %v2247, %v2246
        %v2290 = vpack.c.b16 %v2249, %v2248
        %v2291 = vpack.c.b16 %v2251, %v2250
        %v2292 = vpack.c.b16 %v2253, %v2252
        %v2293 = vpack.c.b16 %v2255, %v2254
        %v2294 = vpack.c.b16 %v2257, %v2256
        %v2295 = vpack.c.b16 %v2259, %v2258
        %v2296 = vpack.c.b16 %v2261, %v2260
        %v2297 = vpack.c.b16 %v2263, %v2262
        %v2298 = vpack.c.b16 %v2265, %v2264
        %v2299 = vpack.c.b16 %v2267, %v2266
        %v2300 = vpack.c.b16 %v2269, %v2268
        %v2301 = vpack.c.b16 %v2271, %v2270
        %v2302 = vpack.c.b16 %v2273, %v2272
        %v2303 = vpack.c.b16 %v2275, %v2274
        %v2304 = vpack.c.b16 %v2277, %v2276
        %v2305 = vpack.c.b16 %v2279, %v2278
        %v2306 = vpack.c.b16 %v2281, %v2280
        %v2307 = vpack.c.b16 %v2283, %v2282
        %2332 = vmatpush.bf16.msra.mxu0 %v2291
        %2333 = vmatpush.bf16.msra.mxu0 %v2290
        %2334 = vmatpush.bf16.msra.mxu0 %v2289
        %2335 = vmatpush.bf16.msra.mxu0 %v2288
        %2336 = vmatpush.bf16.msra.mxu0 %v2287
        %2337 = vmatpush.bf16.msra.mxu0 %v2286
        %2338 = vmatpush.bf16.msra.mxu0 %v2285
        %2339 = vmatpush.bf16.msra.mxu0 %v2284
        %2340 = vmatmul.bf16.gmra.mxu0 %v2098
        %v2341 = vpop.f32.mrf.mxu0
        %v2342 = vadd.f32 0.0, %v2341
        %v2343 = vpop.f32.mrf.mxu0
        %v2344 = vadd.f32 0.0, %v2343
        %2345 = vmatmul.bf16.gmra.mxu0 %v2101
        %v2346 = vpop.f32.mrf.mxu0
        %v2347 = vadd.f32 0.0, %v2346
        %v2348 = vpop.f32.mrf.mxu0
        %v2349 = vadd.f32 0.0, %v2348
        %2350 = vmatmul.bf16.gmra.mxu0 %v2104
        %v2351 = vpop.f32.mrf.mxu0
        %v2352 = vadd.f32 0.0, %v2351
        %v2353 = vpop.f32.mrf.mxu0
        %v2354 = vadd.f32 0.0, %v2353
        %2355 = vmatmul.bf16.gmra.mxu0 %v2107
        %v2356 = vpop.f32.mrf.mxu0
        %v2357 = vadd.f32 0.0, %v2356
        %v2358 = vpop.f32.mrf.mxu0
        %v2359 = vadd.f32 0.0, %v2358
        %2360 = vmatmul.bf16.gmra.mxu0 %v2110
        %v2361 = vpop.f32.mrf.mxu0
        %v2362 = vadd.f32 0.0, %v2361
        %v2363 = vpop.f32.mrf.mxu0
        %v2364 = vadd.f32 0.0, %v2363
        %2365 = vmatmul.bf16.gmra.mxu0 %v2113
        %v2366 = vpop.f32.mrf.mxu0
        %v2367 = vadd.f32 0.0, %v2366
        %v2368 = vpop.f32.mrf.mxu0
        %v2369 = vadd.f32 0.0, %v2368
        %2370 = vmatmul.bf16.gmra.mxu0 %v2116
        %v2371 = vpop.f32.mrf.mxu0
        %v2372 = vadd.f32 0.0, %v2371
        %v2373 = vpop.f32.mrf.mxu0
        %v2374 = vadd.f32 0.0, %v2373
        %2375 = vmatmul.bf16.gmra.mxu0 %v2119
        %v2376 = vpop.f32.mrf.mxu0
        %v2377 = vadd.f32 0.0, %v2376
        %v2378 = vpop.f32.mrf.mxu0
        %v2379 = vadd.f32 0.0, %v2378
        %2380 = vmatmul.bf16.gmra.mxu0 %v2122
        %v2381 = vpop.f32.mrf.mxu0
        %v2382 = vadd.f32 0.0, %v2381
        %v2383 = vpop.f32.mrf.mxu0
        %v2384 = vadd.f32 0.0, %v2383
        %2385 = vmatmul.bf16.gmra.mxu0 %v2125
        %v2386 = vpop.f32.mrf.mxu0
        %v2387 = vadd.f32 0.0, %v2386
        %v2388 = vpop.f32.mrf.mxu0
        %v2389 = vadd.f32 0.0, %v2388
        %2390 = vmatmul.bf16.gmra.mxu0 %v2128
        %v2391 = vpop.f32.mrf.mxu0
        %v2392 = vadd.f32 0.0, %v2391
        %v2393 = vpop.f32.mrf.mxu0
        %v2394 = vadd.f32 0.0, %v2393
        %2395 = vmatmul.bf16.gmra.mxu0 %v2131
        %v2396 = vpop.f32.mrf.mxu0
        %v2397 = vadd.f32 0.0, %v2396
        %v2398 = vpop.f32.mrf.mxu0
        %v2399 = vadd.f32 0.0, %v2398
        %2400 = vmatmul.bf16.gmra.mxu0 %v2134
        %v2401 = vpop.f32.mrf.mxu0
        %v2402 = vadd.f32 0.0, %v2401
        %v2403 = vpop.f32.mrf.mxu0
        %v2404 = vadd.f32 0.0, %v2403
        %2405 = vmatmul.bf16.gmra.mxu0 %v2137
        %v2406 = vpop.f32.mrf.mxu0
        %v2407 = vadd.f32 0.0, %v2406
        %v2408 = vpop.f32.mrf.mxu0
        %v2409 = vadd.f32 0.0, %v2408
        %2410 = vmatmul.bf16.gmra.mxu0 %v2140
        %v2411 = vpop.f32.mrf.mxu0
        %v2412 = vadd.f32 0.0, %v2411
        %v2413 = vpop.f32.mrf.mxu0
        %v2414 = vadd.f32 0.0, %v2413
        %2415 = vdwg.mxu0
        %2416 = vmatpush.bf16.msra.mxu0 %v2299
        %2417 = vmatpush.bf16.msra.mxu0 %v2298
        %2418 = vmatpush.bf16.msra.mxu0 %v2297
        %2419 = vmatpush.bf16.msra.mxu0 %v2296
        %2420 = vmatpush.bf16.msra.mxu0 %v2295
        %2421 = vmatpush.bf16.msra.mxu0 %v2294
        %2422 = vmatpush.bf16.msra.mxu0 %v2293
        %2423 = vmatpush.bf16.msra.mxu0 %v2292
        %2424 = vmatmul.bf16.gmra.mxu0 %v2099
        %v2425 = vpop.f32.mrf.mxu0
        %v2426 = vadd.f32 %v2342, %v2425
        %v2427 = vpop.f32.mrf.mxu0
        %v2428 = vadd.f32 %v2344, %v2427
        %2429 = vmatmul.bf16.gmra.mxu0 %v2102
        %v2430 = vpop.f32.mrf.mxu0
        %v2431 = vadd.f32 %v2347, %v2430
        %v2432 = vpop.f32.mrf.mxu0
        %v2433 = vadd.f32 %v2349, %v2432
        %2434 = vmatmul.bf16.gmra.mxu0 %v2105
        %v2435 = vpop.f32.mrf.mxu0
        %v2436 = vadd.f32 %v2352, %v2435
        %v2437 = vpop.f32.mrf.mxu0
        %v2438 = vadd.f32 %v2354, %v2437
        %2439 = vmatmul.bf16.gmra.mxu0 %v2108
        %v2440 = vpop.f32.mrf.mxu0
        %v2441 = vadd.f32 %v2357, %v2440
        %v2442 = vpop.f32.mrf.mxu0
        %v2443 = vadd.f32 %v2359, %v2442
        %2444 = vmatmul.bf16.gmra.mxu0 %v2111
        %v2445 = vpop.f32.mrf.mxu0
        %v2446 = vadd.f32 %v2362, %v2445
        %v2447 = vpop.f32.mrf.mxu0
        %v2448 = vadd.f32 %v2364, %v2447
        %2449 = vmatmul.bf16.gmra.mxu0 %v2114
        %v2450 = vpop.f32.mrf.mxu0
        %v2451 = vadd.f32 %v2367, %v2450
        %v2452 = vpop.f32.mrf.mxu0
        %v2453 = vadd.f32 %v2369, %v2452
        %2454 = vmatmul.bf16.gmra.mxu0 %v2117
        %v2455 = vpop.f32.mrf.mxu0
        %v2456 = vadd.f32 %v2372, %v2455
        %v2457 = vpop.f32.mrf.mxu0
        %v2458 = vadd.f32 %v2374, %v2457
        %2459 = vmatmul.bf16.gmra.mxu0 %v2120
        %v2460 = vpop.f32.mrf.mxu0
        %v2461 = vadd.f32 %v2377, %v2460
        %v2462 = vpop.f32.mrf.mxu0
        %v2463 = vadd.f32 %v2379, %v2462
        %2464 = vmatmul.bf16.gmra.mxu0 %v2123
        %v2465 = vpop.f32.mrf.mxu0
        %v2466 = vadd.f32 %v2382, %v2465
        %v2467 = vpop.f32.mrf.mxu0
        %v2468 = vadd.f32 %v2384, %v2467
        %2469 = vmatmul.bf16.gmra.mxu0 %v2126
        %v2470 = vpop.f32.mrf.mxu0
        %v2471 = vadd.f32 %v2387, %v2470
        %v2472 = vpop.f32.mrf.mxu0
        %v2473 = vadd.f32 %v2389, %v2472
        %2474 = vmatmul.bf16.gmra.mxu0 %v2129
        %v2475 = vpop.f32.mrf.mxu0
        %v2476 = vadd.f32 %v2392, %v2475
        %v2477 = vpop.f32.mrf.mxu0
        %v2478 = vadd.f32 %v2394, %v2477
        %2479 = vmatmul.bf16.gmra.mxu0 %v2132
        %v2480 = vpop.f32.mrf.mxu0
        %v2481 = vadd.f32 %v2397, %v2480
        %v2482 = vpop.f32.mrf.mxu0
        %v2483 = vadd.f32 %v2399, %v2482
        %2484 = vmatmul.bf16.gmra.mxu0 %v2135
        %v2485 = vpop.f32.mrf.mxu0
        %v2486 = vadd.f32 %v2402, %v2485
        %v2487 = vpop.f32.mrf.mxu0
        %v2488 = vadd.f32 %v2404, %v2487
        %2489 = vmatmul.bf16.gmra.mxu0 %v2138
        %v2490 = vpop.f32.mrf.mxu0
        %v2491 = vadd.f32 %v2407, %v2490
        %v2492 = vpop.f32.mrf.mxu0
        %v2493 = vadd.f32 %v2409, %v2492
        %2494 = vmatmul.bf16.gmra.mxu0 %v2141
        %v2495 = vpop.f32.mrf.mxu0
        %v2496 = vadd.f32 %v2412, %v2495
        %v2497 = vpop.f32.mrf.mxu0
        %v2498 = vadd.f32 %v2414, %v2497
        %2499 = vdwg.mxu0
        %2500 = vmatpush.bf16.msra.mxu0 %v2307
        %2501 = vmatpush.bf16.msra.mxu0 %v2306
        %2502 = vmatpush.bf16.msra.mxu0 %v2305
        %2503 = vmatpush.bf16.msra.mxu0 %v2304
        %2504 = vmatpush.bf16.msra.mxu0 %v2303
        %2505 = vmatpush.bf16.msra.mxu0 %v2302
        %2506 = vmatpush.bf16.msra.mxu0 %v2301
        %2507 = vmatpush.bf16.msra.mxu0 %v2300
        %2508 = vmatmul.bf16.gmra.mxu0 %v2100
        %v2509 = vpop.f32.mrf.mxu0
        %v2510 = vadd.f32 %v2426, %v2509
        %v2511 = vpop.f32.mrf.mxu0
        %v2512 = vadd.f32 %v2428, %v2511
        %2513 = vmatmul.bf16.gmra.mxu0 %v2103
        %v2514 = vpop.f32.mrf.mxu0
        %v2515 = vadd.f32 %v2431, %v2514
        %v2516 = vpop.f32.mrf.mxu0
        %v2517 = vadd.f32 %v2433, %v2516
        %2518 = vmatmul.bf16.gmra.mxu0 %v2106
        %v2519 = vpop.f32.mrf.mxu0
        %v2520 = vadd.f32 %v2436, %v2519
        %v2521 = vpop.f32.mrf.mxu0
        %v2522 = vadd.f32 %v2438, %v2521
        %2523 = vmatmul.bf16.gmra.mxu0 %v2109
        %v2524 = vpop.f32.mrf.mxu0
        %v2525 = vadd.f32 %v2441, %v2524
        %v2526 = vpop.f32.mrf.mxu0
        %v2527 = vadd.f32 %v2443, %v2526
        %2528 = vmatmul.bf16.gmra.mxu0 %v2112
        %v2529 = vpop.f32.mrf.mxu0
        %v2530 = vadd.f32 %v2446, %v2529
        %v2531 = vpop.f32.mrf.mxu0
        %v2532 = vadd.f32 %v2448, %v2531
        %2533 = vmatmul.bf16.gmra.mxu0 %v2115
        %v2534 = vpop.f32.mrf.mxu0
        %v2535 = vadd.f32 %v2451, %v2534
        %v2536 = vpop.f32.mrf.mxu0
        %v2537 = vadd.f32 %v2453, %v2536
        %2538 = vmatmul.bf16.gmra.mxu0 %v2118
        %v2539 = vpop.f32.mrf.mxu0
        %v2540 = vadd.f32 %v2456, %v2539
        %v2541 = vpop.f32.mrf.mxu0
        %v2542 = vadd.f32 %v2458, %v2541
        %2543 = vmatmul.bf16.gmra.mxu0 %v2121
        %v2544 = vpop.f32.mrf.mxu0
        %v2545 = vadd.f32 %v2461, %v2544
        %v2546 = vpop.f32.mrf.mxu0
        %v2547 = vadd.f32 %v2463, %v2546
        %2548 = vmatmul.bf16.gmra.mxu0 %v2124
        %v2549 = vpop.f32.mrf.mxu0
        %v2550 = vadd.f32 %v2466, %v2549
        %v2551 = vpop.f32.mrf.mxu0
        %v2552 = vadd.f32 %v2468, %v2551
        %2553 = vmatmul.bf16.gmra.mxu0 %v2127
        %v2554 = vpop.f32.mrf.mxu0
        %v2555 = vadd.f32 %v2471, %v2554
        %v2556 = vpop.f32.mrf.mxu0
        %v2557 = vadd.f32 %v2473, %v2556
        %2558 = vmatmul.bf16.gmra.mxu0 %v2130
        %v2559 = vpop.f32.mrf.mxu0
        %v2560 = vadd.f32 %v2476, %v2559
        %v2561 = vpop.f32.mrf.mxu0
        %v2562 = vadd.f32 %v2478, %v2561
        %2563 = vmatmul.bf16.gmra.mxu0 %v2133
        %v2564 = vpop.f32.mrf.mxu0
        %v2565 = vadd.f32 %v2481, %v2564
        %v2566 = vpop.f32.mrf.mxu0
        %v2567 = vadd.f32 %v2483, %v2566
        %2568 = vmatmul.bf16.gmra.mxu0 %v2136
        %v2569 = vpop.f32.mrf.mxu0
        %v2570 = vadd.f32 %v2486, %v2569
        %v2571 = vpop.f32.mrf.mxu0
        %v2572 = vadd.f32 %v2488, %v2571
        %2573 = vmatmul.bf16.gmra.mxu0 %v2139
        %v2574 = vpop.f32.mrf.mxu0
        %v2575 = vadd.f32 %v2491, %v2574
        %v2576 = vpop.f32.mrf.mxu0
        %v2577 = vadd.f32 %v2493, %v2576
        %2578 = vmatmul.bf16.gmra.mxu0 %v2142
        %v2579 = vpop.f32.mrf.mxu0
        %v2580 = vadd.f32 %v2496, %v2579
        %v2581 = vpop.f32.mrf.mxu0
        %v2582 = vadd.f32 %v2498, %v2581
        %2583 = vdwg.mxu0
        %v2584 = vadd.f32 %v1810, %v2510
        %v2585 = vadd.f32 %v1811, %v2512
        %v2586 = vadd.f32 %v1812, %v2515
        %v2587 = vadd.f32 %v1813, %v2517
        %v2588 = vadd.f32 %v1814, %v2520
        %v2589 = vadd.f32 %v1815, %v2522
        %v2590 = vadd.f32 %v1816, %v2525
        %v2591 = vadd.f32 %v1817, %v2527
        %v2592 = vadd.f32 %v1818, %v2530
        %v2593 = vadd.f32 %v1819, %v2532
        %v2594 = vadd.f32 %v1820, %v2535
        %v2595 = vadd.f32 %v1821, %v2537
        %v2596 = vadd.f32 %v1822, %v2540
        %v2597 = vadd.f32 %v1823, %v2542
        %v2598 = vadd.f32 %v1824, %v2545
        %v2599 = vadd.f32 %v1825, %v2547
        %v2600 = vadd.f32 %v1826, %v2550
        %v2601 = vadd.f32 %v1827, %v2552
        %v2602 = vadd.f32 %v1828, %v2555
        %v2603 = vadd.f32 %v1829, %v2557
        %v2604 = vadd.f32 %v1830, %v2560
        %v2605 = vadd.f32 %v1831, %v2562
        %v2606 = vadd.f32 %v1832, %v2565
        %v2607 = vadd.f32 %v1833, %v2567
        %v2608 = vadd.f32 %v1834, %v2570
        %v2609 = vadd.f32 %v1835, %v2572
        %v2610 = vadd.f32 %v1836, %v2575
        %v2611 = vadd.f32 %v1837, %v2577
        %v2612 = vadd.f32 %v1838, %v2580
        %v2613 = vadd.f32 %v1839, %v2582
        %2614 = vst.msk [vmem:[#allocation3 + $0x10] sm:$0xff] %vm1777, %v2584
        %2615 = vst.msk [vmem:[#allocation3 + $0x18] sm:$0xff] %vm1777, %v2585
        %2616 = vst.msk [vmem:[#allocation3 + $0x20] sm:$0xff] %vm1777, %v2586
        %2617 = vst.msk [vmem:[#allocation3 + $0x28] sm:$0xff] %vm1777, %v2587
        %2618 = vst.msk [vmem:[#allocation3 + $0x30] sm:$0xff] %vm1777, %v2588
        %2619 = vst.msk [vmem:[#allocation3 + $0x38] sm:$0xff] %vm1777, %v2589
        %2620 = vst.msk [vmem:[#allocation3 + $0x40] sm:$0xff] %vm1777, %v2590
        %2621 = vst.msk [vmem:[#allocation3 + $0x48] sm:$0xff] %vm1777, %v2591
        %2622 = vst.msk [vmem:[#allocation3 + $0x50] sm:$0xff] %vm1777, %v2592
        %2623 = vst.msk [vmem:[#allocation3 + $0x58] sm:$0xff] %vm1777, %v2593
        %2624 = vst.msk [vmem:[#allocation3 + $0x60] sm:$0xff] %vm1777, %v2594
        %2625 = vst.msk [vmem:[#allocation3 + $0x68] sm:$0xff] %vm1777, %v2595
        %2626 = vst.msk [vmem:[#allocation3 + $0x70] sm:$0xff] %vm1777, %v2596
        %2627 = vst.msk [vmem:[#allocation3 + $0x78] sm:$0xff] %vm1777, %v2597
        %2628 = vst.msk [vmem:[#allocation3 + $0x80] sm:$0xff] %vm1777, %v2598
        %2629 = vst.msk [vmem:[#allocation3 + $0x88] sm:$0xff] %vm1777, %v2599
        %2630 = vst.msk [vmem:[#allocation3 + $0x90] sm:$0xff] %vm1777, %v2600
        %2631 = vst.msk [vmem:[#allocation3 + $0x98] sm:$0xff] %vm1777, %v2601
        %2632 = vst.msk [vmem:[#allocation3 + $0xa0] sm:$0xff] %vm1777, %v2602
        %2633 = vst.msk [vmem:[#allocation3 + $0xa8] sm:$0xff] %vm1777, %v2603
        %2634 = vst.msk [vmem:[#allocation3 + $0xb0] sm:$0xff] %vm1777, %v2604
        %2635 = vst.msk [vmem:[#allocation3 + $0xb8] sm:$0xff] %vm1777, %v2605
        %2636 = vst.msk [vmem:[#allocation3 + $0xc0] sm:$0xff] %vm1777, %v2606
        %2637 = vst.msk [vmem:[#allocation3 + $0xc8] sm:$0xff] %vm1777, %v2607
        %2638 = vst.msk [vmem:[#allocation3 + $0xd0] sm:$0xff] %vm1777, %v2608
        %2639 = vst.msk [vmem:[#allocation3 + $0xd8] sm:$0xff] %vm1777, %v2609
        %2640 = vst.msk [vmem:[#allocation3 + $0xe0] sm:$0xff] %vm1777, %v2610
        %2641 = vst.msk [vmem:[#allocation3 + $0xe8] sm:$0xff] %vm1777, %v2611
        %2642 = vst.msk [vmem:[#allocation3 + $0xf0] sm:$0xff] %vm1777, %v2612
        %2643 = vst.msk [vmem:[#allocation3 + $0xf8] sm:$0xff] %vm1777, %v2613
        %v2644 = vld [vmem:[#allocation3] sm:$0xff]
        %v2645 = vld [vmem:[#allocation3 + $0x8] sm:$0xff]
        %v2646 = vld [vmem:[#allocation3 + $0x10] sm:$0xff]
        %v2647 = vld [vmem:[#allocation3 + $0x18] sm:$0xff]
        %v2648 = vld [vmem:[#allocation3 + $0x20] sm:$0xff]
        %v2649 = vld [vmem:[#allocation3 + $0x28] sm:$0xff]
        %v2650 = vld [vmem:[#allocation3 + $0x30] sm:$0xff]
        %v2651 = vld [vmem:[#allocation3 + $0x38] sm:$0xff]
        %v2652 = vld [vmem:[#allocation3 + $0x40] sm:$0xff]
        %v2653 = vld [vmem:[#allocation3 + $0x48] sm:$0xff]
        %v2654 = vld [vmem:[#allocation3 + $0x50] sm:$0xff]
        %v2655 = vld [vmem:[#allocation3 + $0x58] sm:$0xff]
        %v2656 = vld [vmem:[#allocation3 + $0x60] sm:$0xff]
        %v2657 = vld [vmem:[#allocation3 + $0x68] sm:$0xff]
        %v2658 = vld [vmem:[#allocation3 + $0x70] sm:$0xff]
        %v2659 = vld [vmem:[#allocation3 + $0x78] sm:$0xff]
        %v2660 = vld [vmem:[#allocation3 + $0x80] sm:$0xff]
        %v2661 = vld [vmem:[#allocation3 + $0x88] sm:$0xff]
        %v2662 = vld [vmem:[#allocation3 + $0x90] sm:$0xff]
        %v2663 = vld [vmem:[#allocation3 + $0x98] sm:$0xff]
        %v2664 = vld [vmem:[#allocation3 + $0xa0] sm:$0xff]
        %v2665 = vld [vmem:[#allocation3 + $0xa8] sm:$0xff]
        %v2666 = vld [vmem:[#allocation3 + $0xb0] sm:$0xff]
        %v2667 = vld [vmem:[#allocation3 + $0xb8] sm:$0xff]
        %v2668 = vld [vmem:[#allocation3 + $0xc0] sm:$0xff]
        %v2669 = vld [vmem:[#allocation3 + $0xc8] sm:$0xff]
        %v2670 = vld [vmem:[#allocation3 + $0xd0] sm:$0xff]
        %v2671 = vld [vmem:[#allocation3 + $0xd8] sm:$0xff]
        %v2672 = vld [vmem:[#allocation3 + $0xe0] sm:$0xff]
        %v2673 = vld [vmem:[#allocation3 + $0xe8] sm:$0xff]
        %v2674 = vld [vmem:[#allocation2 + $0x18] sm:$0xff]
        %v2675 = vld [vmem:[#allocation2 + $0x20] sm:$0xf]
        %v2676 = vld [vmem:[#allocation2 + $0x24] sm:$0xff]
        %v2677 = vld [vmem:[#allocation2 + $0x2c] sm:$0xf]
        %v2678 = vld [vmem:[#allocation2 + $0x30] sm:$0xff]
        %v2679 = vld [vmem:[#allocation2 + $0x38] sm:$0xf]
        %v2680 = vld [vmem:[#allocation2 + $0x3c] sm:$0xff]
        %v2681 = vld [vmem:[#allocation2 + $0x44] sm:$0xf]
        %v2682 = vld [vmem:[#allocation2 + $0x48] sm:$0xff]
        %v2683 = vld [vmem:[#allocation2 + $0x50] sm:$0xf]
        %v2684 = vld [vmem:[#allocation2 + $0x54] sm:$0xff]
        %v2685 = vld [vmem:[#allocation2 + $0x5c] sm:$0xf]
        %v2686 = vld [vmem:[#allocation2 + $0x60] sm:$0xff]
        %v2687 = vld [vmem:[#allocation2 + $0x68] sm:$0xf]
        %v2688 = vld [vmem:[#allocation2 + $0x6c] sm:$0xff]
        %v2689 = vld [vmem:[#allocation2 + $0x74] sm:$0xf]
        %v2690 = vld [vmem:[#allocation2 + $0x78] sm:$0xff]
        %v2691 = vld [vmem:[#allocation2 + $0x80] sm:$0xf]
        %v2692 = vld [vmem:[#allocation2 + $0x84] sm:$0xff]
        %v2693 = vld [vmem:[#allocation2 + $0x8c] sm:$0xf]
        %v2694 = vld [vmem:[#allocation2 + $0x90] sm:$0xff]
        %v2695 = vld [vmem:[#allocation2 + $0x98] sm:$0xf]
        %v2696 = vld [vmem:[#allocation2 + $0x9c] sm:$0xff]
        %v2697 = vld [vmem:[#allocation2 + $0xa4] sm:$0xf]
        %v2698 = vld [vmem:[#allocation2 + $0xa8] sm:$0xff]
        %v2699 = vld [vmem:[#allocation2 + $0xb0] sm:$0xf]
        %v2700 = vld [vmem:[#allocation2 + $0xb4] sm:$0xff]
        %v2701 = vld [vmem:[#allocation2 + $0xbc] sm:$0xf]
        %v2702 = vld [vmem:[#allocation2 + $0xc0] sm:$0xff]
        %v2703 = vld [vmem:[#allocation2 + $0xc8] sm:$0xf]
        %v2704 = vld [vmem:[#allocation2 + $0xcc] sm:$0xff]
        %v2705 = vld [vmem:[#allocation2 + $0xd4] sm:$0xf]
        %v2706 = vld [vmem:[#allocation2 + $0xd8] sm:$0xff]
        %v2707 = vld [vmem:[#allocation2 + $0xe0] sm:$0xf]
        %v2708 = vld [vmem:[#allocation2 + $0xe4] sm:$0xff]
        %v2709 = vld [vmem:[#allocation2 + $0xec] sm:$0xf]
        %v2710 = vld [vmem:[#allocation2 + $0xf0] sm:$0xff]
        %v2711 = vld [vmem:[#allocation2 + $0xf8] sm:$0xf]
        %v2712 = vld [vmem:[#allocation2 + $0xfc] sm:$0xff]
        %v2713 = vld [vmem:[#allocation2 + $0x104] sm:$0xf]
        %v2714 = vld [vmem:[#allocation2 + $0x108] sm:$0xff]
        %v2715 = vld [vmem:[#allocation2 + $0x110] sm:$0xf]
        %v2716 = vld [vmem:[#allocation2 + $0x114] sm:$0xff]
        %v2717 = vld [vmem:[#allocation2 + $0x11c] sm:$0xf]
        %v2718 = vld [vmem:[#allocation2 + $0x120] sm:$0xff]
        %v2719 = vld [vmem:[#allocation2 + $0x128] sm:$0xf]
        %v2720 = vld [vmem:[#allocation2 + $0x12c] sm:$0xff]
        %v2721 = vld [vmem:[#allocation2 + $0x134] sm:$0xf]
        %v2722 = vld [vmem:[#allocation2 + $0x138] sm:$0xff]
        %v2723 = vld [vmem:[#allocation2 + $0x140] sm:$0xf]
        %v2724 = vld [vmem:[#allocation2 + $0x144] sm:$0xff]
        %v2725 = vld [vmem:[#allocation2 + $0x14c] sm:$0xf]
        %v2726 = vld [vmem:[#allocation2 + $0x150] sm:$0xff]
        %v2727 = vld [vmem:[#allocation2 + $0x158] sm:$0xf]
        %v2728 = vld [vmem:[#allocation2 + $0x15c] sm:$0xff]
        %v2729 = vld [vmem:[#allocation2 + $0x164] sm:$0xf]
        %v2730 = vld [vmem:[#allocation2 + $0x168] sm:$0xff]
        %v2731 = vld [vmem:[#allocation2 + $0x170] sm:$0xf]
        %v2732 = vld [vmem:[#allocation2 + $0x174] sm:$0xff]
        %v2733 = vld [vmem:[#allocation2 + $0x17c] sm:$0xf]
        %s2734 = scalar_lea.vmem %s215, 384
        %v2735 = vld [vmem:[%s2734] sm:$0xf]
        %v2736 = vld [vmem:[%s2734 + $0x4] sm:$0xf]
        %v2737 = vld [vmem:[%s2734 + $0x8] sm:$0xf]
        %v2738 = vld [vmem:[%s2734 + $0xc] sm:$0xf]
        %v2739 = vld [vmem:[%s2734 + $0x10] sm:$0xf]
        %v2740 = vld [vmem:[%s2734 + $0x14] sm:$0xf]
        %v2741 = vld [vmem:[%s2734 + $0x18] sm:$0xf]
        %v2742 = vld [vmem:[%s2734 + $0x1c] sm:$0xf]
        %v2743 = vld [vmem:[%s2734 + $0x20] sm:$0xf]
        %v2744 = vld [vmem:[%s2734 + $0x24] sm:$0xf]
        %v2745 = vld [vmem:[%s2734 + $0x28] sm:$0xf]
        %v2746 = vld [vmem:[%s2734 + $0x2c] sm:$0xf]
        %v2747 = vld [vmem:[%s2734 + $0x30] sm:$0xf]
        %v2748 = vld [vmem:[%s2734 + $0x34] sm:$0xf]
        %v2749 = vld [vmem:[%s2734 + $0x38] sm:$0xf]
        %v2750 = vld [vmem:[%s2734 + $0x3c] sm:$0xf]
        %v2751 = vld [vmem:[%s2734 + $0x40] sm:$0xf]
        %v2752 = vld [vmem:[%s2734 + $0x44] sm:$0xf]
        %v2753 = vld [vmem:[%s2734 + $0x48] sm:$0xf]
        %v2754 = vld [vmem:[%s2734 + $0x4c] sm:$0xf]
        %v2755 = vld [vmem:[%s2734 + $0x50] sm:$0xf]
        %v2756 = vld [vmem:[%s2734 + $0x54] sm:$0xf]
        %v2757 = vld [vmem:[%s2734 + $0x58] sm:$0xf]
        %v2758 = vld [vmem:[%s2734 + $0x5c] sm:$0xf]
        %v2759 = vld [vmem:[%s2734 + $0x60] sm:$0xf]
        %v2760 = vld [vmem:[%s2734 + $0x64] sm:$0xf]
        %v2761 = vld [vmem:[%s2734 + $0x68] sm:$0xf]
        %v2762 = vld [vmem:[%s2734 + $0x6c] sm:$0xf]
        %v2763 = vld [vmem:[%s2734 + $0x70] sm:$0xf]
        %v2764 = vld [vmem:[%s2734 + $0x74] sm:$0xf]
        %v2765 = vld [vmem:[%s2734 + $0x78] sm:$0xf]
        %v2766 = vld [vmem:[%s2734 + $0x7c] sm:$0xf]
        %v2767 = vld [vmem:[%s2734 + $0x80] sm:$0xf]
        %v2768 = vld [vmem:[%s2734 + $0x84] sm:$0xf]
        %v2769 = vld [vmem:[%s2734 + $0x88] sm:$0xf]
        %v2770 = vld [vmem:[%s2734 + $0x8c] sm:$0xf]
        %v2771 = vld [vmem:[%s2734 + $0x90] sm:$0xf]
        %v2772 = vld [vmem:[%s2734 + $0x94] sm:$0xf]
        %v2773 = vld [vmem:[%s2734 + $0x98] sm:$0xf]
        %v2774 = vld [vmem:[%s2734 + $0x9c] sm:$0xf]
        %v2775 = vld [vmem:[%s2734 + $0xa0] sm:$0xf]
        %v2776 = vld [vmem:[%s2734 + $0xa4] sm:$0xf]
        %v2777 = vld [vmem:[%s2734 + $0xa8] sm:$0xf]
        %v2778 = vld [vmem:[%s2734 + $0xac] sm:$0xf]
        %v2779 = vld [vmem:[%s2734 + $0xb0] sm:$0xf]
        %v2780 = vld [vmem:[%s2734 + $0xb4] sm:$0xf]
        %v2781 = vld [vmem:[%s2734 + $0xb8] sm:$0xf]
        %v2782 = vld [vmem:[%s2734 + $0xbc] sm:$0xf]
        %v2843 = vunpack.c.l.b16 %v2674
        %v2844 = vunpack.c.h.b16 %v2674
        %v2845 = vunpack.c.l.b16 %v2675
        %v2846 = vunpack.c.l.b16 %v2676
        %v2847 = vunpack.c.h.b16 %v2676
        %v2848 = vunpack.c.l.b16 %v2677
        %v2849 = vunpack.c.l.b16 %v2678
        %v2850 = vunpack.c.h.b16 %v2678
        %v2851 = vunpack.c.l.b16 %v2679
        %v2852 = vunpack.c.l.b16 %v2680
        %v2853 = vunpack.c.h.b16 %v2680
        %v2854 = vunpack.c.l.b16 %v2681
        %v2855 = vunpack.c.l.b16 %v2682
        %v2856 = vunpack.c.h.b16 %v2682
        %v2857 = vunpack.c.l.b16 %v2683
        %v2858 = vunpack.c.l.b16 %v2684
        %v2859 = vunpack.c.h.b16 %v2684
        %v2860 = vunpack.c.l.b16 %v2685
        %v2861 = vunpack.c.l.b16 %v2686
        %v2862 = vunpack.c.h.b16 %v2686
        %v2863 = vunpack.c.l.b16 %v2687
        %v2864 = vunpack.c.l.b16 %v2688
        %v2865 = vunpack.c.h.b16 %v2688
        %v2866 = vunpack.c.l.b16 %v2689
        %v2867 = vunpack.c.l.b16 %v2690
        %v2868 = vunpack.c.h.b16 %v2690
        %v2869 = vunpack.c.l.b16 %v2691
        %v2870 = vunpack.c.l.b16 %v2692
        %v2871 = vunpack.c.h.b16 %v2692
        %v2872 = vunpack.c.l.b16 %v2693
        %v2873 = vunpack.c.l.b16 %v2694
        %v2874 = vunpack.c.h.b16 %v2694
        %v2875 = vunpack.c.l.b16 %v2695
        %v2876 = vunpack.c.l.b16 %v2696
        %v2877 = vunpack.c.h.b16 %v2696
        %v2878 = vunpack.c.l.b16 %v2697
        %v2879 = vunpack.c.l.b16 %v2698
        %v2880 = vunpack.c.h.b16 %v2698
        %v2881 = vunpack.c.l.b16 %v2699
        %v2882 = vunpack.c.l.b16 %v2700
        %v2883 = vunpack.c.h.b16 %v2700
        %v2884 = vunpack.c.l.b16 %v2701
        %v2885 = vunpack.c.l.b16 %v2702
        %v2886 = vunpack.c.h.b16 %v2702
        %v2887 = vunpack.c.l.b16 %v2703
        %v2888 = vunpack.c.l.b16 %v2704
        %v2889 = vunpack.c.h.b16 %v2704
        %v2890 = vunpack.c.l.b16 %v2705
        %v2891 = vunpack.c.l.b16 %v2706
        %v2892 = vunpack.c.h.b16 %v2706
        %v2893 = vunpack.c.l.b16 %v2707
        %v2894 = vunpack.c.l.b16 %v2708
        %v2895 = vunpack.c.h.b16 %v2708
        %v2896 = vunpack.c.l.b16 %v2709
        %v2897 = vunpack.c.l.b16 %v2710
        %v2898 = vunpack.c.h.b16 %v2710
        %v2899 = vunpack.c.l.b16 %v2711
        %v2900 = vunpack.c.l.b16 %v2712
        %v2901 = vunpack.c.h.b16 %v2712
        %v2902 = vunpack.c.l.b16 %v2713
        %v2903 = vunpack.c.l.b16 %v2714
        %v2904 = vunpack.c.h.b16 %v2714
        %v2905 = vunpack.c.l.b16 %v2715
        %v2906 = vunpack.c.l.b16 %v2716
        %v2907 = vunpack.c.h.b16 %v2716
        %v2908 = vunpack.c.l.b16 %v2717
        %v2909 = vunpack.c.l.b16 %v2718
        %v2910 = vunpack.c.h.b16 %v2718
        %v2911 = vunpack.c.l.b16 %v2719
        %v2912 = vunpack.c.l.b16 %v2720
        %v2913 = vunpack.c.h.b16 %v2720
        %v2914 = vunpack.c.l.b16 %v2721
        %v2915 = vunpack.c.l.b16 %v2722
        %v2916 = vunpack.c.h.b16 %v2722
        %v2917 = vunpack.c.l.b16 %v2723
        %v2918 = vunpack.c.l.b16 %v2724
        %v2919 = vunpack.c.h.b16 %v2724
        %v2920 = vunpack.c.l.b16 %v2725
        %v2921 = vunpack.c.l.b16 %v2726
        %v2922 = vunpack.c.h.b16 %v2726
        %v2923 = vunpack.c.l.b16 %v2727
        %v2924 = vunpack.c.l.b16 %v2728
        %v2925 = vunpack.c.h.b16 %v2728
        %v2926 = vunpack.c.l.b16 %v2729
        %v2927 = vunpack.c.l.b16 %v2730
        %v2928 = vunpack.c.h.b16 %v2730
        %v2929 = vunpack.c.l.b16 %v2731
        %v2930 = vunpack.c.l.b16 %v2732
        %v2931 = vunpack.c.h.b16 %v2732
        %v2932 = vunpack.c.l.b16 %v2733
        %v2933 = vpack.c.b16 %v2846, %v2843
        %v2934 = vpack.c.b16 %v2847, %v2844
        %v2935 = vpack.c.b16 %v2848, %v2845
        %v2936 = vpack.c.b16 %v2852, %v2849
        %v2937 = vpack.c.b16 %v2853, %v2850
        %v2938 = vpack.c.b16 %v2854, %v2851
        %v2939 = vpack.c.b16 %v2858, %v2855
        %v2940 = vpack.c.b16 %v2859, %v2856
        %v2941 = vpack.c.b16 %v2860, %v2857
        %v2942 = vpack.c.b16 %v2864, %v2861
        %v2943 = vpack.c.b16 %v2865, %v2862
        %v2944 = vpack.c.b16 %v2866, %v2863
        %v2945 = vpack.c.b16 %v2870, %v2867
        %v2946 = vpack.c.b16 %v2871, %v2868
        %v2947 = vpack.c.b16 %v2872, %v2869
        %v2948 = vpack.c.b16 %v2876, %v2873
        %v2949 = vpack.c.b16 %v2877, %v2874
        %v2950 = vpack.c.b16 %v2878, %v2875
        %v2951 = vpack.c.b16 %v2882, %v2879
        %v2952 = vpack.c.b16 %v2883, %v2880
        %v2953 = vpack.c.b16 %v2884, %v2881
        %v2954 = vpack.c.b16 %v2888, %v2885
        %v2955 = vpack.c.b16 %v2889, %v2886
        %v2956 = vpack.c.b16 %v2890, %v2887
        %v2957 = vpack.c.b16 %v2894, %v2891
        %v2958 = vpack.c.b16 %v2895, %v2892
        %v2959 = vpack.c.b16 %v2896, %v2893
        %v2960 = vpack.c.b16 %v2900, %v2897
        %v2961 = vpack.c.b16 %v2901, %v2898
        %v2962 = vpack.c.b16 %v2902, %v2899
        %v2963 = vpack.c.b16 %v2906, %v2903
        %v2964 = vpack.c.b16 %v2907, %v2904
        %v2965 = vpack.c.b16 %v2908, %v2905
        %v2966 = vpack.c.b16 %v2912, %v2909
        %v2967 = vpack.c.b16 %v2913, %v2910
        %v2968 = vpack.c.b16 %v2914, %v2911
        %v2969 = vpack.c.b16 %v2918, %v2915
        %v2970 = vpack.c.b16 %v2919, %v2916
        %v2971 = vpack.c.b16 %v2920, %v2917
        %v2972 = vpack.c.b16 %v2924, %v2921
        %v2973 = vpack.c.b16 %v2925, %v2922
        %v2974 = vpack.c.b16 %v2926, %v2923
        %v2975 = vpack.c.b16 %v2930, %v2927
        %v2976 = vpack.c.b16 %v2931, %v2928
        %v2977 = vpack.c.b16 %v2932, %v2929
        %v3071 = vunpack.c.l.b16 %v2735
        %v3072 = vunpack.c.l.b16 %v2736
        %v3073 = vunpack.c.l.b16 %v2737
        %v3074 = vunpack.c.l.b16 %v2738
        %v3075 = vunpack.c.l.b16 %v2739
        %v3076 = vunpack.c.l.b16 %v2740
        %v3077 = vunpack.c.l.b16 %v2741
        %v3078 = vunpack.c.l.b16 %v2742
        %v3079 = vunpack.c.l.b16 %v2743
        %v3080 = vunpack.c.l.b16 %v2744
        %v3081 = vunpack.c.l.b16 %v2745
        %v3082 = vunpack.c.l.b16 %v2746
        %v3083 = vunpack.c.l.b16 %v2747
        %v3084 = vunpack.c.l.b16 %v2748
        %v3085 = vunpack.c.l.b16 %v2749
        %v3086 = vunpack.c.l.b16 %v2750
        %v3087 = vunpack.c.l.b16 %v2751
        %v3088 = vunpack.c.l.b16 %v2752
        %v3089 = vunpack.c.l.b16 %v2753
        %v3090 = vunpack.c.l.b16 %v2754
        %v3091 = vunpack.c.l.b16 %v2755
        %v3092 = vunpack.c.l.b16 %v2756
        %v3093 = vunpack.c.l.b16 %v2757
        %v3094 = vunpack.c.l.b16 %v2758
        %v3095 = vunpack.c.l.b16 %v2759
        %v3096 = vunpack.c.l.b16 %v2760
        %v3097 = vunpack.c.l.b16 %v2761
        %v3098 = vunpack.c.l.b16 %v2762
        %v3099 = vunpack.c.l.b16 %v2763
        %v3100 = vunpack.c.l.b16 %v2764
        %v3101 = vunpack.c.l.b16 %v2765
        %v3102 = vunpack.c.l.b16 %v2766
        %v3103 = vunpack.c.l.b16 %v2767
        %v3104 = vunpack.c.l.b16 %v2768
        %v3105 = vunpack.c.l.b16 %v2769
        %v3106 = vunpack.c.l.b16 %v2770
        %v3107 = vunpack.c.l.b16 %v2771
        %v3108 = vunpack.c.l.b16 %v2772
        %v3109 = vunpack.c.l.b16 %v2773
        %v3110 = vunpack.c.l.b16 %v2774
        %v3111 = vunpack.c.l.b16 %v2775
        %v3112 = vunpack.c.l.b16 %v2776
        %v3113 = vunpack.c.l.b16 %v2777
        %v3114 = vunpack.c.l.b16 %v2778
        %v3115 = vunpack.c.l.b16 %v2779
        %v3116 = vunpack.c.l.b16 %v2780
        %v3117 = vunpack.c.l.b16 %v2781
        %v3118 = vunpack.c.l.b16 %v2782
        %v3119 = vpack.c.b16 %v3072, %v3071
        %v3120 = vpack.c.b16 %v3074, %v3073
        %v3121 = vpack.c.b16 %v3076, %v3075
        %v3122 = vpack.c.b16 %v3078, %v3077
        %v3123 = vpack.c.b16 %v3080, %v3079
        %v3124 = vpack.c.b16 %v3082, %v3081
        %v3125 = vpack.c.b16 %v3084, %v3083
        %v3126 = vpack.c.b16 %v3086, %v3085
        %v3127 = vpack.c.b16 %v3088, %v3087
        %v3128 = vpack.c.b16 %v3090, %v3089
        %v3129 = vpack.c.b16 %v3092, %v3091
        %v3130 = vpack.c.b16 %v3094, %v3093
        %v3131 = vpack.c.b16 %v3096, %v3095
        %v3132 = vpack.c.b16 %v3098, %v3097
        %v3133 = vpack.c.b16 %v3100, %v3099
        %v3134 = vpack.c.b16 %v3102, %v3101
        %v3135 = vpack.c.b16 %v3104, %v3103
        %v3136 = vpack.c.b16 %v3106, %v3105
        %v3137 = vpack.c.b16 %v3108, %v3107
        %v3138 = vpack.c.b16 %v3110, %v3109
        %v3139 = vpack.c.b16 %v3112, %v3111
        %v3140 = vpack.c.b16 %v3114, %v3113
        %v3141 = vpack.c.b16 %v3116, %v3115
        %v3142 = vpack.c.b16 %v3118, %v3117
        %3167 = vmatpush.bf16.msra.mxu0 %v3126
        %3168 = vmatpush.bf16.msra.mxu0 %v3125
        %3169 = vmatpush.bf16.msra.mxu0 %v3124
        %3170 = vmatpush.bf16.msra.mxu0 %v3123
        %3171 = vmatpush.bf16.msra.mxu0 %v3122
        %3172 = vmatpush.bf16.msra.mxu0 %v3121
        %3173 = vmatpush.bf16.msra.mxu0 %v3120
        %3174 = vmatpush.bf16.msra.mxu0 %v3119
        %3175 = vmatmul.bf16.gmra.mxu0 %v2933
        %v3176 = vpop.f32.mrf.mxu0
        %v3177 = vadd.f32 0.0, %v3176
        %v3178 = vpop.f32.mrf.mxu0
        %v3179 = vadd.f32 0.0, %v3178
        %3180 = vmatmul.bf16.gmra.mxu0 %v2936
        %v3181 = vpop.f32.mrf.mxu0
        %v3182 = vadd.f32 0.0, %v3181
        %v3183 = vpop.f32.mrf.mxu0
        %v3184 = vadd.f32 0.0, %v3183
        %3185 = vmatmul.bf16.gmra.mxu0 %v2939
        %v3186 = vpop.f32.mrf.mxu0
        %v3187 = vadd.f32 0.0, %v3186
        %v3188 = vpop.f32.mrf.mxu0
        %v3189 = vadd.f32 0.0, %v3188
        %3190 = vmatmul.bf16.gmra.mxu0 %v2942
        %v3191 = vpop.f32.mrf.mxu0
        %v3192 = vadd.f32 0.0, %v3191
        %v3193 = vpop.f32.mrf.mxu0
        %v3194 = vadd.f32 0.0, %v3193
        %3195 = vmatmul.bf16.gmra.mxu0 %v2945
        %v3196 = vpop.f32.mrf.mxu0
        %v3197 = vadd.f32 0.0, %v3196
        %v3198 = vpop.f32.mrf.mxu0
        %v3199 = vadd.f32 0.0, %v3198
        %3200 = vmatmul.bf16.gmra.mxu0 %v2948
        %v3201 = vpop.f32.mrf.mxu0
        %v3202 = vadd.f32 0.0, %v3201
        %v3203 = vpop.f32.mrf.mxu0
        %v3204 = vadd.f32 0.0, %v3203
        %3205 = vmatmul.bf16.gmra.mxu0 %v2951
        %v3206 = vpop.f32.mrf.mxu0
        %v3207 = vadd.f32 0.0, %v3206
        %v3208 = vpop.f32.mrf.mxu0
        %v3209 = vadd.f32 0.0, %v3208
        %3210 = vmatmul.bf16.gmra.mxu0 %v2954
        %v3211 = vpop.f32.mrf.mxu0
        %v3212 = vadd.f32 0.0, %v3211
        %v3213 = vpop.f32.mrf.mxu0
        %v3214 = vadd.f32 0.0, %v3213
        %3215 = vmatmul.bf16.gmra.mxu0 %v2957
        %v3216 = vpop.f32.mrf.mxu0
        %v3217 = vadd.f32 0.0, %v3216
        %v3218 = vpop.f32.mrf.mxu0
        %v3219 = vadd.f32 0.0, %v3218
        %3220 = vmatmul.bf16.gmra.mxu0 %v2960
        %v3221 = vpop.f32.mrf.mxu0
        %v3222 = vadd.f32 0.0, %v3221
        %v3223 = vpop.f32.mrf.mxu0
        %v3224 = vadd.f32 0.0, %v3223
        %3225 = vmatmul.bf16.gmra.mxu0 %v2963
        %v3226 = vpop.f32.mrf.mxu0
        %v3227 = vadd.f32 0.0, %v3226
        %v3228 = vpop.f32.mrf.mxu0
        %v3229 = vadd.f32 0.0, %v3228
        %3230 = vmatmul.bf16.gmra.mxu0 %v2966
        %v3231 = vpop.f32.mrf.mxu0
        %v3232 = vadd.f32 0.0, %v3231
        %v3233 = vpop.f32.mrf.mxu0
        %v3234 = vadd.f32 0.0, %v3233
        %3235 = vmatmul.bf16.gmra.mxu0 %v2969
        %v3236 = vpop.f32.mrf.mxu0
        %v3237 = vadd.f32 0.0, %v3236
        %v3238 = vpop.f32.mrf.mxu0
        %v3239 = vadd.f32 0.0, %v3238
        %3240 = vmatmul.bf16.gmra.mxu0 %v2972
        %v3241 = vpop.f32.mrf.mxu0
        %v3242 = vadd.f32 0.0, %v3241
        %v3243 = vpop.f32.mrf.mxu0
        %v3244 = vadd.f32 0.0, %v3243
        %3245 = vmatmul.bf16.gmra.mxu0 %v2975
        %v3246 = vpop.f32.mrf.mxu0
        %v3247 = vadd.f32 0.0, %v3246
        %v3248 = vpop.f32.mrf.mxu0
        %v3249 = vadd.f32 0.0, %v3248
        %3250 = vdwg.mxu0
        %3251 = vmatpush.bf16.msra.mxu0 %v3134
        %3252 = vmatpush.bf16.msra.mxu0 %v3133
        %3253 = vmatpush.bf16.msra.mxu0 %v3132
        %3254 = vmatpush.bf16.msra.mxu0 %v3131
        %3255 = vmatpush.bf16.msra.mxu0 %v3130
        %3256 = vmatpush.bf16.msra.mxu0 %v3129
        %3257 = vmatpush.bf16.msra.mxu0 %v3128
        %3258 = vmatpush.bf16.msra.mxu0 %v3127
        %3259 = vmatmul.bf16.gmra.mxu0 %v2934
        %v3260 = vpop.f32.mrf.mxu0
        %v3261 = vadd.f32 %v3177, %v3260
        %v3262 = vpop.f32.mrf.mxu0
        %v3263 = vadd.f32 %v3179, %v3262
        %3264 = vmatmul.bf16.gmra.mxu0 %v2937
        %v3265 = vpop.f32.mrf.mxu0
        %v3266 = vadd.f32 %v3182, %v3265
        %v3267 = vpop.f32.mrf.mxu0
        %v3268 = vadd.f32 %v3184, %v3267
        %3269 = vmatmul.bf16.gmra.mxu0 %v2940
        %v3270 = vpop.f32.mrf.mxu0
        %v3271 = vadd.f32 %v3187, %v3270
        %v3272 = vpop.f32.mrf.mxu0
        %v3273 = vadd.f32 %v3189, %v3272
        %3274 = vmatmul.bf16.gmra.mxu0 %v2943
        %v3275 = vpop.f32.mrf.mxu0
        %v3276 = vadd.f32 %v3192, %v3275
        %v3277 = vpop.f32.mrf.mxu0
        %v3278 = vadd.f32 %v3194, %v3277
        %3279 = vmatmul.bf16.gmra.mxu0 %v2946
        %v3280 = vpop.f32.mrf.mxu0
        %v3281 = vadd.f32 %v3197, %v3280
        %v3282 = vpop.f32.mrf.mxu0
        %v3283 = vadd.f32 %v3199, %v3282
        %3284 = vmatmul.bf16.gmra.mxu0 %v2949
        %v3285 = vpop.f32.mrf.mxu0
        %v3286 = vadd.f32 %v3202, %v3285
        %v3287 = vpop.f32.mrf.mxu0
        %v3288 = vadd.f32 %v3204, %v3287
        %3289 = vmatmul.bf16.gmra.mxu0 %v2952
        %v3290 = vpop.f32.mrf.mxu0
        %v3291 = vadd.f32 %v3207, %v3290
        %v3292 = vpop.f32.mrf.mxu0
        %v3293 = vadd.f32 %v3209, %v3292
        %3294 = vmatmul.bf16.gmra.mxu0 %v2955
        %v3295 = vpop.f32.mrf.mxu0
        %v3296 = vadd.f32 %v3212, %v3295
        %v3297 = vpop.f32.mrf.mxu0
        %v3298 = vadd.f32 %v3214, %v3297
        %3299 = vmatmul.bf16.gmra.mxu0 %v2958
        %v3300 = vpop.f32.mrf.mxu0
        %v3301 = vadd.f32 %v3217, %v3300
        %v3302 = vpop.f32.mrf.mxu0
        %v3303 = vadd.f32 %v3219, %v3302
        %3304 = vmatmul.bf16.gmra.mxu0 %v2961
        %v3305 = vpop.f32.mrf.mxu0
        %v3306 = vadd.f32 %v3222, %v3305
        %v3307 = vpop.f32.mrf.mxu0
        %v3308 = vadd.f32 %v3224, %v3307
        %3309 = vmatmul.bf16.gmra.mxu0 %v2964
        %v3310 = vpop.f32.mrf.mxu0
        %v3311 = vadd.f32 %v3227, %v3310
        %v3312 = vpop.f32.mrf.mxu0
        %v3313 = vadd.f32 %v3229, %v3312
        %3314 = vmatmul.bf16.gmra.mxu0 %v2967
        %v3315 = vpop.f32.mrf.mxu0
        %v3316 = vadd.f32 %v3232, %v3315
        %v3317 = vpop.f32.mrf.mxu0
        %v3318 = vadd.f32 %v3234, %v3317
        %3319 = vmatmul.bf16.gmra.mxu0 %v2970
        %v3320 = vpop.f32.mrf.mxu0
        %v3321 = vadd.f32 %v3237, %v3320
        %v3322 = vpop.f32.mrf.mxu0
        %v3323 = vadd.f32 %v3239, %v3322
        %3324 = vmatmul.bf16.gmra.mxu0 %v2973
        %v3325 = vpop.f32.mrf.mxu0
        %v3326 = vadd.f32 %v3242, %v3325
        %v3327 = vpop.f32.mrf.mxu0
        %v3328 = vadd.f32 %v3244, %v3327
        %3329 = vmatmul.bf16.gmra.mxu0 %v2976
        %v3330 = vpop.f32.mrf.mxu0
        %v3331 = vadd.f32 %v3247, %v3330
        %v3332 = vpop.f32.mrf.mxu0
        %v3333 = vadd.f32 %v3249, %v3332
        %3334 = vdwg.mxu0
        %3335 = vmatpush.bf16.msra.mxu0 %v3142
        %3336 = vmatpush.bf16.msra.mxu0 %v3141
        %3337 = vmatpush.bf16.msra.mxu0 %v3140
        %3338 = vmatpush.bf16.msra.mxu0 %v3139
        %3339 = vmatpush.bf16.msra.mxu0 %v3138
        %3340 = vmatpush.bf16.msra.mxu0 %v3137
        %3341 = vmatpush.bf16.msra.mxu0 %v3136
        %3342 = vmatpush.bf16.msra.mxu0 %v3135
        %3343 = vmatmul.bf16.gmra.mxu0 %v2935
        %v3344 = vpop.f32.mrf.mxu0
        %v3345 = vadd.f32 %v3261, %v3344
        %v3346 = vpop.f32.mrf.mxu0
        %v3347 = vadd.f32 %v3263, %v3346
        %3348 = vmatmul.bf16.gmra.mxu0 %v2938
        %v3349 = vpop.f32.mrf.mxu0
        %v3350 = vadd.f32 %v3266, %v3349
        %v3351 = vpop.f32.mrf.mxu0
        %v3352 = vadd.f32 %v3268, %v3351
        %3353 = vmatmul.bf16.gmra.mxu0 %v2941
        %v3354 = vpop.f32.mrf.mxu0
        %v3355 = vadd.f32 %v3271, %v3354
        %v3356 = vpop.f32.mrf.mxu0
        %v3357 = vadd.f32 %v3273, %v3356
        %3358 = vmatmul.bf16.gmra.mxu0 %v2944
        %v3359 = vpop.f32.mrf.mxu0
        %v3360 = vadd.f32 %v3276, %v3359
        %v3361 = vpop.f32.mrf.mxu0
        %v3362 = vadd.f32 %v3278, %v3361
        %3363 = vmatmul.bf16.gmra.mxu0 %v2947
        %v3364 = vpop.f32.mrf.mxu0
        %v3365 = vadd.f32 %v3281, %v3364
        %v3366 = vpop.f32.mrf.mxu0
        %v3367 = vadd.f32 %v3283, %v3366
        %3368 = vmatmul.bf16.gmra.mxu0 %v2950
        %v3369 = vpop.f32.mrf.mxu0
        %v3370 = vadd.f32 %v3286, %v3369
        %v3371 = vpop.f32.mrf.mxu0
        %v3372 = vadd.f32 %v3288, %v3371
        %3373 = vmatmul.bf16.gmra.mxu0 %v2953
        %v3374 = vpop.f32.mrf.mxu0
        %v3375 = vadd.f32 %v3291, %v3374
        %v3376 = vpop.f32.mrf.mxu0
        %v3377 = vadd.f32 %v3293, %v3376
        %3378 = vmatmul.bf16.gmra.mxu0 %v2956
        %v3379 = vpop.f32.mrf.mxu0
        %v3380 = vadd.f32 %v3296, %v3379
        %v3381 = vpop.f32.mrf.mxu0
        %v3382 = vadd.f32 %v3298, %v3381
        %3383 = vmatmul.bf16.gmra.mxu0 %v2959
        %v3384 = vpop.f32.mrf.mxu0
        %v3385 = vadd.f32 %v3301, %v3384
        %v3386 = vpop.f32.mrf.mxu0
        %v3387 = vadd.f32 %v3303, %v3386
        %3388 = vmatmul.bf16.gmra.mxu0 %v2962
        %v3389 = vpop.f32.mrf.mxu0
        %v3390 = vadd.f32 %v3306, %v3389
        %v3391 = vpop.f32.mrf.mxu0
        %v3392 = vadd.f32 %v3308, %v3391
        %3393 = vmatmul.bf16.gmra.mxu0 %v2965
        %v3394 = vpop.f32.mrf.mxu0
        %v3395 = vadd.f32 %v3311, %v3394
        %v3396 = vpop.f32.mrf.mxu0
        %v3397 = vadd.f32 %v3313, %v3396
        %3398 = vmatmul.bf16.gmra.mxu0 %v2968
        %v3399 = vpop.f32.mrf.mxu0
        %v3400 = vadd.f32 %v3316, %v3399
        %v3401 = vpop.f32.mrf.mxu0
        %v3402 = vadd.f32 %v3318, %v3401
        %3403 = vmatmul.bf16.gmra.mxu0 %v2971
        %v3404 = vpop.f32.mrf.mxu0
        %v3405 = vadd.f32 %v3321, %v3404
        %v3406 = vpop.f32.mrf.mxu0
        %v3407 = vadd.f32 %v3323, %v3406
        %3408 = vmatmul.bf16.gmra.mxu0 %v2974
        %v3409 = vpop.f32.mrf.mxu0
        %v3410 = vadd.f32 %v3326, %v3409
        %v3411 = vpop.f32.mrf.mxu0
        %v3412 = vadd.f32 %v3328, %v3411
        %3413 = vmatmul.bf16.gmra.mxu0 %v2977
        %v3414 = vpop.f32.mrf.mxu0
        %v3415 = vadd.f32 %v3331, %v3414
        %v3416 = vpop.f32.mrf.mxu0
        %v3417 = vadd.f32 %v3333, %v3416
        %3418 = vdwg.mxu0
        %v3419 = vadd.f32 %v2644, %v3345
        %v3420 = vadd.f32 %v2645, %v3347
        %v3421 = vadd.f32 %v2646, %v3350
        %v3422 = vadd.f32 %v2647, %v3352
        %v3423 = vadd.f32 %v2648, %v3355
        %v3424 = vadd.f32 %v2649, %v3357
        %v3425 = vadd.f32 %v2650, %v3360
        %v3426 = vadd.f32 %v2651, %v3362
        %v3427 = vadd.f32 %v2652, %v3365
        %v3428 = vadd.f32 %v2653, %v3367
        %v3429 = vadd.f32 %v2654, %v3370
        %v3430 = vadd.f32 %v2655, %v3372
        %v3431 = vadd.f32 %v2656, %v3375
        %v3432 = vadd.f32 %v2657, %v3377
        %v3433 = vadd.f32 %v2658, %v3380
        %v3434 = vadd.f32 %v2659, %v3382
        %v3435 = vadd.f32 %v2660, %v3385
        %v3436 = vadd.f32 %v2661, %v3387
        %v3437 = vadd.f32 %v2662, %v3390
        %v3438 = vadd.f32 %v2663, %v3392
        %v3439 = vadd.f32 %v2664, %v3395
        %v3440 = vadd.f32 %v2665, %v3397
        %v3441 = vadd.f32 %v2666, %v3400
        %v3442 = vadd.f32 %v2667, %v3402
        %v3443 = vadd.f32 %v2668, %v3405
        %v3444 = vadd.f32 %v2669, %v3407
        %v3445 = vadd.f32 %v2670, %v3410
        %v3446 = vadd.f32 %v2671, %v3412
        %v3447 = vadd.f32 %v2672, %v3415
        %v3448 = vadd.f32 %v2673, %v3417
        %3449 = vst.msk [vmem:[#allocation3] sm:$0xff] %vm1777, %v3419
        %3450 = vst.msk [vmem:[#allocation3 + $0x8] sm:$0xff] %vm1777, %v3420
        %3451 = vst.msk [vmem:[#allocation3 + $0x10] sm:$0xff] %vm1777, %v3421
        %3452 = vst.msk [vmem:[#allocation3 + $0x18] sm:$0xff] %vm1777, %v3422
        %3453 = vst.msk [vmem:[#allocation3 + $0x20] sm:$0xff] %vm1777, %v3423
        %3454 = vst.msk [vmem:[#allocation3 + $0x28] sm:$0xff] %vm1777, %v3424
        %3455 = vst.msk [vmem:[#allocation3 + $0x30] sm:$0xff] %vm1777, %v3425
        %3456 = vst.msk [vmem:[#allocation3 + $0x38] sm:$0xff] %vm1777, %v3426
        %3457 = vst.msk [vmem:[#allocation3 + $0x40] sm:$0xff] %vm1777, %v3427
        %3458 = vst.msk [vmem:[#allocation3 + $0x48] sm:$0xff] %vm1777, %v3428
        %3459 = vst.msk [vmem:[#allocation3 + $0x50] sm:$0xff] %vm1777, %v3429
        %3460 = vst.msk [vmem:[#allocation3 + $0x58] sm:$0xff] %vm1777, %v3430
        %3461 = vst.msk [vmem:[#allocation3 + $0x60] sm:$0xff] %vm1777, %v3431
        %3462 = vst.msk [vmem:[#allocation3 + $0x68] sm:$0xff] %vm1777, %v3432
        %3463 = vst.msk [vmem:[#allocation3 + $0x70] sm:$0xff] %vm1777, %v3433
        %3464 = vst.msk [vmem:[#allocation3 + $0x78] sm:$0xff] %vm1777, %v3434
        %3465 = vst.msk [vmem:[#allocation3 + $0x80] sm:$0xff] %vm1777, %v3435
        %3466 = vst.msk [vmem:[#allocation3 + $0x88] sm:$0xff] %vm1777, %v3436
        %3467 = vst.msk [vmem:[#allocation3 + $0x90] sm:$0xff] %vm1777, %v3437
        %3468 = vst.msk [vmem:[#allocation3 + $0x98] sm:$0xff] %vm1777, %v3438
        %3469 = vst.msk [vmem:[#allocation3 + $0xa0] sm:$0xff] %vm1777, %v3439
        %3470 = vst.msk [vmem:[#allocation3 + $0xa8] sm:$0xff] %vm1777, %v3440
        %3471 = vst.msk [vmem:[#allocation3 + $0xb0] sm:$0xff] %vm1777, %v3441
        %3472 = vst.msk [vmem:[#allocation3 + $0xb8] sm:$0xff] %vm1777, %v3442
        %3473 = vst.msk [vmem:[#allocation3 + $0xc0] sm:$0xff] %vm1777, %v3443
        %3474 = vst.msk [vmem:[#allocation3 + $0xc8] sm:$0xff] %vm1777, %v3444
        %3475 = vst.msk [vmem:[#allocation3 + $0xd0] sm:$0xff] %vm1777, %v3445
        %3476 = vst.msk [vmem:[#allocation3 + $0xd8] sm:$0xff] %vm1777, %v3446
        %3477 = vst.msk [vmem:[#allocation3 + $0xe0] sm:$0xff] %vm1777, %v3447
        %3478 = vst.msk [vmem:[#allocation3 + $0xe8] sm:$0xff] %vm1777, %v3448
        %v3479 = vld [vmem:[#allocation3] sm:$0xff]
        %v3480 = vld [vmem:[#allocation3 + $0x8] sm:$0xff]
        %v3481 = vld [vmem:[#allocation3 + $0x10] sm:$0xff]
        %v3482 = vld [vmem:[#allocation3 + $0x18] sm:$0xff]
        %v3483 = vld [vmem:[#allocation3 + $0x20] sm:$0xff]
        %v3484 = vld [vmem:[#allocation3 + $0x28] sm:$0xff]
        %v3485 = vld [vmem:[#allocation3 + $0x30] sm:$0xff]
        %v3486 = vld [vmem:[#allocation3 + $0x38] sm:$0xff]
        %v3487 = vmax.f32 %v3479, 0.0
        %v3488 = vmax.f32 %v3480, 0.0
        %v3489 = vmax.f32 %v3481, 0.0
        %v3490 = vmax.f32 %v3482, 0.0
        %v3491 = vmax.f32 %v3483, 0.0
        %v3492 = vmax.f32 %v3484, 0.0
        %v3493 = vmax.f32 %v3485, 0.0
        %v3494 = vmax.f32 %v3486, 0.0
        %v3495 = vpack.c.bf16 %v3488, %v3487
        %v3496 = vpack.c.bf16 %v3490, %v3489
        %v3497 = vpack.c.bf16 %v3492, %v3491
        %v3498 = vpack.c.bf16 %v3494, %v3493
        %v3499 = vld [vmem:[%s220] sm:$0xf]
        %v3500 = vld [vmem:[%s220 + $0x4] sm:$0xf]
        %v3501 = vld [vmem:[%s220 + $0x8] sm:$0xf]
        %v3502 = vld [vmem:[%s220 + $0xc] sm:$0xf]
        %v3503 = vld [vmem:[%s220 + $0x10] sm:$0xf]
        %v3504 = vld [vmem:[%s220 + $0x14] sm:$0xf]
        %v3505 = vld [vmem:[%s220 + $0x18] sm:$0xf]
        %v3506 = vld [vmem:[%s220 + $0x1c] sm:$0xf]
        %v3515 = vunpack.c.l.b16 %v3499
        %v3516 = vunpack.c.l.b16 %v3500
        %v3517 = vunpack.c.l.b16 %v3501
        %v3518 = vunpack.c.l.b16 %v3502
        %v3519 = vunpack.c.l.b16 %v3503
        %v3520 = vunpack.c.l.b16 %v3504
        %v3521 = vunpack.c.l.b16 %v3505
        %v3522 = vunpack.c.l.b16 %v3506
        %v3523 = vpack.c.b16 %v3516, %v3515
        %v3524 = vpack.c.b16 %v3518, %v3517
        %v3525 = vpack.c.b16 %v3520, %v3519
        %v3526 = vpack.c.b16 %v3522, %v3521
        %v3532 = vsel %vm1777, %v3495, 0
        %v3535 = vsel %vm1777, %v3496, 0
        %v3538 = vsel %vm1777, %v3497, 0
        %v3541 = vsel %vm1777, %v3498, 0
        %3543 = vmatpush.bf16.msra.mxu0 0
        %3544 = vmatpush.bf16.msra.mxu0 0
        %3545 = vmatpush.bf16.msra.mxu0 0
        %3546 = vmatpush.bf16.msra.mxu0 0
        %3547 = vmatpush.bf16.msra.mxu0 %v3526
        %3548 = vmatpush.bf16.msra.mxu0 %v3525
        %3549 = vmatpush.bf16.msra.mxu0 %v3524
        %3550 = vmatpush.bf16.msra.mxu0 %v3523
        %3551 = vmatmul.bf16.gmra.mxu0 %v3532
        %v3552 = vpop.f32.mrf.mxu0
        %v3553 = vadd.f32 0.0, %v3552
        %v3554 = vpop.f32.mrf.mxu0
        %v3555 = vadd.f32 0.0, %v3554
        %3556 = vmatmul.bf16.gmra.mxu0 %v3535
        %v3557 = vpop.f32.mrf.mxu0
        %v3558 = vadd.f32 0.0, %v3557
        %v3559 = vpop.f32.mrf.mxu0
        %v3560 = vadd.f32 0.0, %v3559
        %3561 = vmatmul.bf16.gmra.mxu0 %v3538
        %v3562 = vpop.f32.mrf.mxu0
        %v3563 = vadd.f32 0.0, %v3562
        %v3564 = vpop.f32.mrf.mxu0
        %v3565 = vadd.f32 0.0, %v3564
        %3566 = vmatmul.bf16.gmra.mxu0 %v3541
        %v3567 = vpop.f32.mrf.mxu0
        %v3568 = vadd.f32 0.0, %v3567
        %v3569 = vpop.f32.mrf.mxu0
        %v3570 = vadd.f32 0.0, %v3569
        %3571 = vdwg.mxu0
        %v3572 = vld [vmem:[%s205] sm:$0xff]
        %v3573 = vld [vmem:[%s205 + $0x8] sm:$0xff]
        %v3574 = vld [vmem:[%s205 + $0x10] sm:$0xff]
        %v3575 = vld [vmem:[%s205 + $0x18] sm:$0xff]
        %v3576 = vld [vmem:[%s205 + $0x20] sm:$0xff]
        %v3577 = vld [vmem:[%s205 + $0x28] sm:$0xff]
        %v3578 = vld [vmem:[%s205 + $0x30] sm:$0xff]
        %v3579 = vld [vmem:[%s205 + $0x38] sm:$0xff]
        %v3580 = vadd.f32 %v3572, %v3553
        %v3581 = vadd.f32 %v3573, %v3555
        %v3582 = vadd.f32 %v3574, %v3558
        %v3583 = vadd.f32 %v3575, %v3560
        %v3584 = vadd.f32 %v3576, %v3563
        %v3585 = vadd.f32 %v3577, %v3565
        %v3586 = vadd.f32 %v3578, %v3568
        %v3587 = vadd.f32 %v3579, %v3570
        %3588 = vst [vmem:[%s205] sm:$0xff] %v3580
        %3589 = vst [vmem:[%s205 + $0x8] sm:$0xff] %v3581
        %3590 = vst [vmem:[%s205 + $0x10] sm:$0xff] %v3582
        %3591 = vst [vmem:[%s205 + $0x18] sm:$0xff] %v3583
        %3592 = vst [vmem:[%s205 + $0x20] sm:$0xff] %v3584
        %3593 = vst [vmem:[%s205 + $0x28] sm:$0xff] %v3585
        %3594 = vst [vmem:[%s205 + $0x30] sm:$0xff] %v3586
        %3595 = vst [vmem:[%s205 + $0x38] sm:$0xff] %v3587
        %v3596 = vld [vmem:[#allocation3 + $0x40] sm:$0xff]
        %v3597 = vld [vmem:[#allocation3 + $0x48] sm:$0xff]
        %v3598 = vld [vmem:[#allocation3 + $0x50] sm:$0xff]
        %v3599 = vld [vmem:[#allocation3 + $0x58] sm:$0xff]
        %v3600 = vld [vmem:[#allocation3 + $0x60] sm:$0xff]
        %v3601 = vld [vmem:[#allocation3 + $0x68] sm:$0xff]
        %v3602 = vld [vmem:[#allocation3 + $0x70] sm:$0xff]
        %v3603 = vld [vmem:[#allocation3 + $0x78] sm:$0xff]
        %v3604 = vmax.f32 %v3596, 0.0
        %v3605 = vmax.f32 %v3597, 0.0
        %v3606 = vmax.f32 %v3598, 0.0
        %v3607 = vmax.f32 %v3599, 0.0
        %v3608 = vmax.f32 %v3600, 0.0
        %v3609 = vmax.f32 %v3601, 0.0
        %v3610 = vmax.f32 %v3602, 0.0
        %v3611 = vmax.f32 %v3603, 0.0
        %v3612 = vpack.c.bf16 %v3605, %v3604
        %v3613 = vpack.c.bf16 %v3607, %v3606
        %v3614 = vpack.c.bf16 %v3609, %v3608
        %v3615 = vpack.c.bf16 %v3611, %v3610
        %v3616 = vld [vmem:[%s220] sm:$0xf]
        %v3617 = vld [vmem:[%s220 + $0x4] sm:$0xf]
        %v3618 = vld [vmem:[%s220 + $0x8] sm:$0xf]
        %v3619 = vld [vmem:[%s220 + $0xc] sm:$0xf]
        %v3620 = vld [vmem:[%s220 + $0x10] sm:$0xf]
        %v3621 = vld [vmem:[%s220 + $0x14] sm:$0xf]
        %v3622 = vld [vmem:[%s220 + $0x18] sm:$0xf]
        %v3623 = vld [vmem:[%s220 + $0x1c] sm:$0xf]
        %v3632 = vunpack.c.l.b16 %v3616
        %v3633 = vunpack.c.l.b16 %v3617
        %v3634 = vunpack.c.l.b16 %v3618
        %v3635 = vunpack.c.l.b16 %v3619
        %v3636 = vunpack.c.l.b16 %v3620
        %v3637 = vunpack.c.l.b16 %v3621
        %v3638 = vunpack.c.l.b16 %v3622
        %v3639 = vunpack.c.l.b16 %v3623
        %v3640 = vpack.c.b16 %v3633, %v3632
        %v3641 = vpack.c.b16 %v3635, %v3634
        %v3642 = vpack.c.b16 %v3637, %v3636
        %v3643 = vpack.c.b16 %v3639, %v3638
        %v3649 = vsel %vm1777, %v3612, 0
        %v3652 = vsel %vm1777, %v3613, 0
        %v3655 = vsel %vm1777, %v3614, 0
        %v3658 = vsel %vm1777, %v3615, 0
        %3660 = vmatpush.bf16.msra.mxu0 0
        %3661 = vmatpush.bf16.msra.mxu0 0
        %3662 = vmatpush.bf16.msra.mxu0 0
        %3663 = vmatpush.bf16.msra.mxu0 0
        %3664 = vmatpush.bf16.msra.mxu0 %v3643
        %3665 = vmatpush.bf16.msra.mxu0 %v3642
        %3666 = vmatpush.bf16.msra.mxu0 %v3641
        %3667 = vmatpush.bf16.msra.mxu0 %v3640
        %3668 = vmatmul.bf16.gmra.mxu0 %v3649
        %v3669 = vpop.f32.mrf.mxu0
        %v3670 = vadd.f32 0.0, %v3669
        %v3671 = vpop.f32.mrf.mxu0
        %v3672 = vadd.f32 0.0, %v3671
        %3673 = vmatmul.bf16.gmra.mxu0 %v3652
        %v3674 = vpop.f32.mrf.mxu0
        %v3675 = vadd.f32 0.0, %v3674
        %v3676 = vpop.f32.mrf.mxu0
        %v3677 = vadd.f32 0.0, %v3676
        %3678 = vmatmul.bf16.gmra.mxu0 %v3655
        %v3679 = vpop.f32.mrf.mxu0
        %v3680 = vadd.f32 0.0, %v3679
        %v3681 = vpop.f32.mrf.mxu0
        %v3682 = vadd.f32 0.0, %v3681
        %3683 = vmatmul.bf16.gmra.mxu0 %v3658
        %v3684 = vpop.f32.mrf.mxu0
        %v3685 = vadd.f32 0.0, %v3684
        %v3686 = vpop.f32.mrf.mxu0
        %v3687 = vadd.f32 0.0, %v3686
        %3688 = vdwg.mxu0
        %v3689 = vld [vmem:[%s205 + $0x40] sm:$0xff]
        %v3690 = vld [vmem:[%s205 + $0x48] sm:$0xff]
        %v3691 = vld [vmem:[%s205 + $0x50] sm:$0xff]
        %v3692 = vld [vmem:[%s205 + $0x58] sm:$0xff]
        %v3693 = vld [vmem:[%s205 + $0x60] sm:$0xff]
        %v3694 = vld [vmem:[%s205 + $0x68] sm:$0xff]
        %v3695 = vld [vmem:[%s205 + $0x70] sm:$0xff]
        %v3696 = vld [vmem:[%s205 + $0x78] sm:$0xff]
        %v3697 = vadd.f32 %v3689, %v3670
        %v3698 = vadd.f32 %v3690, %v3672
        %v3699 = vadd.f32 %v3691, %v3675
        %v3700 = vadd.f32 %v3692, %v3677
        %v3701 = vadd.f32 %v3693, %v3680
        %v3702 = vadd.f32 %v3694, %v3682
        %v3703 = vadd.f32 %v3695, %v3685
        %v3704 = vadd.f32 %v3696, %v3687
        %3705 = vst [vmem:[%s205 + $0x40] sm:$0xff] %v3697
        %3706 = vst [vmem:[%s205 + $0x48] sm:$0xff] %v3698
        %3707 = vst [vmem:[%s205 + $0x50] sm:$0xff] %v3699
        %3708 = vst [vmem:[%s205 + $0x58] sm:$0xff] %v3700
        %3709 = vst [vmem:[%s205 + $0x60] sm:$0xff] %v3701
        %3710 = vst [vmem:[%s205 + $0x68] sm:$0xff] %v3702
        %3711 = vst [vmem:[%s205 + $0x70] sm:$0xff] %v3703
        %3712 = vst [vmem:[%s205 + $0x78] sm:$0xff] %v3704
        %v3713 = vld [vmem:[#allocation3 + $0x80] sm:$0xff]
        %v3714 = vld [vmem:[#allocation3 + $0x88] sm:$0xff]
        %v3715 = vld [vmem:[#allocation3 + $0x90] sm:$0xff]
        %v3716 = vld [vmem:[#allocation3 + $0x98] sm:$0xff]
        %v3717 = vld [vmem:[#allocation3 + $0xa0] sm:$0xff]
        %v3718 = vld [vmem:[#allocation3 + $0xa8] sm:$0xff]
        %v3719 = vld [vmem:[#allocation3 + $0xb0] sm:$0xff]
        %v3720 = vld [vmem:[#allocation3 + $0xb8] sm:$0xff]
        %v3721 = vmax.f32 %v3713, 0.0
        %v3722 = vmax.f32 %v3714, 0.0
        %v3723 = vmax.f32 %v3715, 0.0
        %v3724 = vmax.f32 %v3716, 0.0
        %v3725 = vmax.f32 %v3717, 0.0
        %v3726 = vmax.f32 %v3718, 0.0
        %v3727 = vmax.f32 %v3719, 0.0
        %v3728 = vmax.f32 %v3720, 0.0
        %v3729 = vpack.c.bf16 %v3722, %v3721
        %v3730 = vpack.c.bf16 %v3724, %v3723
        %v3731 = vpack.c.bf16 %v3726, %v3725
        %v3732 = vpack.c.bf16 %v3728, %v3727
        %v3733 = vld [vmem:[%s220] sm:$0xf]
        %v3734 = vld [vmem:[%s220 + $0x4] sm:$0xf]
        %v3735 = vld [vmem:[%s220 + $0x8] sm:$0xf]
        %v3736 = vld [vmem:[%s220 + $0xc] sm:$0xf]
        %v3737 = vld [vmem:[%s220 + $0x10] sm:$0xf]
        %v3738 = vld [vmem:[%s220 + $0x14] sm:$0xf]
        %v3739 = vld [vmem:[%s220 + $0x18] sm:$0xf]
        %v3740 = vld [vmem:[%s220 + $0x1c] sm:$0xf]
        %v3749 = vunpack.c.l.b16 %v3733
        %v3750 = vunpack.c.l.b16 %v3734
        %v3751 = vunpack.c.l.b16 %v3735
        %v3752 = vunpack.c.l.b16 %v3736
        %v3753 = vunpack.c.l.b16 %v3737
        %v3754 = vunpack.c.l.b16 %v3738
        %v3755 = vunpack.c.l.b16 %v3739
        %v3756 = vunpack.c.l.b16 %v3740
        %v3757 = vpack.c.b16 %v3750, %v3749
        %v3758 = vpack.c.b16 %v3752, %v3751
        %v3759 = vpack.c.b16 %v3754, %v3753
        %v3760 = vpack.c.b16 %v3756, %v3755
        %v3766 = vsel %vm1777, %v3729, 0
        %v3769 = vsel %vm1777, %v3730, 0
        %v3772 = vsel %vm1777, %v3731, 0
        %v3775 = vsel %vm1777, %v3732, 0
        %3777 = vmatpush.bf16.msra.mxu0 0
        %3778 = vmatpush.bf16.msra.mxu0 0
        %3779 = vmatpush.bf16.msra.mxu0 0
        %3780 = vmatpush.bf16.msra.mxu0 0
        %3781 = vmatpush.bf16.msra.mxu0 %v3760
        %3782 = vmatpush.bf16.msra.mxu0 %v3759
        %3783 = vmatpush.bf16.msra.mxu0 %v3758
        %3784 = vmatpush.bf16.msra.mxu0 %v3757
        %3785 = vmatmul.bf16.gmra.mxu0 %v3766
        %v3786 = vpop.f32.mrf.mxu0
        %v3787 = vadd.f32 0.0, %v3786
        %v3788 = vpop.f32.mrf.mxu0
        %v3789 = vadd.f32 0.0, %v3788
        %3790 = vmatmul.bf16.gmra.mxu0 %v3769
        %v3791 = vpop.f32.mrf.mxu0
        %v3792 = vadd.f32 0.0, %v3791
        %v3793 = vpop.f32.mrf.mxu0
        %v3794 = vadd.f32 0.0, %v3793
        %3795 = vmatmul.bf16.gmra.mxu0 %v3772
        %v3796 = vpop.f32.mrf.mxu0
        %v3797 = vadd.f32 0.0, %v3796
        %v3798 = vpop.f32.mrf.mxu0
        %v3799 = vadd.f32 0.0, %v3798
        %3800 = vmatmul.bf16.gmra.mxu0 %v3775
        %v3801 = vpop.f32.mrf.mxu0
        %v3802 = vadd.f32 0.0, %v3801
        %v3803 = vpop.f32.mrf.mxu0
        %v3804 = vadd.f32 0.0, %v3803
        %3805 = vdwg.mxu0
        %v3806 = vld [vmem:[%s205 + $0x80] sm:$0xff]
        %v3807 = vld [vmem:[%s205 + $0x88] sm:$0xff]
        %v3808 = vld [vmem:[%s205 + $0x90] sm:$0xff]
        %v3809 = vld [vmem:[%s205 + $0x98] sm:$0xff]
        %v3810 = vld [vmem:[%s205 + $0xa0] sm:$0xff]
        %v3811 = vld [vmem:[%s205 + $0xa8] sm:$0xff]
        %v3812 = vld [vmem:[%s205 + $0xb0] sm:$0xff]
        %v3813 = vld [vmem:[%s205 + $0xb8] sm:$0xff]
        %v3814 = vadd.f32 %v3806, %v3787
        %v3815 = vadd.f32 %v3807, %v3789
        %v3816 = vadd.f32 %v3808, %v3792
        %v3817 = vadd.f32 %v3809, %v3794
        %v3818 = vadd.f32 %v3810, %v3797
        %v3819 = vadd.f32 %v3811, %v3799
        %v3820 = vadd.f32 %v3812, %v3802
        %v3821 = vadd.f32 %v3813, %v3804
        %3822 = vst [vmem:[%s205 + $0x80] sm:$0xff] %v3814
        %3823 = vst [vmem:[%s205 + $0x88] sm:$0xff] %v3815
        %3824 = vst [vmem:[%s205 + $0x90] sm:$0xff] %v3816
        %3825 = vst [vmem:[%s205 + $0x98] sm:$0xff] %v3817
        %3826 = vst [vmem:[%s205 + $0xa0] sm:$0xff] %v3818
        %3827 = vst [vmem:[%s205 + $0xa8] sm:$0xff] %v3819
        %3828 = vst [vmem:[%s205 + $0xb0] sm:$0xff] %v3820
        %3829 = vst [vmem:[%s205 + $0xb8] sm:$0xff] %v3821
        %v3830 = vld [vmem:[#allocation3 + $0xc0] sm:$0xff]
        %v3831 = vld [vmem:[#allocation3 + $0xc8] sm:$0xff]
        %v3832 = vld [vmem:[#allocation3 + $0xd0] sm:$0xff]
        %v3833 = vld [vmem:[#allocation3 + $0xd8] sm:$0xff]
        %v3834 = vld [vmem:[#allocation3 + $0xe0] sm:$0xff]
        %v3835 = vld [vmem:[#allocation3 + $0xe8] sm:$0xff]
        %v3836 = vld [vmem:[#allocation3 + $0xf0] sm:$0xff]
        %v3837 = vld [vmem:[#allocation3 + $0xf8] sm:$0xff]
        %v3838 = vmax.f32 %v3830, 0.0
        %v3839 = vmax.f32 %v3831, 0.0
        %v3840 = vmax.f32 %v3832, 0.0
        %v3841 = vmax.f32 %v3833, 0.0
        %v3842 = vmax.f32 %v3834, 0.0
        %v3843 = vmax.f32 %v3835, 0.0
        %v3844 = vmax.f32 %v3836, 0.0
        %v3845 = vmax.f32 %v3837, 0.0
        %v3846 = vpack.c.bf16 %v3839, %v3838
        %v3847 = vpack.c.bf16 %v3841, %v3840
        %v3848 = vpack.c.bf16 %v3843, %v3842
        %v3849 = vpack.c.bf16 %v3845, %v3844
        %v3850 = vld [vmem:[%s220] sm:$0xf]
        %v3851 = vld [vmem:[%s220 + $0x4] sm:$0xf]
        %v3852 = vld [vmem:[%s220 + $0x8] sm:$0xf]
        %v3853 = vld [vmem:[%s220 + $0xc] sm:$0xf]
        %v3854 = vld [vmem:[%s220 + $0x10] sm:$0xf]
        %v3855 = vld [vmem:[%s220 + $0x14] sm:$0xf]
        %v3856 = vld [vmem:[%s220 + $0x18] sm:$0xf]
        %v3857 = vld [vmem:[%s220 + $0x1c] sm:$0xf]
        %v3866 = vunpack.c.l.b16 %v3850
        %v3867 = vunpack.c.l.b16 %v3851
        %v3868 = vunpack.c.l.b16 %v3852
        %v3869 = vunpack.c.l.b16 %v3853
        %v3870 = vunpack.c.l.b16 %v3854
        %v3871 = vunpack.c.l.b16 %v3855
        %v3872 = vunpack.c.l.b16 %v3856
        %v3873 = vunpack.c.l.b16 %v3857
        %v3874 = vpack.c.b16 %v3867, %v3866
        %v3875 = vpack.c.b16 %v3869, %v3868
        %v3876 = vpack.c.b16 %v3871, %v3870
        %v3877 = vpack.c.b16 %v3873, %v3872
        %v3883 = vsel %vm1777, %v3846, 0
        %v3886 = vsel %vm1777, %v3847, 0
        %v3889 = vsel %vm1777, %v3848, 0
        %v3892 = vsel %vm1777, %v3849, 0
        %3894 = vmatpush.bf16.msra.mxu0 0
        %3895 = vmatpush.bf16.msra.mxu0 0
        %3896 = vmatpush.bf16.msra.mxu0 0
        %3897 = vmatpush.bf16.msra.mxu0 0
        %3898 = vmatpush.bf16.msra.mxu0 %v3877
        %3899 = vmatpush.bf16.msra.mxu0 %v3876
        %3900 = vmatpush.bf16.msra.mxu0 %v3875
        %3901 = vmatpush.bf16.msra.mxu0 %v3874
        %3902 = vmatmul.bf16.gmra.mxu0 %v3883
        %v3903 = vpop.f32.mrf.mxu0
        %v3904 = vadd.f32 0.0, %v3903
        %v3905 = vpop.f32.mrf.mxu0
        %v3906 = vadd.f32 0.0, %v3905
        %3907 = vmatmul.bf16.gmra.mxu0 %v3886
        %v3908 = vpop.f32.mrf.mxu0
        %v3909 = vadd.f32 0.0, %v3908
        %v3910 = vpop.f32.mrf.mxu0
        %v3911 = vadd.f32 0.0, %v3910
        %3912 = vmatmul.bf16.gmra.mxu0 %v3889
        %v3913 = vpop.f32.mrf.mxu0
        %v3914 = vadd.f32 0.0, %v3913
        %v3915 = vpop.f32.mrf.mxu0
        %v3916 = vadd.f32 0.0, %v3915
        %3917 = vmatmul.bf16.gmra.mxu0 %v3892
        %v3918 = vpop.f32.mrf.mxu0
        %v3919 = vadd.f32 0.0, %v3918
        %v3920 = vpop.f32.mrf.mxu0
        %v3921 = vadd.f32 0.0, %v3920
        %3922 = vdwg.mxu0
        %v3923 = vld [vmem:[%s205 + $0xc0] sm:$0xff]
        %v3924 = vld [vmem:[%s205 + $0xc8] sm:$0xff]
        %v3925 = vld [vmem:[%s205 + $0xd0] sm:$0xff]
        %v3926 = vld [vmem:[%s205 + $0xd8] sm:$0xff]
        %v3927 = vld [vmem:[%s205 + $0xe0] sm:$0xff]
        %v3928 = vld [vmem:[%s205 + $0xe8] sm:$0xff]
        %v3929 = vld [vmem:[%s205 + $0xf0] sm:$0xff]
        %v3930 = vld [vmem:[%s205 + $0xf8] sm:$0xff]
        %v3931 = vadd.f32 %v3923, %v3904
        %v3932 = vadd.f32 %v3924, %v3906
        %v3933 = vadd.f32 %v3925, %v3909
        %v3934 = vadd.f32 %v3926, %v3911
        %v3935 = vadd.f32 %v3927, %v3914
        %v3936 = vadd.f32 %v3928, %v3916
        %v3937 = vadd.f32 %v3929, %v3919
        %v3938 = vadd.f32 %v3930, %v3921
        %3939 = vst [vmem:[%s205 + $0xc0] sm:$0xff] %v3931
        %3940 = vst [vmem:[%s205 + $0xc8] sm:$0xff] %v3932
        %3941 = vst [vmem:[%s205 + $0xd0] sm:$0xff] %v3933
        %3942 = vst [vmem:[%s205 + $0xd8] sm:$0xff] %v3934
        %3943 = vst [vmem:[%s205 + $0xe0] sm:$0xff] %v3935
        %3944 = vst [vmem:[%s205 + $0xe8] sm:$0xff] %v3936
        %3945 = vst [vmem:[%s205 + $0xf0] sm:$0xff] %v3937
        %3946 = vst [vmem:[%s205 + $0xf8] sm:$0xff] %v3938
        %p3947 = scmp.eq.s32.totalorder %s22, 2
        // Predicated region
        $region37: #{tpu_custom_call.1} parent=31 // pred_check
          %p3948 = pneg %p3947
        $region38: #{tpu_custom_call.1} parent=31 // pred_check_branch
          %3950 = sbr.rel (%p3948) target = $region40
        $region39: #{tpu_custom_call.1} parent=31 // pred_region
          %v3951 = vld [vmem:[%s205] sm:$0xff]
          %v3952 = vld [vmem:[%s205 + $0x8] sm:$0xff]
          %v3953 = vld [vmem:[%s205 + $0x10] sm:$0xff]
          %v3954 = vld [vmem:[%s205 + $0x18] sm:$0xff]
          %v3955 = vld [vmem:[%s205 + $0x20] sm:$0xff]
          %v3956 = vld [vmem:[%s205 + $0x28] sm:$0xff]
          %v3957 = vld [vmem:[%s205 + $0x30] sm:$0xff]
          %v3958 = vld [vmem:[%s205 + $0x38] sm:$0xff]
          %v3959 = vld [vmem:[%s205 + $0x40] sm:$0xff]
          %v3960 = vld [vmem:[%s205 + $0x48] sm:$0xff]
          %v3961 = vld [vmem:[%s205 + $0x50] sm:$0xff]
          %v3962 = vld [vmem:[%s205 + $0x58] sm:$0xff]
          %v3963 = vld [vmem:[%s205 + $0x60] sm:$0xff]
          %v3964 = vld [vmem:[%s205 + $0x68] sm:$0xff]
          %v3965 = vld [vmem:[%s205 + $0x70] sm:$0xff]
          %v3966 = vld [vmem:[%s205 + $0x78] sm:$0xff]
          %v3967 = vld [vmem:[%s205 + $0x80] sm:$0xff]
          %v3968 = vld [vmem:[%s205 + $0x88] sm:$0xff]
          %v3969 = vld [vmem:[%s205 + $0x90] sm:$0xff]
          %v3970 = vld [vmem:[%s205 + $0x98] sm:$0xff]
          %v3971 = vld [vmem:[%s205 + $0xa0] sm:$0xff]
          %v3972 = vld [vmem:[%s205 + $0xa8] sm:$0xff]
          %v3973 = vld [vmem:[%s205 + $0xb0] sm:$0xff]
          %v3974 = vld [vmem:[%s205 + $0xb8] sm:$0xff]
          %v3975 = vld [vmem:[%s205 + $0xc0] sm:$0xff]
          %v3976 = vld [vmem:[%s205 + $0xc8] sm:$0xff]
          %v3977 = vld [vmem:[%s205 + $0xd0] sm:$0xff]
          %v3978 = vld [vmem:[%s205 + $0xd8] sm:$0xff]
          %v3979 = vld [vmem:[%s205 + $0xe0] sm:$0xff]
          %v3980 = vld [vmem:[%s205 + $0xe8] sm:$0xff]
          %v3981 = vld [vmem:[%s205 + $0xf0] sm:$0xff]
          %v3982 = vld [vmem:[%s205 + $0xf8] sm:$0xff]
          %v3983 = vmax.f32 %v3951, 0.0
          %v3984 = vmax.f32 %v3952, 0.0
          %v3985 = vmax.f32 %v3953, 0.0
          %v3986 = vmax.f32 %v3954, 0.0
          %v3987 = vmax.f32 %v3955, 0.0
          %v3988 = vmax.f32 %v3956, 0.0
          %v3989 = vmax.f32 %v3957, 0.0
          %v3990 = vmax.f32 %v3958, 0.0
          %v3991 = vmax.f32 %v3959, 0.0
          %v3992 = vmax.f32 %v3960, 0.0
          %v3993 = vmax.f32 %v3961, 0.0
          %v3994 = vmax.f32 %v3962, 0.0
          %v3995 = vmax.f32 %v3963, 0.0
          %v3996 = vmax.f32 %v3964, 0.0
          %v3997 = vmax.f32 %v3965, 0.0
          %v3998 = vmax.f32 %v3966, 0.0
          %v3999 = vmax.f32 %v3967, 0.0
          %v4000 = vmax.f32 %v3968, 0.0
          %v4001 = vmax.f32 %v3969, 0.0
          %v4002 = vmax.f32 %v3970, 0.0
          %v4003 = vmax.f32 %v3971, 0.0
          %v4004 = vmax.f32 %v3972, 0.0
          %v4005 = vmax.f32 %v3973, 0.0
          %v4006 = vmax.f32 %v3974, 0.0
          %v4007 = vmax.f32 %v3975, 0.0
          %v4008 = vmax.f32 %v3976, 0.0
          %v4009 = vmax.f32 %v3977, 0.0
          %v4010 = vmax.f32 %v3978, 0.0
          %v4011 = vmax.f32 %v3979, 0.0
          %v4012 = vmax.f32 %v3980, 0.0
          %v4013 = vmax.f32 %v3981, 0.0
          %v4014 = vmax.f32 %v3982, 0.0
          %4015 = vst [vmem:[%s205] sm:$0xff] %v3983
          %4016 = vst [vmem:[%s205 + $0x8] sm:$0xff] %v3984
          %4017 = vst [vmem:[%s205 + $0x10] sm:$0xff] %v3985
          %4018 = vst [vmem:[%s205 + $0x18] sm:$0xff] %v3986
          %4019 = vst [vmem:[%s205 + $0x20] sm:$0xff] %v3987
          %4020 = vst [vmem:[%s205 + $0x28] sm:$0xff] %v3988
          %4021 = vst [vmem:[%s205 + $0x30] sm:$0xff] %v3989
          %4022 = vst [vmem:[%s205 + $0x38] sm:$0xff] %v3990
          %4023 = vst [vmem:[%s205 + $0x40] sm:$0xff] %v3991
          %4024 = vst [vmem:[%s205 + $0x48] sm:$0xff] %v3992
          %4025 = vst [vmem:[%s205 + $0x50] sm:$0xff] %v3993
          %4026 = vst [vmem:[%s205 + $0x58] sm:$0xff] %v3994
          %4027 = vst [vmem:[%s205 + $0x60] sm:$0xff] %v3995
          %4028 = vst [vmem:[%s205 + $0x68] sm:$0xff] %v3996
          %4029 = vst [vmem:[%s205 + $0x70] sm:$0xff] %v3997
          %4030 = vst [vmem:[%s205 + $0x78] sm:$0xff] %v3998
          %4031 = vst [vmem:[%s205 + $0x80] sm:$0xff] %v3999
          %4032 = vst [vmem:[%s205 + $0x88] sm:$0xff] %v4000
          %4033 = vst [vmem:[%s205 + $0x90] sm:$0xff] %v4001
          %4034 = vst [vmem:[%s205 + $0x98] sm:$0xff] %v4002
          %4035 = vst [vmem:[%s205 + $0xa0] sm:$0xff] %v4003
          %4036 = vst [vmem:[%s205 + $0xa8] sm:$0xff] %v4004
          %4037 = vst [vmem:[%s205 + $0xb0] sm:$0xff] %v4005
          %4038 = vst [vmem:[%s205 + $0xb8] sm:$0xff] %v4006
          %4039 = vst [vmem:[%s205 + $0xc0] sm:$0xff] %v4007
          %4040 = vst [vmem:[%s205 + $0xc8] sm:$0xff] %v4008
          %4041 = vst [vmem:[%s205 + $0xd0] sm:$0xff] %v4009
          %4042 = vst [vmem:[%s205 + $0xd8] sm:$0xff] %v4010
          %4043 = vst [vmem:[%s205 + $0xe0] sm:$0xff] %v4011
          %4044 = vst [vmem:[%s205 + $0xe8] sm:$0xff] %v4012
          %4045 = vst [vmem:[%s205 + $0xf0] sm:$0xff] %v4013
          %4046 = vst [vmem:[%s205 + $0xf8] sm:$0xff] %v4014
        $region40: #{tpu_custom_call.1} parent=31 // pred_fallthru
          _
        %s4047 = sand.u32 %s115, 1
        %s4048 = scalar_lea.sflag [#allocation5], %s4047
        %s4049 = sand.u32 %s115, 1
        %s4050 = smul.addr %s4049, 256
        %s4051 = scalar_lea.vmem [#allocation4], %s4050
        // Predicated region
        $region41: #{tpu_custom_call.1} parent=31 // pred_check
          %p4052 = pneg %p125
        $region42: #{tpu_custom_call.1} parent=31 // pred_check_branch
          %4054 = sbr.rel (%p4052) target = $region44
        $region43: #{tpu_custom_call.1} parent=31 // pred_region
          %4056 = vsyncadd %s4048, 0
          %s4057 = smul.addr %s21, 32
          %s4058 = smul.addr %s4057, 8
          %s4059 = scalar_lea.hbm %s3, %s4058
          %s4060 = sshll.u32 %s4051, 4
          %s4061 = int_to_ptr.vmem [resolvable:$true] %s4060
          %s4062 = sshll.u32 %s4059, 4
          %s4063 = int_to_ptr.hbm [resolvable:$true] %s4062
          %4068 = dma.vmem_to_hbm [thread:$0]  %s4061, 4096, %s4063, %s4048, 128, 128, 8
        $region44: #{tpu_custom_call.1} parent=31 // pred_fallthru
          _
      $region32: #{tpu_custom_call.1} parent=5 // pred_fallthru
        _
      %p4069 = scmp.le.s32.totalorder 2, %s12
      // Predicated region
      $region45: #{tpu_custom_call.1} parent=5 // pred_check
        %p4070 = pneg %p4069
      $region46: #{tpu_custom_call.1} parent=5 // pred_check_branch
        %4072 = sbr.rel (%p4070) target = $region48
      $region47: #{tpu_custom_call.1} parent=5 // pred_region
        %s4073 = ssub.s32 %s12, 2
        // Predicated region
        $region49: #{tpu_custom_call.1} parent=47 // pred_check
          %p4074 = pneg %p131
        $region50: #{tpu_custom_call.1} parent=47 // pred_check_branch
          %4076 = sbr.rel (%p4074) target = $region52
        $region51: #{tpu_custom_call.1} parent=47 // pred_region
          %s4077 = sand.u32 %s116, 1
          %s4078 = scalar_lea.sflag [#allocation5], %s4077
          %s4079 = sand.u32 %s116, 1
          %s4080 = smul.addr %s4079, 256
          %s4081 = scalar_lea.vmem [#allocation4], %s4080
          %4083 = dma.done %s4078, 4096
        $region52: #{tpu_custom_call.1} parent=47 // pred_fallthru
          _
      $region48: #{tpu_custom_call.1} parent=5 // pred_fallthru
        _
    $region6: #{tpu_custom_call.1} parent=1 // loop_footer
      %s16 = sadd.s32 1, %s12
    $region7: #{tpu_custom_call.1} parent=1 // loop_footer_branch
      %11 = sbr.rel target = $region3
    $region8: #{tpu_custom_call.1} parent=1 // loop_exit
      _
    %4084 = vsyncpa [#allocation5], 1
    %s4085 = scalar_lea.sflag [#allocation5], 1
    %4086 = vsyncpa %s4085, 1

</llo_original>
